<compile_context>
chip_gen: v7x
topology: tpu7x:2x2x1
jax: 0.10.0
libtpu: 0.0.40
codegen_flags: <defaults>
</compile_context>

<pallas_src>
import jax
import jax.numpy as jnp
from jax import lax
from jax.experimental import pallas as pl
from jax.experimental.pallas import tpu as pltpu

LANE = 128


def _round_up(x, m):
    return (x + m - 1) // m * m


def _pad_to(x, shape):
    return jnp.pad(x, [(0, t - s) for s, t in zip(x.shape, shape)])


# ----------------------------- Pallas kernels ------------------------------

def conv_pool_relu_kernel(p_ref, w_ref, b_ref, o_ref):
    """Fused im2col-conv (MXU matmul) + bias + 2x2 max-pool + ReLU.

    p_ref: (4, TM, Kp) bf16  -- patches; leading axis = 2x2 pool-window offset
    w_ref: (Kp, 128)   bf16  -- zero-padded weight (lanes = Cout padded to 128)
    b_ref: (1, 128)    f32   -- zero-padded bias
    o_ref: (TM, 128)   f32   -- pooled + ReLU'd conv output (lane-dense)
    """
    w = w_ref[...]
    y0 = jnp.dot(p_ref[0], w, preferred_element_type=jnp.float32)
    y1 = jnp.dot(p_ref[1], w, preferred_element_type=jnp.float32)
    y2 = jnp.dot(p_ref[2], w, preferred_element_type=jnp.float32)
    y3 = jnp.dot(p_ref[3], w, preferred_element_type=jnp.float32)
    m = jnp.maximum(jnp.maximum(y0, y1), jnp.maximum(y2, y3))
    # max-pool(conv + bias) == max-pool(conv) + bias (bias constant per window)
    o_ref[...] = jnp.maximum(m + b_ref[...], 0.0)


def matmul_bias_kernel(x_ref, w_ref, b_ref, o_ref):
    o_ref[...] = (
        jnp.dot(x_ref[...], w_ref[...], preferred_element_type=jnp.float32)
        + b_ref[...]
    )


# ------------------------------ Pallas wrappers -----------------------------

def _pick_tm(m, tm_max):
    m8 = _round_up(m, 8)
    return m8 if m8 <= tm_max else tm_max


def conv_pool_relu(patches, w_pad, b_pad, *, tm_max=512):
    """patches: (4, M, Kp) bf16; w_pad: (Kp, 128) bf16; b_pad: (1, 128) f32.
    Returns (M, 128) f32."""
    _, M, Kp = patches.shape
    TM = _pick_tm(M, tm_max)
    Mp = _round_up(M, TM)
    if Mp != M:
        patches = _pad_to(patches, (4, Mp, Kp))
    out = pl.pallas_call(
        conv_pool_relu_kernel,
        out_shape=jax.ShapeDtypeStruct((Mp, LANE), jnp.float32),
        grid=(Mp // TM,),
        in_specs=[
            pl.BlockSpec((4, TM, Kp), lambda i: (0, i, 0)),
            pl.BlockSpec((Kp, LANE), lambda i: (0, 0)),
            pl.BlockSpec((1, LANE), lambda i: (0, 0)),
        ],
        out_specs=pl.BlockSpec((TM, LANE), lambda i: (i, 0)),
        compiler_params=pltpu.CompilerParams(
            dimension_semantics=("parallel",)),
    )(patches, w_pad, b_pad)
    return out[:M] if Mp != M else out


def matmul_bias(x, w_pad, b_pad, *, tm_max=512):
    """x: (M, K) bf16, w_pad: (K, 128) bf16, b_pad: (1, 128) f32 -> (M, 128) f32."""
    M, K = x.shape
    TM = _pick_tm(M, tm_max)
    Mp = _round_up(M, TM)
    if Mp != M:
        x = _pad_to(x, (Mp, K))
    out = pl.pallas_call(
        matmul_bias_kernel,
        out_shape=jax.ShapeDtypeStruct((Mp, LANE), jnp.float32),
        grid=(Mp // TM,),
        in_specs=[
            pl.BlockSpec((TM, K), lambda i: (i, 0)),
            pl.BlockSpec((K, LANE), lambda i: (0, 0)),
            pl.BlockSpec((1, LANE), lambda i: (0, 0)),
        ],
        out_specs=pl.BlockSpec((TM, LANE), lambda i: (i, 0)),
        compiler_params=pltpu.CompilerParams(
            dimension_semantics=("parallel",)),
    )(x, w_pad, b_pad)
    return out[:M] if Mp != M else out


# ------------------------------- glue (plain JAX) ---------------------------

def pooled_conv_patches(x_nhwc, k):
    """Extract k x k valid-conv patches at exactly the positions covered by a
    following 2x2/stride-2 max-pool, grouped by pool-window offset.

    x: (B, H, W, C) f32 -> (4, B*Hp*Wp, C*k*k) f32, leading axis ordered
    (dh, dw) row-major; feature order is (c, kh, kw), matching
    PyTorch's weight.reshape(Cout, Cin*k*k)."""
    B, H, W, C = x_nhwc.shape
    Hp, Wp = (H - k + 1) // 2, (W - k + 1) // 2
    outs = []
    for dh in (0, 1):
        for dw in (0, 1):
            p = lax.conv_general_dilated_patches(
                x_nhwc[:, dh:, dw:, :], (k, k), (2, 2), "VALID",
                dimension_numbers=("NHWC", "HWIO", "NHWC"))
            outs.append(p.reshape(B * Hp * Wp, C * k * k))
    return jnp.stack(outs, axis=0)


def prep_conv_params(w, b, k_pad):
    """PyTorch conv weight (Cout, Cin, k, k) / bias (Cout,) ->
    zero-padded (k_pad, 128) bf16 weight and (1, 128) f32 bias."""
    cout = w.shape[0]
    wm = w.reshape(cout, -1).T                       # (Cin*k*k, Cout)
    wm = _pad_to(wm, (k_pad, LANE)).astype(jnp.bfloat16)
    bm = _pad_to(b.reshape(1, cout), (1, LANE)).astype(jnp.float32)
    return wm, bm


def prep_linear_params(wl, bl, c_real, hw):
    """PyTorch linear weight (10, C*H*W) in (c, h, w) flatten order -> a
    (hw*128, 128) bf16 weight that consumes the lane-padded (pos, 128ch)
    activation slab directly (padded rows/cols are zero)."""
    n_out = wl.shape[0]
    w = wl.reshape(n_out, c_real, hw).transpose(2, 1, 0)   # (hw, c_real, n_out)
    w = _pad_to(w, (hw, LANE, LANE)).reshape(hw * LANE, LANE)
    b = _pad_to(bl.reshape(1, n_out), (1, LANE)).astype(jnp.float32)
    return w.astype(jnp.bfloat16), b


def net_forward(x, params):
    """x: (B, 1, 28, 28) NCHW f32 -> logits (B, 10) f32."""
    w1, b1, w2, b2, wl, bl = params
    B = x.shape[0]

    # trace-time weight prep (tiny)
    w1m, b1m = prep_conv_params(w1, b1, 128)    # K: 25  -> 128
    w2m, b2m = prep_conv_params(w2, b2, 256)    # K: 250 -> 256
    wlm, blm = prep_linear_params(wl, bl, 20, 16)

    # stage 1: conv1 + pool + relu   (28x28 -> 12x12, 10 real ch in 128 lanes)
    x1 = x.transpose(0, 2, 3, 1)                                   # NHWC
    p1 = pooled_conv_patches(x1, 5)                                # (4, B*144, 25)
    p1 = _pad_to(p1, (4, p1.shape[1], 128)).astype(jnp.bfloat16)
    h1 = conv_pool_relu(p1, w1m, b1m)                              # (B*144, 128)

    # stage 2: conv2 + pool + relu   (12x12 -> 4x4, 20 real ch in 128 lanes)
    x2 = h1.reshape(B, 12, 12, LANE)[..., :10]                     # (B,12,12,10)
    p2 = pooled_conv_patches(x2, 5)                                # (4, B*16, 250)
    p2 = _pad_to(p2, (4, p2.shape[1], 256)).astype(jnp.bfloat16)
    h2 = conv_pool_relu(p2, w2m, b2m)                              # (B*16, 128)

    # linear 320 -> 10, consuming the lane-padded (pos, 128ch) slab directly
    feat = h2.reshape(B, 16 * LANE).astype(jnp.bfloat16)           # (B, 2048)
    logits = matmul_bias(feat, wlm, blm)                           # (B, 128)
    return logits[:, :10]


# ------------------------------ pure-JAX reference --------------------------

def reference_forward(x, params):
    w1, b1, w2, b2, wl, bl = params
    dn = ("NCHW", "OIHW", "NCHW")
    hp = jax.lax.Precision.HIGHEST
    y = lax.conv_general_dilated(x, w1, (1, 1), "VALID",
                                 dimension_numbers=dn, precision=hp)
    y = y + b1[None, :, None, None]
    y = lax.reduce_window(y, -jnp.inf, lax.max, (1, 1, 2, 2), (1, 1, 2, 2), "VALID")
    y = jnp.maximum(y, 0.0)
    y = lax.conv_general_dilated(y, w2, (1, 1), "VALID",
                                 dimension_numbers=dn, precision=hp)
    y = y + b2[None, :, None, None]
    y = lax.reduce_window(y, -jnp.inf, lax.max, (1, 1, 2, 2), (1, 1, 2, 2), "VALID")
    y = jnp.maximum(y, 0.0)
    y = y.reshape(x.shape[0], -1)
    return jnp.dot(y, wl.T, precision=hp) + bl


# ----------------------------------- main ------------------------------------

if __name__ == "__main__":
    key = jax.random.PRNGKey(0)
    kx, k1, k2, k3, k4, k5, k6 = jax.random.split(key, 7)

    # input must be 28x28 so the flattened feature size is 320 (as Linear(320,..) implies)
    x = jax.random.normal(kx, (2, 1, 28, 28), jnp.float32)

    # deterministic synthetic parameters (PyTorch shapes)
    w1 = jax.random.normal(k1, (10, 1, 5, 5), jnp.float32) * 0.10   # conv1.weight
    b1 = jax.random.normal(k2, (10,), jnp.float32) * 0.10           # conv1.bias
    w2 = jax.random.normal(k3, (20, 10, 5, 5), jnp.float32) * 0.05  # conv2.weight
    b2 = jax.random.normal(k4, (20,), jnp.float32) * 0.10           # conv2.bias
    wl = jax.random.normal(k5, (10, 320), jnp.float32) * 0.05       # linear.weight
    bl = jax.random.normal(k6, (10,), jnp.float32) * 0.10           # linear.bias
    params = (w1, b1, w2, b2, wl, bl)

    out = jax.block_until_ready(jax.jit(net_forward)(x, params))
    ref = jax.block_until_ready(reference_forward(x, params))

    assert out.shape == (2, 10), out.shape
    assert bool(jnp.all(jnp.isfinite(out)))
    assert bool(jnp.allclose(out, ref, atol=2e-2, rtol=2e-2)), (
        "mismatch vs pure-JAX reference")

    print("KERNEL_OK")
</pallas_src>

<mosaic_0001>
module attributes {stable_mosaic.version = 11 : i64} {
  func.func @conv_pool_relu_kernel(%arg0: i32, %arg1: memref<4x288x128xbf16, #tpu.memory_space<vmem>>, %arg2: memref<128x128xbf16, #tpu.memory_space<vmem>>, %arg3: memref<1x128xf32, #tpu.memory_space<vmem>>, %arg4: memref<288x128xf32, #tpu.memory_space<vmem>>) attributes {dimension_semantics = [#tpu.dimension_semantics<parallel>], iteration_bounds = array<i64: 1>, scalar_prefetch = 0 : i64, scratch_operands = 0 : i64, tpu.core_type = #tpu.core_type<tc>, window_params = [{transform_indices = @transform_0, window_bounds = array<i64: 4, 288, 128>}, {pipeline_mode = #tpu.pipeline_mode<synchronous>, transform_indices = @transform_1, window_bounds = array<i64: 128, 128>}, {pipeline_mode = #tpu.pipeline_mode<synchronous>, transform_indices = @transform_2, window_bounds = array<i64: 1, 128>}, {transform_indices = @transform_3, window_bounds = array<i64: 288, 128>}]} {
    %c0 = arith.constant 0 : index
    %c0_0 = arith.constant 0 : index
    %0 = vector.load %arg2[%c0, %c0_0] : memref<128x128xbf16, #tpu.memory_space<vmem>>, vector<128x128xbf16>
    %c0_1 = arith.constant 0 : index
    %c0_2 = arith.constant 0 : index
    %c0_3 = arith.constant 0 : index
    %1 = vector.load %arg1[%c0_1, %c0_2, %c0_3] : memref<4x288x128xbf16, #tpu.memory_space<vmem>>, vector<1x288x128xbf16>
    %2 = vector.shape_cast %1 : vector<1x288x128xbf16> to vector<288x128xbf16>
    %cst = arith.constant dense<0.000000e+00> : vector<288x128xf32>
    %3 = tpu.matmul %2, %0, %cst {dimension_numbers = #tpu.dot_dimension_numbers<[1], [0], [0], [1], [0, 0, 1, 1], [], []>} : vector<288x128xbf16>, vector<128x128xbf16>, vector<288x128xf32> -> vector<288x128xf32>
    %c1 = arith.constant 1 : index
    %c0_4 = arith.constant 0 : index
    %c0_5 = arith.constant 0 : index
    %4 = vector.load %arg1[%c1, %c0_4, %c0_5] : memref<4x288x128xbf16, #tpu.memory_space<vmem>>, vector<1x288x128xbf16>
    %5 = vector.shape_cast %4 : vector<1x288x128xbf16> to vector<288x128xbf16>
    %cst_6 = arith.constant dense<0.000000e+00> : vector<288x128xf32>
    %6 = tpu.matmul %5, %0, %cst_6 {dimension_numbers = #tpu.dot_dimension_numbers<[1], [0], [0], [1], [0, 0, 1, 1], [], []>} : vector<288x128xbf16>, vector<128x128xbf16>, vector<288x128xf32> -> vector<288x128xf32>
    %c2 = arith.constant 2 : index
    %c0_7 = arith.constant 0 : index
    %c0_8 = arith.constant 0 : index
    %7 = vector.load %arg1[%c2, %c0_7, %c0_8] : memref<4x288x128xbf16, #tpu.memory_space<vmem>>, vector<1x288x128xbf16>
    %8 = vector.shape_cast %7 : vector<1x288x128xbf16> to vector<288x128xbf16>
    %cst_9 = arith.constant dense<0.000000e+00> : vector<288x128xf32>
    %9 = tpu.matmul %8, %0, %cst_9 {dimension_numbers = #tpu.dot_dimension_numbers<[1], [0], [0], [1], [0, 0, 1, 1], [], []>} : vector<288x128xbf16>, vector<128x128xbf16>, vector<288x128xf32> -> vector<288x128xf32>
    %c3 = arith.constant 3 : index
    %c0_10 = arith.constant 0 : index
    %c0_11 = arith.constant 0 : index
    %10 = vector.load %arg1[%c3, %c0_10, %c0_11] : memref<4x288x128xbf16, #tpu.memory_space<vmem>>, vector<1x288x128xbf16>
    %11 = vector.shape_cast %10 : vector<1x288x128xbf16> to vector<288x128xbf16>
    %cst_12 = arith.constant dense<0.000000e+00> : vector<288x128xf32>
    %12 = tpu.matmul %11, %0, %cst_12 {dimension_numbers = #tpu.dot_dimension_numbers<[1], [0], [0], [1], [0, 0, 1, 1], [], []>} : vector<288x128xbf16>, vector<128x128xbf16>, vector<288x128xf32> -> vector<288x128xf32>
    %13 = arith.maximumf %3, %6 : vector<288x128xf32>
    %14 = arith.maximumf %9, %12 : vector<288x128xf32>
    %15 = arith.maximumf %13, %14 : vector<288x128xf32>
    %c0_13 = arith.constant 0 : index
    %c0_14 = arith.constant 0 : index
    %16 = vector.load %arg3[%c0_13, %c0_14] : memref<1x128xf32, #tpu.memory_space<vmem>>, vector<1x128xf32>
    %17 = vector.broadcast %16 : vector<1x128xf32> to vector<288x128xf32>
    %18 = arith.addf %15, %17 : vector<288x128xf32>
    %cst_15 = arith.constant 0.000000e+00 : f32
    %19 = vector.broadcast %cst_15 : f32 to vector<288x128xf32>
    %20 = arith.maximumf %18, %19 : vector<288x128xf32>
    %c0_16 = arith.constant 0 : index
    %c0_17 = arith.constant 0 : index
    %21 = vector.load %arg4[%c0_16, %c0_17] : memref<288x128xf32, #tpu.memory_space<vmem>>, vector<288x128xf32>
    tpu.vector_store %arg4[%c0_16, %c0_17], %20 {strides = array<i32>} : memref<288x128xf32, #tpu.memory_space<vmem>>, vector<288x128xf32>,
    return
  }
  func.func @transform_0(%arg0: i32) -> (i32, i32, i32) {
    %c0_i32 = arith.constant 0 : i32
    %c0_i32_0 = arith.constant 0 : i32
    %c0_i32_1 = arith.constant 0 : i32
    return %c0_i32, %arg0, %c0_i32_0 : i32, i32, i32
  }
  func.func @transform_1(%arg0: i32) -> (i32, i32) {
    %c0_i32 = arith.constant 0 : i32
    %c0_i32_0 = arith.constant 0 : i32
    %c0_i32_1 = arith.constant 0 : i32
    return %c0_i32, %c0_i32_0 : i32, i32
  }
  func.func @transform_2(%arg0: i32) -> (i32, i32) {
    %c0_i32 = arith.constant 0 : i32
    %c0_i32_0 = arith.constant 0 : i32
    %c0_i32_1 = arith.constant 0 : i32
    return %c0_i32, %c0_i32_0 : i32, i32
  }
  func.func @transform_3(%arg0: i32) -> (i32, i32) {
    %c0_i32 = arith.constant 0 : i32
    %c0_i32_0 = arith.constant 0 : i32
    return %arg0, %c0_i32 : i32, i32
  }
}

module attributes {stable_mosaic.version = 11 : i64} {
  func.func @conv_pool_relu_kernel(%arg0: i32, %arg1: memref<4x32x256xbf16, #tpu.memory_space<vmem>>, %arg2: memref<256x128xbf16, #tpu.memory_space<vmem>>, %arg3: memref<1x128xf32, #tpu.memory_space<vmem>>, %arg4: memref<32x128xf32, #tpu.memory_space<vmem>>) attributes {dimension_semantics = [#tpu.dimension_semantics<parallel>], iteration_bounds = array<i64: 1>, scalar_prefetch = 0 : i64, scratch_operands = 0 : i64, tpu.core_type = #tpu.core_type<tc>, window_params = [{transform_indices = @transform_0, window_bounds = array<i64: 4, 32, 256>}, {pipeline_mode = #tpu.pipeline_mode<synchronous>, transform_indices = @transform_1, window_bounds = array<i64: 256, 128>}, {pipeline_mode = #tpu.pipeline_mode<synchronous>, transform_indices = @transform_2, window_bounds = array<i64: 1, 128>}, {transform_indices = @transform_3, window_bounds = array<i64: 32, 128>}]} {
    %c0 = arith.constant 0 : index
    %c0_0 = arith.constant 0 : index
    %0 = vector.load %arg2[%c0, %c0_0] : memref<256x128xbf16, #tpu.memory_space<vmem>>, vector<256x128xbf16>
    %c0_1 = arith.constant 0 : index
    %c0_2 = arith.constant 0 : index
    %c0_3 = arith.constant 0 : index
    %1 = vector.load %arg1[%c0_1, %c0_2, %c0_3] : memref<4x32x256xbf16, #tpu.memory_space<vmem>>, vector<1x32x256xbf16>
    %2 = vector.shape_cast %1 : vector<1x32x256xbf16> to vector<32x256xbf16>
    %cst = arith.constant dense<0.000000e+00> : vector<32x128xf32>
    %3 = tpu.matmul %2, %0, %cst {dimension_numbers = #tpu.dot_dimension_numbers<[1], [0], [0], [1], [0, 0, 1, 1], [], []>} : vector<32x256xbf16>, vector<256x128xbf16>, vector<32x128xf32> -> vector<32x128xf32>
    %c1 = arith.constant 1 : index
    %c0_4 = arith.constant 0 : index
    %c0_5 = arith.constant 0 : index
    %4 = vector.load %arg1[%c1, %c0_4, %c0_5] : memref<4x32x256xbf16, #tpu.memory_space<vmem>>, vector<1x32x256xbf16>
    %5 = vector.shape_cast %4 : vector<1x32x256xbf16> to vector<32x256xbf16>
    %cst_6 = arith.constant dense<0.000000e+00> : vector<32x128xf32>
    %6 = tpu.matmul %5, %0, %cst_6 {dimension_numbers = #tpu.dot_dimension_numbers<[1], [0], [0], [1], [0, 0, 1, 1], [], []>} : vector<32x256xbf16>, vector<256x128xbf16>, vector<32x128xf32> -> vector<32x128xf32>
    %c2 = arith.constant 2 : index
    %c0_7 = arith.constant 0 : index
    %c0_8 = arith.constant 0 : index
    %7 = vector.load %arg1[%c2, %c0_7, %c0_8] : memref<4x32x256xbf16, #tpu.memory_space<vmem>>, vector<1x32x256xbf16>
    %8 = vector.shape_cast %7 : vector<1x32x256xbf16> to vector<32x256xbf16>
    %cst_9 = arith.constant dense<0.000000e+00> : vector<32x128xf32>
    %9 = tpu.matmul %8, %0, %cst_9 {dimension_numbers = #tpu.dot_dimension_numbers<[1], [0], [0], [1], [0, 0, 1, 1], [], []>} : vector<32x256xbf16>, vector<256x128xbf16>, vector<32x128xf32> -> vector<32x128xf32>
    %c3 = arith.constant 3 : index
    %c0_10 = arith.constant 0 : index
    %c0_11 = arith.constant 0 : index
    %10 = vector.load %arg1[%c3, %c0_10, %c0_11] : memref<4x32x256xbf16, #tpu.memory_space<vmem>>, vector<1x32x256xbf16>
    %11 = vector.shape_cast %10 : vector<1x32x256xbf16> to vector<32x256xbf16>
    %cst_12 = arith.constant dense<0.000000e+00> : vector<32x128xf32>
    %12 = tpu.matmul %11, %0, %cst_12 {dimension_numbers = #tpu.dot_dimension_numbers<[1], [0], [0], [1], [0, 0, 1, 1], [], []>} : vector<32x256xbf16>, vector<256x128xbf16>, vector<32x128xf32> -> vector<32x128xf32>
    %13 = arith.maximumf %3, %6 : vector<32x128xf32>
    %14 = arith.maximumf %9, %12 : vector<32x128xf32>
    %15 = arith.maximumf %13, %14 : vector<32x128xf32>
    %c0_13 = arith.constant 0 : index
    %c0_14 = arith.constant 0 : index
    %16 = vector.load %arg3[%c0_13, %c0_14] : memref<1x128xf32, #tpu.memory_space<vmem>>, vector<1x128xf32>
    %17 = vector.broadcast %16 : vector<1x128xf32> to vector<32x128xf32>
    %18 = arith.addf %15, %17 : vector<32x128xf32>
    %cst_15 = arith.constant 0.000000e+00 : f32
    %19 = vector.broadcast %cst_15 : f32 to vector<32x128xf32>
    %20 = arith.maximumf %18, %19 : vector<32x128xf32>
    %c0_16 = arith.constant 0 : index
    %c0_17 = arith.constant 0 : index
    %21 = vector.load %arg4[%c0_16, %c0_17] : memref<32x128xf32, #tpu.memory_space<vmem>>, vector<32x128xf32>
    tpu.vector_store %arg4[%c0_16, %c0_17], %20 {strides = array<i32>} : memref<32x128xf32, #tpu.memory_space<vmem>>, vector<32x128xf32>,
    return
  }
  func.func @transform_0(%arg0: i32) -> (i32, i32, i32) {
    %c0_i32 = arith.constant 0 : i32
    %c0_i32_0 = arith.constant 0 : i32
    %c0_i32_1 = arith.constant 0 : i32
    return %c0_i32, %arg0, %c0_i32_0 : i32, i32, i32
  }
  func.func @transform_1(%arg0: i32) -> (i32, i32) {
    %c0_i32 = arith.constant 0 : i32
    %c0_i32_0 = arith.constant 0 : i32
    %c0_i32_1 = arith.constant 0 : i32
    return %c0_i32, %c0_i32_0 : i32, i32
  }
  func.func @transform_2(%arg0: i32) -> (i32, i32) {
    %c0_i32 = arith.constant 0 : i32
    %c0_i32_0 = arith.constant 0 : i32
    %c0_i32_1 = arith.constant 0 : i32
    return %c0_i32, %c0_i32_0 : i32, i32
  }
  func.func @transform_3(%arg0: i32) -> (i32, i32) {
    %c0_i32 = arith.constant 0 : i32
    %c0_i32_0 = arith.constant 0 : i32
    return %arg0, %c0_i32 : i32, i32
  }
}

module attributes {stable_mosaic.version = 11 : i64} {
  func.func @matmul_bias_kernel(%arg0: i32, %arg1: memref<8x2048xbf16, #tpu.memory_space<vmem>>, %arg2: memref<2048x128xbf16, #tpu.memory_space<vmem>>, %arg3: memref<1x128xf32, #tpu.memory_space<vmem>>, %arg4: memref<8x128xf32, #tpu.memory_space<vmem>>) attributes {dimension_semantics = [#tpu.dimension_semantics<parallel>], iteration_bounds = array<i64: 1>, scalar_prefetch = 0 : i64, scratch_operands = 0 : i64, tpu.core_type = #tpu.core_type<tc>, window_params = [{transform_indices = @transform_0, window_bounds = array<i64: 8, 2048>}, {pipeline_mode = #tpu.pipeline_mode<synchronous>, transform_indices = @transform_1, window_bounds = array<i64: 2048, 128>}, {pipeline_mode = #tpu.pipeline_mode<synchronous>, transform_indices = @transform_2, window_bounds = array<i64: 1, 128>}, {transform_indices = @transform_3, window_bounds = array<i64: 8, 128>}]} {
    %c0 = arith.constant 0 : index
    %c0_0 = arith.constant 0 : index
    %0 = vector.load %arg1[%c0, %c0_0] : memref<8x2048xbf16, #tpu.memory_space<vmem>>, vector<8x2048xbf16>
    %c0_1 = arith.constant 0 : index
    %c0_2 = arith.constant 0 : index
    %1 = vector.load %arg2[%c0_1, %c0_2] : memref<2048x128xbf16, #tpu.memory_space<vmem>>, vector<2048x128xbf16>
    %cst = arith.constant dense<0.000000e+00> : vector<8x128xf32>
    %2 = tpu.matmul %0, %1, %cst {dimension_numbers = #tpu.dot_dimension_numbers<[1], [0], [0], [1], [0, 0, 1, 1], [], []>} : vector<8x2048xbf16>, vector<2048x128xbf16>, vector<8x128xf32> -> vector<8x128xf32>
    %c0_3 = arith.constant 0 : index
    %c0_4 = arith.constant 0 : index
    %3 = vector.load %arg3[%c0_3, %c0_4] : memref<1x128xf32, #tpu.memory_space<vmem>>, vector<1x128xf32>
    %4 = vector.broadcast %3 : vector<1x128xf32> to vector<8x128xf32>
    %5 = arith.addf %2, %4 : vector<8x128xf32>
    %c0_5 = arith.constant 0 : index
    %c0_6 = arith.constant 0 : index
    %6 = vector.load %arg4[%c0_5, %c0_6] : memref<8x128xf32, #tpu.memory_space<vmem>>, vector<8x128xf32>
    tpu.vector_store %arg4[%c0_5, %c0_6], %5 {strides = array<i32>} : memref<8x128xf32, #tpu.memory_space<vmem>>, vector<8x128xf32>,
    return
  }
  func.func @transform_0(%arg0: i32) -> (i32, i32) {
    %c0_i32 = arith.constant 0 : i32
    %c0_i32_0 = arith.constant 0 : i32
    return %arg0, %c0_i32 : i32, i32
  }
  func.func @transform_1(%arg0: i32) -> (i32, i32) {
    %c0_i32 = arith.constant 0 : i32
    %c0_i32_0 = arith.constant 0 : i32
    %c0_i32_1 = arith.constant 0 : i32
    return %c0_i32, %c0_i32_0 : i32, i32
  }
  func.func @transform_2(%arg0: i32) -> (i32, i32) {
    %c0_i32 = arith.constant 0 : i32
    %c0_i32_0 = arith.constant 0 : i32
    %c0_i32_1 = arith.constant 0 : i32
    return %c0_i32, %c0_i32_0 : i32, i32
  }
  func.func @transform_3(%arg0: i32) -> (i32, i32) {
    %c0_i32 = arith.constant 0 : i32
    %c0_i32_0 = arith.constant 0 : i32
    return %arg0, %c0_i32 : i32, i32
  }
}

</mosaic_0001>

<llo_original>
// kernel: net_forward.3
$region0: #{net_forward.3}
  #allocation0 [shape = 'u32[]', space=smem, size = 0x4, offset = 0x4, fixed_abs, tag = 'smem constant byte address 0x4 - core index']
  #allocation1 [shape = 'u32[144,128]{1,0:T(1,128)}', space=vmem, size = 0x12000, scoped, tag = 'internal scratch']
  %s0 = inlined_call_operand.vmem [shape: bf16[4,288,128], index: 0, kind: input, shape index: {}]
  %s1 = inlined_call_operand.vmem [shape: bf16[128,128], index: 1, kind: input, shape index: {}]
  %s2 = inlined_call_operand.vmem [shape: f32[1,128], index: 2, kind: input, shape index: {}]
  %s3 = inlined_call_operand.vmem [shape: f32[288,128], index: 3, kind: output, shape index: {}]
  %s4 = sld [smem:[#allocation0]]
  $region22: #{net_forward.3} parent=0
    _
  %s6 = ssub.s32 1, %s4
  %s7 = scalar_select 0, %s6, %s4
  // Predicated region
  $region2: #{net_forward.3} parent=0 // pred_check
    _
  $region3: #{net_forward.3} parent=0 // pred_check_branch
    %9 = sbr.rel (0) target = $region5
  $region4: #{net_forward.3} parent=0 // pred_region
    _
  $region5: #{net_forward.3} parent=0 // pred_fallthru
    _
  // Predicated region
  $region6: #{net_forward.3} parent=0 // pred_check
    _
  $region7: #{net_forward.3} parent=0 // pred_check_branch
    %11 = sbr.rel (0) target = $region9
  $region8: #{net_forward.3} parent=0 // pred_region
    _
  $region9: #{net_forward.3} parent=0 // pred_fallthru
    _
  // Predicated region
  $region10: #{net_forward.3} parent=0 // pred_check
    _
  $region11: #{net_forward.3} parent=0 // pred_check_branch
    %13 = sbr.rel (0) target = $region13
  $region12: #{net_forward.3} parent=0 // pred_region
    _
  $region13: #{net_forward.3} parent=0 // pred_fallthru
    _
  %v15 = vld [vmem:[%s1] sm:$0xf]
  %v16 = vld [vmem:[%s1 + $0x4] sm:$0xf]
  %v17 = vld [vmem:[%s1 + $0x8] sm:$0xf]
  %v18 = vld [vmem:[%s1 + $0xc] sm:$0xf]
  %v19 = vld [vmem:[%s1 + $0x10] sm:$0xf]
  %v20 = vld [vmem:[%s1 + $0x14] sm:$0xf]
  %v21 = vld [vmem:[%s1 + $0x18] sm:$0xf]
  %v22 = vld [vmem:[%s1 + $0x1c] sm:$0xf]
  %v23 = vld [vmem:[%s1 + $0x20] sm:$0xf]
  %v24 = vld [vmem:[%s1 + $0x24] sm:$0xf]
  %v25 = vld [vmem:[%s1 + $0x28] sm:$0xf]
  %v26 = vld [vmem:[%s1 + $0x2c] sm:$0xf]
  %v27 = vld [vmem:[%s1 + $0x30] sm:$0xf]
  %v28 = vld [vmem:[%s1 + $0x34] sm:$0xf]
  %v29 = vld [vmem:[%s1 + $0x38] sm:$0xf]
  %v30 = vld [vmem:[%s1 + $0x3c] sm:$0xf]
  %v31 = vld [vmem:[%s0] sm:$0xf]
  %v32 = vld [vmem:[%s0 + $0x4] sm:$0xf]
  %v33 = vld [vmem:[%s0 + $0x8] sm:$0xf]
  %v34 = vld [vmem:[%s0 + $0xc] sm:$0xf]
  %v35 = vld [vmem:[%s0 + $0x10] sm:$0xf]
  %v36 = vld [vmem:[%s0 + $0x14] sm:$0xf]
  %v37 = vld [vmem:[%s0 + $0x18] sm:$0xf]
  %v38 = vld [vmem:[%s0 + $0x1c] sm:$0xf]
  %v39 = vld [vmem:[%s0 + $0x20] sm:$0xf]
  %v40 = vld [vmem:[%s0 + $0x24] sm:$0xf]
  %v41 = vld [vmem:[%s0 + $0x28] sm:$0xf]
  %v42 = vld [vmem:[%s0 + $0x2c] sm:$0xf]
  %v43 = vld [vmem:[%s0 + $0x30] sm:$0xf]
  %v44 = vld [vmem:[%s0 + $0x34] sm:$0xf]
  %v45 = vld [vmem:[%s0 + $0x38] sm:$0xf]
  %v46 = vld [vmem:[%s0 + $0x3c] sm:$0xf]
  %v47 = vld [vmem:[%s0 + $0x40] sm:$0xf]
  %v48 = vld [vmem:[%s0 + $0x44] sm:$0xf]
  %v49 = vld [vmem:[%s0 + $0x48] sm:$0xf]
  %v50 = vld [vmem:[%s0 + $0x4c] sm:$0xf]
  %v51 = vld [vmem:[%s0 + $0x50] sm:$0xf]
  %v52 = vld [vmem:[%s0 + $0x54] sm:$0xf]
  %v53 = vld [vmem:[%s0 + $0x58] sm:$0xf]
  %v54 = vld [vmem:[%s0 + $0x5c] sm:$0xf]
  %v55 = vld [vmem:[%s0 + $0x60] sm:$0xf]
  %v56 = vld [vmem:[%s0 + $0x64] sm:$0xf]
  %v57 = vld [vmem:[%s0 + $0x68] sm:$0xf]
  %v58 = vld [vmem:[%s0 + $0x6c] sm:$0xf]
  %v59 = vld [vmem:[%s0 + $0x70] sm:$0xf]
  %v60 = vld [vmem:[%s0 + $0x74] sm:$0xf]
  %v61 = vld [vmem:[%s0 + $0x78] sm:$0xf]
  %v62 = vld [vmem:[%s0 + $0x7c] sm:$0xf]
  %v63 = vld [vmem:[%s0 + $0x80] sm:$0xf]
  %v64 = vld [vmem:[%s0 + $0x84] sm:$0xf]
  %v65 = vld [vmem:[%s0 + $0x88] sm:$0xf]
  %v66 = vld [vmem:[%s0 + $0x8c] sm:$0xf]
  %v103 = vunpack.c.l.b16 %v31
  %v104 = vunpack.c.l.b16 %v32
  %v105 = vunpack.c.l.b16 %v33
  %v106 = vunpack.c.l.b16 %v34
  %v107 = vunpack.c.l.b16 %v35
  %v108 = vunpack.c.l.b16 %v36
  %v109 = vunpack.c.l.b16 %v37
  %v110 = vunpack.c.l.b16 %v38
  %v111 = vunpack.c.l.b16 %v39
  %v112 = vunpack.c.l.b16 %v40
  %v113 = vunpack.c.l.b16 %v41
  %v114 = vunpack.c.l.b16 %v42
  %v115 = vunpack.c.l.b16 %v43
  %v116 = vunpack.c.l.b16 %v44
  %v117 = vunpack.c.l.b16 %v45
  %v118 = vunpack.c.l.b16 %v46
  %v119 = vunpack.c.l.b16 %v47
  %v120 = vunpack.c.l.b16 %v48
  %v121 = vunpack.c.l.b16 %v49
  %v122 = vunpack.c.l.b16 %v50
  %v123 = vunpack.c.l.b16 %v51
  %v124 = vunpack.c.l.b16 %v52
  %v125 = vunpack.c.l.b16 %v53
  %v126 = vunpack.c.l.b16 %v54
  %v127 = vunpack.c.l.b16 %v55
  %v128 = vunpack.c.l.b16 %v56
  %v129 = vunpack.c.l.b16 %v57
  %v130 = vunpack.c.l.b16 %v58
  %v131 = vunpack.c.l.b16 %v59
  %v132 = vunpack.c.l.b16 %v60
  %v133 = vunpack.c.l.b16 %v61
  %v134 = vunpack.c.l.b16 %v62
  %v135 = vunpack.c.l.b16 %v63
  %v136 = vunpack.c.l.b16 %v64
  %v137 = vunpack.c.l.b16 %v65
  %v138 = vunpack.c.l.b16 %v66
  %v139 = vpack.c.b16 %v104, %v103
  %v140 = vpack.c.b16 %v106, %v105
  %v141 = vpack.c.b16 %v108, %v107
  %v142 = vpack.c.b16 %v110, %v109
  %v143 = vpack.c.b16 %v112, %v111
  %v144 = vpack.c.b16 %v114, %v113
  %v145 = vpack.c.b16 %v116, %v115
  %v146 = vpack.c.b16 %v118, %v117
  %v147 = vpack.c.b16 %v120, %v119
  %v148 = vpack.c.b16 %v122, %v121
  %v149 = vpack.c.b16 %v124, %v123
  %v150 = vpack.c.b16 %v126, %v125
  %v151 = vpack.c.b16 %v128, %v127
  %v152 = vpack.c.b16 %v130, %v129
  %v153 = vpack.c.b16 %v132, %v131
  %v154 = vpack.c.b16 %v134, %v133
  %v155 = vpack.c.b16 %v136, %v135
  %v156 = vpack.c.b16 %v138, %v137
  %v191 = vunpack.c.l.b16 %v15
  %v192 = vunpack.c.l.b16 %v16
  %v193 = vunpack.c.l.b16 %v17
  %v194 = vunpack.c.l.b16 %v18
  %v195 = vunpack.c.l.b16 %v19
  %v196 = vunpack.c.l.b16 %v20
  %v197 = vunpack.c.l.b16 %v21
  %v198 = vunpack.c.l.b16 %v22
  %v199 = vunpack.c.l.b16 %v23
  %v200 = vunpack.c.l.b16 %v24
  %v201 = vunpack.c.l.b16 %v25
  %v202 = vunpack.c.l.b16 %v26
  %v203 = vunpack.c.l.b16 %v27
  %v204 = vunpack.c.l.b16 %v28
  %v205 = vunpack.c.l.b16 %v29
  %v206 = vunpack.c.l.b16 %v30
  %v207 = vpack.c.b16 %v192, %v191
  %v208 = vpack.c.b16 %v194, %v193
  %v209 = vpack.c.b16 %v196, %v195
  %v210 = vpack.c.b16 %v198, %v197
  %v211 = vpack.c.b16 %v200, %v199
  %v212 = vpack.c.b16 %v202, %v201
  %v213 = vpack.c.b16 %v204, %v203
  %v214 = vpack.c.b16 %v206, %v205
  %223 = vmatprep.subr.bf16.mxu0 0
  %224 = vmatpush1.bf16.msra.mxu0 %v207
  %225 = vmatprep.subr.bf16.mxu0 0
  %226 = vmatpush1.bf16.msra.mxu0 %v208
  %227 = vmatprep.subr.bf16.mxu0 0
  %228 = vmatpush1.bf16.msra.mxu0 %v209
  %229 = vmatprep.subr.bf16.mxu0 0
  %230 = vmatpush1.bf16.msra.mxu0 %v210
  %231 = vmatprep.subr.bf16.mxu0 0
  %232 = vmatpush1.bf16.msra.mxu0 %v211
  %233 = vmatprep.subr.bf16.mxu0 0
  %234 = vmatpush1.bf16.msra.mxu0 %v212
  %235 = vmatprep.subr.bf16.mxu0 0
  %236 = vmatpush1.bf16.msra.mxu0 %v213
  %237 = vmatprep.subr.bf16.mxu0 0
  %238 = vmatpush1.bf16.msra.mxu0 %v214
  %239 = vmatprep.subr.bf16.mxu0 0
  %240 = vmatpush1.bf16.msra.mxu0 0
  %241 = vmatprep.subr.bf16.mxu0 0
  %242 = vmatpush1.bf16.msra.mxu0 0
  %243 = vmatprep.subr.bf16.mxu0 0
  %244 = vmatpush1.bf16.msra.mxu0 0
  %245 = vmatprep.subr.bf16.mxu0 0
  %246 = vmatpush1.bf16.msra.mxu0 0
  %247 = vmatprep.subr.bf16.mxu0 0
  %248 = vmatpush1.bf16.msra.mxu0 0
  %249 = vmatprep.subr.bf16.mxu0 0
  %250 = vmatpush1.bf16.msra.mxu0 0
  %251 = vmatprep.subr.bf16.mxu0 0
  %252 = vmatpush1.bf16.msra.mxu0 0
  %253 = vmatprep.subr.bf16.mxu0 0
  %254 = vmatpush1.bf16.msra.mxu0 0
  %255 = vmatprep.mubr.bf16.mxu0 0
  %256 = vmatmul.mubr.bf16.gmra.mrb[0].mxu0 %v139
  %v257 = vpop.f32.mrb[0].mxu0
  %v258 = vadd.f32 0.0, %v257
  %v259 = vpop.f32.mrb[0].mxu0
  %v260 = vpop.f32.mrb[0].mxu0
  %v261 = vadd.f32 0.0, %v260
  %v262 = vpop.f32.mrb[0].mxu0
  %263 = vmatprep.mubr.bf16.mxu0 0
  %264 = vmatmul.mubr.bf16.gmra.mrb[0].mxu0 %v140
  %v265 = vpop.f32.mrb[0].mxu0
  %v266 = vadd.f32 0.0, %v265
  %v267 = vpop.f32.mrb[0].mxu0
  %v268 = vpop.f32.mrb[0].mxu0
  %v269 = vadd.f32 0.0, %v268
  %v270 = vpop.f32.mrb[0].mxu0
  %271 = vmatprep.mubr.bf16.mxu0 0
  %272 = vmatmul.mubr.bf16.gmra.mrb[0].mxu0 %v141
  %v273 = vpop.f32.mrb[0].mxu0
  %v274 = vadd.f32 0.0, %v273
  %v275 = vpop.f32.mrb[0].mxu0
  %v276 = vpop.f32.mrb[0].mxu0
  %v277 = vadd.f32 0.0, %v276
  %v278 = vpop.f32.mrb[0].mxu0
  %279 = vmatprep.mubr.bf16.mxu0 0
  %280 = vmatmul.mubr.bf16.gmra.mrb[0].mxu0 %v142
  %v281 = vpop.f32.mrb[0].mxu0
  %v282 = vadd.f32 0.0, %v281
  %v283 = vpop.f32.mrb[0].mxu0
  %v284 = vpop.f32.mrb[0].mxu0
  %v285 = vadd.f32 0.0, %v284
  %v286 = vpop.f32.mrb[0].mxu0
  %287 = vmatprep.mubr.bf16.mxu0 0
  %288 = vmatmul.mubr.bf16.gmra.mrb[0].mxu0 %v143
  %v289 = vpop.f32.mrb[0].mxu0
  %v290 = vadd.f32 0.0, %v289
  %v291 = vpop.f32.mrb[0].mxu0
  %v292 = vpop.f32.mrb[0].mxu0
  %v293 = vadd.f32 0.0, %v292
  %v294 = vpop.f32.mrb[0].mxu0
  %295 = vmatprep.mubr.bf16.mxu0 0
  %296 = vmatmul.mubr.bf16.gmra.mrb[0].mxu0 %v144
  %v297 = vpop.f32.mrb[0].mxu0
  %v298 = vadd.f32 0.0, %v297
  %v299 = vpop.f32.mrb[0].mxu0
  %v300 = vpop.f32.mrb[0].mxu0
  %v301 = vadd.f32 0.0, %v300
  %v302 = vpop.f32.mrb[0].mxu0
  %303 = vmatprep.mubr.bf16.mxu0 0
  %304 = vmatmul.mubr.bf16.gmra.mrb[0].mxu0 %v145
  %v305 = vpop.f32.mrb[0].mxu0
  %v306 = vadd.f32 0.0, %v305
  %v307 = vpop.f32.mrb[0].mxu0
  %v308 = vpop.f32.mrb[0].mxu0
  %v309 = vadd.f32 0.0, %v308
  %v310 = vpop.f32.mrb[0].mxu0
  %311 = vmatprep.mubr.bf16.mxu0 0
  %312 = vmatmul.mubr.bf16.gmra.mrb[0].mxu0 %v146
  %v313 = vpop.f32.mrb[0].mxu0
  %v314 = vadd.f32 0.0, %v313
  %v315 = vpop.f32.mrb[0].mxu0
  %v316 = vpop.f32.mrb[0].mxu0
  %v317 = vadd.f32 0.0, %v316
  %v318 = vpop.f32.mrb[0].mxu0
  %319 = vmatprep.mubr.bf16.mxu0 0
  %320 = vmatmul.mubr.bf16.gmra.mrb[0].mxu0 %v147
  %v321 = vpop.f32.mrb[0].mxu0
  %v322 = vadd.f32 0.0, %v321
  %v323 = vpop.f32.mrb[0].mxu0
  %v324 = vpop.f32.mrb[0].mxu0
  %v325 = vadd.f32 0.0, %v324
  %v326 = vpop.f32.mrb[0].mxu0
  %327 = vmatprep.mubr.bf16.mxu0 0
  %328 = vmatmul.mubr.bf16.gmra.mrb[0].mxu0 %v148
  %v329 = vpop.f32.mrb[0].mxu0
  %v330 = vadd.f32 0.0, %v329
  %v331 = vpop.f32.mrb[0].mxu0
  %v332 = vpop.f32.mrb[0].mxu0
  %v333 = vadd.f32 0.0, %v332
  %v334 = vpop.f32.mrb[0].mxu0
  %335 = vmatprep.mubr.bf16.mxu0 0
  %336 = vmatmul.mubr.bf16.gmra.mrb[0].mxu0 %v149
  %v337 = vpop.f32.mrb[0].mxu0
  %v338 = vadd.f32 0.0, %v337
  %v339 = vpop.f32.mrb[0].mxu0
  %v340 = vpop.f32.mrb[0].mxu0
  %v341 = vadd.f32 0.0, %v340
  %v342 = vpop.f32.mrb[0].mxu0
  %343 = vmatprep.mubr.bf16.mxu0 0
  %344 = vmatmul.mubr.bf16.gmra.mrb[0].mxu0 %v150
  %v345 = vpop.f32.mrb[0].mxu0
  %v346 = vadd.f32 0.0, %v345
  %v347 = vpop.f32.mrb[0].mxu0
  %v348 = vpop.f32.mrb[0].mxu0
  %v349 = vadd.f32 0.0, %v348
  %v350 = vpop.f32.mrb[0].mxu0
  %351 = vmatprep.mubr.bf16.mxu0 0
  %352 = vmatmul.mubr.bf16.gmra.mrb[0].mxu0 %v151
  %v353 = vpop.f32.mrb[0].mxu0
  %v354 = vadd.f32 0.0, %v353
  %v355 = vpop.f32.mrb[0].mxu0
  %v356 = vpop.f32.mrb[0].mxu0
  %v357 = vadd.f32 0.0, %v356
  %v358 = vpop.f32.mrb[0].mxu0
  %359 = vmatprep.mubr.bf16.mxu0 0
  %360 = vmatmul.mubr.bf16.gmra.mrb[0].mxu0 %v152
  %v361 = vpop.f32.mrb[0].mxu0
  %v362 = vadd.f32 0.0, %v361
  %v363 = vpop.f32.mrb[0].mxu0
  %v364 = vpop.f32.mrb[0].mxu0
  %v365 = vadd.f32 0.0, %v364
  %v366 = vpop.f32.mrb[0].mxu0
  %367 = vmatprep.mubr.bf16.mxu0 0
  %368 = vmatmul.mubr.bf16.gmra.mrb[0].mxu0 %v153
  %v369 = vpop.f32.mrb[0].mxu0
  %v370 = vadd.f32 0.0, %v369
  %v371 = vpop.f32.mrb[0].mxu0
  %v372 = vpop.f32.mrb[0].mxu0
  %v373 = vadd.f32 0.0, %v372
  %v374 = vpop.f32.mrb[0].mxu0
  %375 = vmatprep.mubr.bf16.mxu0 0
  %376 = vmatmul.mubr.bf16.gmra.mrb[0].mxu0 %v154
  %v377 = vpop.f32.mrb[0].mxu0
  %v378 = vadd.f32 0.0, %v377
  %v379 = vpop.f32.mrb[0].mxu0
  %v380 = vpop.f32.mrb[0].mxu0
  %v381 = vadd.f32 0.0, %v380
  %v382 = vpop.f32.mrb[0].mxu0
  %383 = vmatprep.mubr.bf16.mxu0 0
  %384 = vmatmul.mubr.bf16.gmra.mrb[0].mxu0 %v155
  %v385 = vpop.f32.mrb[0].mxu0
  %v386 = vadd.f32 0.0, %v385
  %v387 = vpop.f32.mrb[0].mxu0
  %v388 = vpop.f32.mrb[0].mxu0
  %v389 = vadd.f32 0.0, %v388
  %v390 = vpop.f32.mrb[0].mxu0
  %391 = vmatprep.mubr.bf16.mxu0 0
  %392 = vmatmul.mubr.bf16.gmra.mrb[0].mxu0 %v156
  %v393 = vpop.f32.mrb[0].mxu0
  %v394 = vadd.f32 0.0, %v393
  %v395 = vpop.f32.mrb[0].mxu0
  %v396 = vpop.f32.mrb[0].mxu0
  %v397 = vadd.f32 0.0, %v396
  %v398 = vpop.f32.mrb[0].mxu0
  %399 = vdwg.mxu0
  %s400 = scalar_lea.vmem %s0, 144
  %v401 = vld [vmem:[%s400] sm:$0xf]
  %v402 = vld [vmem:[%s400 + $0x4] sm:$0xf]
  %v403 = vld [vmem:[%s400 + $0x8] sm:$0xf]
  %v404 = vld [vmem:[%s400 + $0xc] sm:$0xf]
  %v405 = vld [vmem:[%s400 + $0x10] sm:$0xf]
  %v406 = vld [vmem:[%s400 + $0x14] sm:$0xf]
  %v407 = vld [vmem:[%s400 + $0x18] sm:$0xf]
  %v408 = vld [vmem:[%s400 + $0x1c] sm:$0xf]
  %v409 = vld [vmem:[%s400 + $0x20] sm:$0xf]
  %v410 = vld [vmem:[%s400 + $0x24] sm:$0xf]
  %v411 = vld [vmem:[%s400 + $0x28] sm:$0xf]
  %v412 = vld [vmem:[%s400 + $0x2c] sm:$0xf]
  %v413 = vld [vmem:[%s400 + $0x30] sm:$0xf]
  %v414 = vld [vmem:[%s400 + $0x34] sm:$0xf]
  %v415 = vld [vmem:[%s400 + $0x38] sm:$0xf]
  %v416 = vld [vmem:[%s400 + $0x3c] sm:$0xf]
  %v417 = vld [vmem:[%s400 + $0x40] sm:$0xf]
  %v418 = vld [vmem:[%s400 + $0x44] sm:$0xf]
  %v419 = vld [vmem:[%s400 + $0x48] sm:$0xf]
  %v420 = vld [vmem:[%s400 + $0x4c] sm:$0xf]
  %v421 = vld [vmem:[%s400 + $0x50] sm:$0xf]
  %v422 = vld [vmem:[%s400 + $0x54] sm:$0xf]
  %v423 = vld [vmem:[%s400 + $0x58] sm:$0xf]
  %v424 = vld [vmem:[%s400 + $0x5c] sm:$0xf]
  %v425 = vld [vmem:[%s400 + $0x60] sm:$0xf]
  %v426 = vld [vmem:[%s400 + $0x64] sm:$0xf]
  %v427 = vld [vmem:[%s400 + $0x68] sm:$0xf]
  %v428 = vld [vmem:[%s400 + $0x6c] sm:$0xf]
  %v429 = vld [vmem:[%s400 + $0x70] sm:$0xf]
  %v430 = vld [vmem:[%s400 + $0x74] sm:$0xf]
  %v431 = vld [vmem:[%s400 + $0x78] sm:$0xf]
  %v432 = vld [vmem:[%s400 + $0x7c] sm:$0xf]
  %v433 = vld [vmem:[%s400 + $0x80] sm:$0xf]
  %v434 = vld [vmem:[%s400 + $0x84] sm:$0xf]
  %v435 = vld [vmem:[%s400 + $0x88] sm:$0xf]
  %v436 = vld [vmem:[%s400 + $0x8c] sm:$0xf]
  %v473 = vunpack.c.l.b16 %v401
  %v474 = vunpack.c.l.b16 %v402
  %v475 = vunpack.c.l.b16 %v403
  %v476 = vunpack.c.l.b16 %v404
  %v477 = vunpack.c.l.b16 %v405
  %v478 = vunpack.c.l.b16 %v406
  %v479 = vunpack.c.l.b16 %v407
  %v480 = vunpack.c.l.b16 %v408
  %v481 = vunpack.c.l.b16 %v409
  %v482 = vunpack.c.l.b16 %v410
  %v483 = vunpack.c.l.b16 %v411
  %v484 = vunpack.c.l.b16 %v412
  %v485 = vunpack.c.l.b16 %v413
  %v486 = vunpack.c.l.b16 %v414
  %v487 = vunpack.c.l.b16 %v415
  %v488 = vunpack.c.l.b16 %v416
  %v489 = vunpack.c.l.b16 %v417
  %v490 = vunpack.c.l.b16 %v418
  %v491 = vunpack.c.l.b16 %v419
  %v492 = vunpack.c.l.b16 %v420
  %v493 = vunpack.c.l.b16 %v421
  %v494 = vunpack.c.l.b16 %v422
  %v495 = vunpack.c.l.b16 %v423
  %v496 = vunpack.c.l.b16 %v424
  %v497 = vunpack.c.l.b16 %v425
  %v498 = vunpack.c.l.b16 %v426
  %v499 = vunpack.c.l.b16 %v427
  %v500 = vunpack.c.l.b16 %v428
  %v501 = vunpack.c.l.b16 %v429
  %v502 = vunpack.c.l.b16 %v430
  %v503 = vunpack.c.l.b16 %v431
  %v504 = vunpack.c.l.b16 %v432
  %v505 = vunpack.c.l.b16 %v433
  %v506 = vunpack.c.l.b16 %v434
  %v507 = vunpack.c.l.b16 %v435
  %v508 = vunpack.c.l.b16 %v436
  %v509 = vpack.c.b16 %v474, %v473
  %v510 = vpack.c.b16 %v476, %v475
  %v511 = vpack.c.b16 %v478, %v477
  %v512 = vpack.c.b16 %v480, %v479
  %v513 = vpack.c.b16 %v482, %v481
  %v514 = vpack.c.b16 %v484, %v483
  %v515 = vpack.c.b16 %v486, %v485
  %v516 = vpack.c.b16 %v488, %v487
  %v517 = vpack.c.b16 %v490, %v489
  %v518 = vpack.c.b16 %v492, %v491
  %v519 = vpack.c.b16 %v494, %v493
  %v520 = vpack.c.b16 %v496, %v495
  %v521 = vpack.c.b16 %v498, %v497
  %v522 = vpack.c.b16 %v500, %v499
  %v523 = vpack.c.b16 %v502, %v501
  %v524 = vpack.c.b16 %v504, %v503
  %v525 = vpack.c.b16 %v506, %v505
  %v526 = vpack.c.b16 %v508, %v507
  %545 = vmatprep.subr.bf16.mxu0 0
  %546 = vmatpush1.bf16.msra.mxu0 %v207
  %547 = vmatprep.subr.bf16.mxu0 0
  %548 = vmatpush1.bf16.msra.mxu0 %v208
  %549 = vmatprep.subr.bf16.mxu0 0
  %550 = vmatpush1.bf16.msra.mxu0 %v209
  %551 = vmatprep.subr.bf16.mxu0 0
  %552 = vmatpush1.bf16.msra.mxu0 %v210
  %553 = vmatprep.subr.bf16.mxu0 0
  %554 = vmatpush1.bf16.msra.mxu0 %v211
  %555 = vmatprep.subr.bf16.mxu0 0
  %556 = vmatpush1.bf16.msra.mxu0 %v212
  %557 = vmatprep.subr.bf16.mxu0 0
  %558 = vmatpush1.bf16.msra.mxu0 %v213
  %559 = vmatprep.subr.bf16.mxu0 0
  %560 = vmatpush1.bf16.msra.mxu0 %v214
  %561 = vmatprep.subr.bf16.mxu0 0
  %562 = vmatpush1.bf16.msra.mxu0 0
  %563 = vmatprep.subr.bf16.mxu0 0
  %564 = vmatpush1.bf16.msra.mxu0 0
  %565 = vmatprep.subr.bf16.mxu0 0
  %566 = vmatpush1.bf16.msra.mxu0 0
  %567 = vmatprep.subr.bf16.mxu0 0
  %568 = vmatpush1.bf16.msra.mxu0 0
  %569 = vmatprep.subr.bf16.mxu0 0
  %570 = vmatpush1.bf16.msra.mxu0 0
  %571 = vmatprep.subr.bf16.mxu0 0
  %572 = vmatpush1.bf16.msra.mxu0 0
  %573 = vmatprep.subr.bf16.mxu0 0
  %574 = vmatpush1.bf16.msra.mxu0 0
  %575 = vmatprep.subr.bf16.mxu0 0
  %576 = vmatpush1.bf16.msra.mxu0 0
  %577 = vmatprep.mubr.bf16.mxu0 0
  %578 = vmatmul.mubr.bf16.gmra.mrb[0].mxu0 %v509
  %v579 = vpop.f32.mrb[0].mxu0
  %v580 = vadd.f32 0.0, %v579
  %v581 = vpop.f32.mrb[0].mxu0
  %v582 = vpop.f32.mrb[0].mxu0
  %v583 = vadd.f32 0.0, %v582
  %v584 = vpop.f32.mrb[0].mxu0
  %585 = vmatprep.mubr.bf16.mxu0 0
  %586 = vmatmul.mubr.bf16.gmra.mrb[0].mxu0 %v510
  %v587 = vpop.f32.mrb[0].mxu0
  %v588 = vadd.f32 0.0, %v587
  %v589 = vpop.f32.mrb[0].mxu0
  %v590 = vpop.f32.mrb[0].mxu0
  %v591 = vadd.f32 0.0, %v590
  %v592 = vpop.f32.mrb[0].mxu0
  %593 = vmatprep.mubr.bf16.mxu0 0
  %594 = vmatmul.mubr.bf16.gmra.mrb[0].mxu0 %v511
  %v595 = vpop.f32.mrb[0].mxu0
  %v596 = vadd.f32 0.0, %v595
  %v597 = vpop.f32.mrb[0].mxu0
  %v598 = vpop.f32.mrb[0].mxu0
  %v599 = vadd.f32 0.0, %v598
  %v600 = vpop.f32.mrb[0].mxu0
  %601 = vmatprep.mubr.bf16.mxu0 0
  %602 = vmatmul.mubr.bf16.gmra.mrb[0].mxu0 %v512
  %v603 = vpop.f32.mrb[0].mxu0
  %v604 = vadd.f32 0.0, %v603
  %v605 = vpop.f32.mrb[0].mxu0
  %v606 = vpop.f32.mrb[0].mxu0
  %v607 = vadd.f32 0.0, %v606
  %v608 = vpop.f32.mrb[0].mxu0
  %609 = vmatprep.mubr.bf16.mxu0 0
  %610 = vmatmul.mubr.bf16.gmra.mrb[0].mxu0 %v513
  %v611 = vpop.f32.mrb[0].mxu0
  %v612 = vadd.f32 0.0, %v611
  %v613 = vpop.f32.mrb[0].mxu0
  %v614 = vpop.f32.mrb[0].mxu0
  %v615 = vadd.f32 0.0, %v614
  %v616 = vpop.f32.mrb[0].mxu0
  %617 = vmatprep.mubr.bf16.mxu0 0
  %618 = vmatmul.mubr.bf16.gmra.mrb[0].mxu0 %v514
  %v619 = vpop.f32.mrb[0].mxu0
  %v620 = vadd.f32 0.0, %v619
  %v621 = vpop.f32.mrb[0].mxu0
  %v622 = vpop.f32.mrb[0].mxu0
  %v623 = vadd.f32 0.0, %v622
  %v624 = vpop.f32.mrb[0].mxu0
  %625 = vmatprep.mubr.bf16.mxu0 0
  %626 = vmatmul.mubr.bf16.gmra.mrb[0].mxu0 %v515
  %v627 = vpop.f32.mrb[0].mxu0
  %v628 = vadd.f32 0.0, %v627
  %v629 = vpop.f32.mrb[0].mxu0
  %v630 = vpop.f32.mrb[0].mxu0
  %v631 = vadd.f32 0.0, %v630
  %v632 = vpop.f32.mrb[0].mxu0
  %633 = vmatprep.mubr.bf16.mxu0 0
  %634 = vmatmul.mubr.bf16.gmra.mrb[0].mxu0 %v516
  %v635 = vpop.f32.mrb[0].mxu0
  %v636 = vadd.f32 0.0, %v635
  %v637 = vpop.f32.mrb[0].mxu0
  %v638 = vpop.f32.mrb[0].mxu0
  %v639 = vadd.f32 0.0, %v638
  %v640 = vpop.f32.mrb[0].mxu0
  %641 = vmatprep.mubr.bf16.mxu0 0
  %642 = vmatmul.mubr.bf16.gmra.mrb[0].mxu0 %v517
  %v643 = vpop.f32.mrb[0].mxu0
  %v644 = vadd.f32 0.0, %v643
  %v645 = vpop.f32.mrb[0].mxu0
  %v646 = vpop.f32.mrb[0].mxu0
  %v647 = vadd.f32 0.0, %v646
  %v648 = vpop.f32.mrb[0].mxu0
  %649 = vmatprep.mubr.bf16.mxu0 0
  %650 = vmatmul.mubr.bf16.gmra.mrb[0].mxu0 %v518
  %v651 = vpop.f32.mrb[0].mxu0
  %v652 = vadd.f32 0.0, %v651
  %v653 = vpop.f32.mrb[0].mxu0
  %v654 = vpop.f32.mrb[0].mxu0
  %v655 = vadd.f32 0.0, %v654
  %v656 = vpop.f32.mrb[0].mxu0
  %657 = vmatprep.mubr.bf16.mxu0 0
  %658 = vmatmul.mubr.bf16.gmra.mrb[0].mxu0 %v519
  %v659 = vpop.f32.mrb[0].mxu0
  %v660 = vadd.f32 0.0, %v659
  %v661 = vpop.f32.mrb[0].mxu0
  %v662 = vpop.f32.mrb[0].mxu0
  %v663 = vadd.f32 0.0, %v662
  %v664 = vpop.f32.mrb[0].mxu0
  %665 = vmatprep.mubr.bf16.mxu0 0
  %666 = vmatmul.mubr.bf16.gmra.mrb[0].mxu0 %v520
  %v667 = vpop.f32.mrb[0].mxu0
  %v668 = vadd.f32 0.0, %v667
  %v669 = vpop.f32.mrb[0].mxu0
  %v670 = vpop.f32.mrb[0].mxu0
  %v671 = vadd.f32 0.0, %v670
  %v672 = vpop.f32.mrb[0].mxu0
  %673 = vmatprep.mubr.bf16.mxu0 0
  %674 = vmatmul.mubr.bf16.gmra.mrb[0].mxu0 %v521
  %v675 = vpop.f32.mrb[0].mxu0
  %v676 = vadd.f32 0.0, %v675
  %v677 = vpop.f32.mrb[0].mxu0
  %v678 = vpop.f32.mrb[0].mxu0
  %v679 = vadd.f32 0.0, %v678
  %v680 = vpop.f32.mrb[0].mxu0
  %681 = vmatprep.mubr.bf16.mxu0 0
  %682 = vmatmul.mubr.bf16.gmra.mrb[0].mxu0 %v522
  %v683 = vpop.f32.mrb[0].mxu0
  %v684 = vadd.f32 0.0, %v683
  %v685 = vpop.f32.mrb[0].mxu0
  %v686 = vpop.f32.mrb[0].mxu0
  %v687 = vadd.f32 0.0, %v686
  %v688 = vpop.f32.mrb[0].mxu0
  %689 = vmatprep.mubr.bf16.mxu0 0
  %690 = vmatmul.mubr.bf16.gmra.mrb[0].mxu0 %v523
  %v691 = vpop.f32.mrb[0].mxu0
  %v692 = vadd.f32 0.0, %v691
  %v693 = vpop.f32.mrb[0].mxu0
  %v694 = vpop.f32.mrb[0].mxu0
  %v695 = vadd.f32 0.0, %v694
  %v696 = vpop.f32.mrb[0].mxu0
  %697 = vmatprep.mubr.bf16.mxu0 0
  %698 = vmatmul.mubr.bf16.gmra.mrb[0].mxu0 %v524
  %v699 = vpop.f32.mrb[0].mxu0
  %v700 = vadd.f32 0.0, %v699
  %v701 = vpop.f32.mrb[0].mxu0
  %v702 = vpop.f32.mrb[0].mxu0
  %v703 = vadd.f32 0.0, %v702
  %v704 = vpop.f32.mrb[0].mxu0
  %705 = vmatprep.mubr.bf16.mxu0 0
  %706 = vmatmul.mubr.bf16.gmra.mrb[0].mxu0 %v525
  %v707 = vpop.f32.mrb[0].mxu0
  %v708 = vadd.f32 0.0, %v707
  %v709 = vpop.f32.mrb[0].mxu0
  %v710 = vpop.f32.mrb[0].mxu0
  %v711 = vadd.f32 0.0, %v710
  %v712 = vpop.f32.mrb[0].mxu0
  %713 = vmatprep.mubr.bf16.mxu0 0
  %714 = vmatmul.mubr.bf16.gmra.mrb[0].mxu0 %v526
  %v715 = vpop.f32.mrb[0].mxu0
  %v716 = vadd.f32 0.0, %v715
  %v717 = vpop.f32.mrb[0].mxu0
  %v718 = vpop.f32.mrb[0].mxu0
  %v719 = vadd.f32 0.0, %v718
  %v720 = vpop.f32.mrb[0].mxu0
  %721 = vdwg.mxu0
  %s722 = scalar_lea.vmem %s0, 288
  %v723 = vld [vmem:[%s722] sm:$0xf]
  %v724 = vld [vmem:[%s722 + $0x4] sm:$0xf]
  %v725 = vld [vmem:[%s722 + $0x8] sm:$0xf]
  %v726 = vld [vmem:[%s722 + $0xc] sm:$0xf]
  %v727 = vld [vmem:[%s722 + $0x10] sm:$0xf]
  %v728 = vld [vmem:[%s722 + $0x14] sm:$0xf]
  %v729 = vld [vmem:[%s722 + $0x18] sm:$0xf]
  %v730 = vld [vmem:[%s722 + $0x1c] sm:$0xf]
  %v731 = vld [vmem:[%s722 + $0x20] sm:$0xf]
  %v732 = vld [vmem:[%s722 + $0x24] sm:$0xf]
  %v733 = vld [vmem:[%s722 + $0x28] sm:$0xf]
  %v734 = vld [vmem:[%s722 + $0x2c] sm:$0xf]
  %v735 = vld [vmem:[%s722 + $0x30] sm:$0xf]
  %v736 = vld [vmem:[%s722 + $0x34] sm:$0xf]
  %v737 = vld [vmem:[%s722 + $0x38] sm:$0xf]
  %v738 = vld [vmem:[%s722 + $0x3c] sm:$0xf]
  %v739 = vld [vmem:[%s722 + $0x40] sm:$0xf]
  %v740 = vld [vmem:[%s722 + $0x44] sm:$0xf]
  %v741 = vld [vmem:[%s722 + $0x48] sm:$0xf]
  %v742 = vld [vmem:[%s722 + $0x4c] sm:$0xf]
  %v743 = vld [vmem:[%s722 + $0x50] sm:$0xf]
  %v744 = vld [vmem:[%s722 + $0x54] sm:$0xf]
  %v745 = vld [vmem:[%s722 + $0x58] sm:$0xf]
  %v746 = vld [vmem:[%s722 + $0x5c] sm:$0xf]
  %v747 = vld [vmem:[%s722 + $0x60] sm:$0xf]
  %v748 = vld [vmem:[%s722 + $0x64] sm:$0xf]
  %v749 = vld [vmem:[%s722 + $0x68] sm:$0xf]
  %v750 = vld [vmem:[%s722 + $0x6c] sm:$0xf]
  %v751 = vld [vmem:[%s722 + $0x70] sm:$0xf]
  %v752 = vld [vmem:[%s722 + $0x74] sm:$0xf]
  %v753 = vld [vmem:[%s722 + $0x78] sm:$0xf]
  %v754 = vld [vmem:[%s722 + $0x7c] sm:$0xf]
  %v755 = vld [vmem:[%s722 + $0x80] sm:$0xf]
  %v756 = vld [vmem:[%s722 + $0x84] sm:$0xf]
  %v757 = vld [vmem:[%s722 + $0x88] sm:$0xf]
  %v758 = vld [vmem:[%s722 + $0x8c] sm:$0xf]
  %v795 = vunpack.c.l.b16 %v723
  %v796 = vunpack.c.l.b16 %v724
  %v797 = vunpack.c.l.b16 %v725
  %v798 = vunpack.c.l.b16 %v726
  %v799 = vunpack.c.l.b16 %v727
  %v800 = vunpack.c.l.b16 %v728
  %v801 = vunpack.c.l.b16 %v729
  %v802 = vunpack.c.l.b16 %v730
  %v803 = vunpack.c.l.b16 %v731
  %v804 = vunpack.c.l.b16 %v732
  %v805 = vunpack.c.l.b16 %v733
  %v806 = vunpack.c.l.b16 %v734
  %v807 = vunpack.c.l.b16 %v735
  %v808 = vunpack.c.l.b16 %v736
  %v809 = vunpack.c.l.b16 %v737
  %v810 = vunpack.c.l.b16 %v738
  %v811 = vunpack.c.l.b16 %v739
  %v812 = vunpack.c.l.b16 %v740
  %v813 = vunpack.c.l.b16 %v741
  %v814 = vunpack.c.l.b16 %v742
  %v815 = vunpack.c.l.b16 %v743
  %v816 = vunpack.c.l.b16 %v744
  %v817 = vunpack.c.l.b16 %v745
  %v818 = vunpack.c.l.b16 %v746
  %v819 = vunpack.c.l.b16 %v747
  %v820 = vunpack.c.l.b16 %v748
  %v821 = vunpack.c.l.b16 %v749
  %v822 = vunpack.c.l.b16 %v750
  %v823 = vunpack.c.l.b16 %v751
  %v824 = vunpack.c.l.b16 %v752
  %v825 = vunpack.c.l.b16 %v753
  %v826 = vunpack.c.l.b16 %v754
  %v827 = vunpack.c.l.b16 %v755
  %v828 = vunpack.c.l.b16 %v756
  %v829 = vunpack.c.l.b16 %v757
  %v830 = vunpack.c.l.b16 %v758
  %v831 = vpack.c.b16 %v796, %v795
  %v832 = vpack.c.b16 %v798, %v797
  %v833 = vpack.c.b16 %v800, %v799
  %v834 = vpack.c.b16 %v802, %v801
  %v835 = vpack.c.b16 %v804, %v803
  %v836 = vpack.c.b16 %v806, %v805
  %v837 = vpack.c.b16 %v808, %v807
  %v838 = vpack.c.b16 %v810, %v809
  %v839 = vpack.c.b16 %v812, %v811
  %v840 = vpack.c.b16 %v814, %v813
  %v841 = vpack.c.b16 %v816, %v815
  %v842 = vpack.c.b16 %v818, %v817
  %v843 = vpack.c.b16 %v820, %v819
  %v844 = vpack.c.b16 %v822, %v821
  %v845 = vpack.c.b16 %v824, %v823
  %v846 = vpack.c.b16 %v826, %v825
  %v847 = vpack.c.b16 %v828, %v827
  %v848 = vpack.c.b16 %v830, %v829
  %867 = vmatprep.subr.bf16.mxu0 0
  %868 = vmatpush1.bf16.msra.mxu0 %v207
  %869 = vmatprep.subr.bf16.mxu0 0
  %870 = vmatpush1.bf16.msra.mxu0 %v208
  %871 = vmatprep.subr.bf16.mxu0 0
  %872 = vmatpush1.bf16.msra.mxu0 %v209
  %873 = vmatprep.subr.bf16.mxu0 0
  %874 = vmatpush1.bf16.msra.mxu0 %v210
  %875 = vmatprep.subr.bf16.mxu0 0
  %876 = vmatpush1.bf16.msra.mxu0 %v211
  %877 = vmatprep.subr.bf16.mxu0 0
  %878 = vmatpush1.bf16.msra.mxu0 %v212
  %879 = vmatprep.subr.bf16.mxu0 0
  %880 = vmatpush1.bf16.msra.mxu0 %v213
  %881 = vmatprep.subr.bf16.mxu0 0
  %882 = vmatpush1.bf16.msra.mxu0 %v214
  %883 = vmatprep.subr.bf16.mxu0 0
  %884 = vmatpush1.bf16.msra.mxu0 0
  %885 = vmatprep.subr.bf16.mxu0 0
  %886 = vmatpush1.bf16.msra.mxu0 0
  %887 = vmatprep.subr.bf16.mxu0 0
  %888 = vmatpush1.bf16.msra.mxu0 0
  %889 = vmatprep.subr.bf16.mxu0 0
  %890 = vmatpush1.bf16.msra.mxu0 0
  %891 = vmatprep.subr.bf16.mxu0 0
  %892 = vmatpush1.bf16.msra.mxu0 0
  %893 = vmatprep.subr.bf16.mxu0 0
  %894 = vmatpush1.bf16.msra.mxu0 0
  %895 = vmatprep.subr.bf16.mxu0 0
  %896 = vmatpush1.bf16.msra.mxu0 0
  %897 = vmatprep.subr.bf16.mxu0 0
  %898 = vmatpush1.bf16.msra.mxu0 0
  %899 = vmatprep.mubr.bf16.mxu0 0
  %900 = vmatmul.mubr.bf16.gmra.mrb[0].mxu0 %v831
  %v901 = vpop.f32.mrb[0].mxu0
  %v902 = vadd.f32 0.0, %v901
  %v903 = vpop.f32.mrb[0].mxu0
  %v904 = vpop.f32.mrb[0].mxu0
  %v905 = vadd.f32 0.0, %v904
  %v906 = vpop.f32.mrb[0].mxu0
  %907 = vmatprep.mubr.bf16.mxu0 0
  %908 = vmatmul.mubr.bf16.gmra.mrb[0].mxu0 %v832
  %v909 = vpop.f32.mrb[0].mxu0
  %v910 = vadd.f32 0.0, %v909
  %v911 = vpop.f32.mrb[0].mxu0
  %v912 = vpop.f32.mrb[0].mxu0
  %v913 = vadd.f32 0.0, %v912
  %v914 = vpop.f32.mrb[0].mxu0
  %915 = vmatprep.mubr.bf16.mxu0 0
  %916 = vmatmul.mubr.bf16.gmra.mrb[0].mxu0 %v833
  %v917 = vpop.f32.mrb[0].mxu0
  %v918 = vadd.f32 0.0, %v917
  %v919 = vpop.f32.mrb[0].mxu0
  %v920 = vpop.f32.mrb[0].mxu0
  %v921 = vadd.f32 0.0, %v920
  %v922 = vpop.f32.mrb[0].mxu0
  %923 = vmatprep.mubr.bf16.mxu0 0
  %924 = vmatmul.mubr.bf16.gmra.mrb[0].mxu0 %v834
  %v925 = vpop.f32.mrb[0].mxu0
  %v926 = vadd.f32 0.0, %v925
  %v927 = vpop.f32.mrb[0].mxu0
  %v928 = vpop.f32.mrb[0].mxu0
  %v929 = vadd.f32 0.0, %v928
  %v930 = vpop.f32.mrb[0].mxu0
  %931 = vmatprep.mubr.bf16.mxu0 0
  %932 = vmatmul.mubr.bf16.gmra.mrb[0].mxu0 %v835
  %v933 = vpop.f32.mrb[0].mxu0
  %v934 = vadd.f32 0.0, %v933
  %v935 = vpop.f32.mrb[0].mxu0
  %v936 = vpop.f32.mrb[0].mxu0
  %v937 = vadd.f32 0.0, %v936
  %v938 = vpop.f32.mrb[0].mxu0
  %939 = vmatprep.mubr.bf16.mxu0 0
  %940 = vmatmul.mubr.bf16.gmra.mrb[0].mxu0 %v836
  %v941 = vpop.f32.mrb[0].mxu0
  %v942 = vadd.f32 0.0, %v941
  %v943 = vpop.f32.mrb[0].mxu0
  %v944 = vpop.f32.mrb[0].mxu0
  %v945 = vadd.f32 0.0, %v944
  %v946 = vpop.f32.mrb[0].mxu0
  %947 = vmatprep.mubr.bf16.mxu0 0
  %948 = vmatmul.mubr.bf16.gmra.mrb[0].mxu0 %v837
  %v949 = vpop.f32.mrb[0].mxu0
  %v950 = vadd.f32 0.0, %v949
  %v951 = vpop.f32.mrb[0].mxu0
  %v952 = vpop.f32.mrb[0].mxu0
  %v953 = vadd.f32 0.0, %v952
  %v954 = vpop.f32.mrb[0].mxu0
  %955 = vmatprep.mubr.bf16.mxu0 0
  %956 = vmatmul.mubr.bf16.gmra.mrb[0].mxu0 %v838
  %v957 = vpop.f32.mrb[0].mxu0
  %v958 = vadd.f32 0.0, %v957
  %v959 = vpop.f32.mrb[0].mxu0
  %v960 = vpop.f32.mrb[0].mxu0
  %v961 = vadd.f32 0.0, %v960
  %v962 = vpop.f32.mrb[0].mxu0
  %963 = vmatprep.mubr.bf16.mxu0 0
  %964 = vmatmul.mubr.bf16.gmra.mrb[0].mxu0 %v839
  %v965 = vpop.f32.mrb[0].mxu0
  %v966 = vadd.f32 0.0, %v965
  %v967 = vpop.f32.mrb[0].mxu0
  %v968 = vpop.f32.mrb[0].mxu0
  %v969 = vadd.f32 0.0, %v968
  %v970 = vpop.f32.mrb[0].mxu0
  %971 = vmatprep.mubr.bf16.mxu0 0
  %972 = vmatmul.mubr.bf16.gmra.mrb[0].mxu0 %v840
  %v973 = vpop.f32.mrb[0].mxu0
  %v974 = vadd.f32 0.0, %v973
  %v975 = vpop.f32.mrb[0].mxu0
  %v976 = vpop.f32.mrb[0].mxu0
  %v977 = vadd.f32 0.0, %v976
  %v978 = vpop.f32.mrb[0].mxu0
  %979 = vmatprep.mubr.bf16.mxu0 0
  %980 = vmatmul.mubr.bf16.gmra.mrb[0].mxu0 %v841
  %v981 = vpop.f32.mrb[0].mxu0
  %v982 = vadd.f32 0.0, %v981
  %v983 = vpop.f32.mrb[0].mxu0
  %v984 = vpop.f32.mrb[0].mxu0
  %v985 = vadd.f32 0.0, %v984
  %v986 = vpop.f32.mrb[0].mxu0
  %987 = vmatprep.mubr.bf16.mxu0 0
  %988 = vmatmul.mubr.bf16.gmra.mrb[0].mxu0 %v842
  %v989 = vpop.f32.mrb[0].mxu0
  %v990 = vadd.f32 0.0, %v989
  %v991 = vpop.f32.mrb[0].mxu0
  %v992 = vpop.f32.mrb[0].mxu0
  %v993 = vadd.f32 0.0, %v992
  %v994 = vpop.f32.mrb[0].mxu0
  %995 = vmatprep.mubr.bf16.mxu0 0
  %996 = vmatmul.mubr.bf16.gmra.mrb[0].mxu0 %v843
  %v997 = vpop.f32.mrb[0].mxu0
  %v998 = vadd.f32 0.0, %v997
  %v999 = vpop.f32.mrb[0].mxu0
  %v1000 = vpop.f32.mrb[0].mxu0
  %v1001 = vadd.f32 0.0, %v1000
  %v1002 = vpop.f32.mrb[0].mxu0
  %1003 = vmatprep.mubr.bf16.mxu0 0
  %1004 = vmatmul.mubr.bf16.gmra.mrb[0].mxu0 %v844
  %v1005 = vpop.f32.mrb[0].mxu0
  %v1006 = vadd.f32 0.0, %v1005
  %v1007 = vpop.f32.mrb[0].mxu0
  %v1008 = vpop.f32.mrb[0].mxu0
  %v1009 = vadd.f32 0.0, %v1008
  %v1010 = vpop.f32.mrb[0].mxu0
  %1011 = vmatprep.mubr.bf16.mxu0 0
  %1012 = vmatmul.mubr.bf16.gmra.mrb[0].mxu0 %v845
  %v1013 = vpop.f32.mrb[0].mxu0
  %v1014 = vadd.f32 0.0, %v1013
  %v1015 = vpop.f32.mrb[0].mxu0
  %v1016 = vpop.f32.mrb[0].mxu0
  %v1017 = vadd.f32 0.0, %v1016
  %v1018 = vpop.f32.mrb[0].mxu0
  %1019 = vmatprep.mubr.bf16.mxu0 0
  %1020 = vmatmul.mubr.bf16.gmra.mrb[0].mxu0 %v846
  %v1021 = vpop.f32.mrb[0].mxu0
  %v1022 = vadd.f32 0.0, %v1021
  %v1023 = vpop.f32.mrb[0].mxu0
  %v1024 = vpop.f32.mrb[0].mxu0
  %v1025 = vadd.f32 0.0, %v1024
  %v1026 = vpop.f32.mrb[0].mxu0
  %1027 = vmatprep.mubr.bf16.mxu0 0
  %1028 = vmatmul.mubr.bf16.gmra.mrb[0].mxu0 %v847
  %v1029 = vpop.f32.mrb[0].mxu0
  %v1030 = vadd.f32 0.0, %v1029
  %v1031 = vpop.f32.mrb[0].mxu0
  %v1032 = vpop.f32.mrb[0].mxu0
  %v1033 = vadd.f32 0.0, %v1032
  %v1034 = vpop.f32.mrb[0].mxu0
  %1035 = vmatprep.mubr.bf16.mxu0 0
  %1036 = vmatmul.mubr.bf16.gmra.mrb[0].mxu0 %v848
  %v1037 = vpop.f32.mrb[0].mxu0
  %v1038 = vadd.f32 0.0, %v1037
  %v1039 = vpop.f32.mrb[0].mxu0
  %v1040 = vpop.f32.mrb[0].mxu0
  %v1041 = vadd.f32 0.0, %v1040
  %v1042 = vpop.f32.mrb[0].mxu0
  %1043 = vdwg.mxu0
  %s1044 = scalar_lea.vmem %s0, 432
  %v1045 = vld [vmem:[%s1044] sm:$0xf]
  %v1046 = vld [vmem:[%s1044 + $0x4] sm:$0xf]
  %v1047 = vld [vmem:[%s1044 + $0x8] sm:$0xf]
  %v1048 = vld [vmem:[%s1044 + $0xc] sm:$0xf]
  %v1049 = vld [vmem:[%s1044 + $0x10] sm:$0xf]
  %v1050 = vld [vmem:[%s1044 + $0x14] sm:$0xf]
  %v1051 = vld [vmem:[%s1044 + $0x18] sm:$0xf]
  %v1052 = vld [vmem:[%s1044 + $0x1c] sm:$0xf]
  %v1053 = vld [vmem:[%s1044 + $0x20] sm:$0xf]
  %v1054 = vld [vmem:[%s1044 + $0x24] sm:$0xf]
  %v1055 = vld [vmem:[%s1044 + $0x28] sm:$0xf]
  %v1056 = vld [vmem:[%s1044 + $0x2c] sm:$0xf]
  %v1057 = vld [vmem:[%s1044 + $0x30] sm:$0xf]
  %v1058 = vld [vmem:[%s1044 + $0x34] sm:$0xf]
  %v1059 = vld [vmem:[%s1044 + $0x38] sm:$0xf]
  %v1060 = vld [vmem:[%s1044 + $0x3c] sm:$0xf]
  %v1061 = vld [vmem:[%s1044 + $0x40] sm:$0xf]
  %v1062 = vld [vmem:[%s1044 + $0x44] sm:$0xf]
  %v1063 = vld [vmem:[%s1044 + $0x48] sm:$0xf]
  %v1064 = vld [vmem:[%s1044 + $0x4c] sm:$0xf]
  %v1065 = vld [vmem:[%s1044 + $0x50] sm:$0xf]
  %v1066 = vld [vmem:[%s1044 + $0x54] sm:$0xf]
  %v1067 = vld [vmem:[%s1044 + $0x58] sm:$0xf]
  %v1068 = vld [vmem:[%s1044 + $0x5c] sm:$0xf]
  %v1069 = vld [vmem:[%s1044 + $0x60] sm:$0xf]
  %v1070 = vld [vmem:[%s1044 + $0x64] sm:$0xf]
  %v1071 = vld [vmem:[%s1044 + $0x68] sm:$0xf]
  %v1072 = vld [vmem:[%s1044 + $0x6c] sm:$0xf]
  %v1073 = vld [vmem:[%s1044 + $0x70] sm:$0xf]
  %v1074 = vld [vmem:[%s1044 + $0x74] sm:$0xf]
  %v1075 = vld [vmem:[%s1044 + $0x78] sm:$0xf]
  %v1076 = vld [vmem:[%s1044 + $0x7c] sm:$0xf]
  %v1077 = vld [vmem:[%s1044 + $0x80] sm:$0xf]
  %v1078 = vld [vmem:[%s1044 + $0x84] sm:$0xf]
  %v1079 = vld [vmem:[%s1044 + $0x88] sm:$0xf]
  %v1080 = vld [vmem:[%s1044 + $0x8c] sm:$0xf]
  %v1117 = vunpack.c.l.b16 %v1045
  %v1118 = vunpack.c.l.b16 %v1046
  %v1119 = vunpack.c.l.b16 %v1047
  %v1120 = vunpack.c.l.b16 %v1048
  %v1121 = vunpack.c.l.b16 %v1049
  %v1122 = vunpack.c.l.b16 %v1050
  %v1123 = vunpack.c.l.b16 %v1051
  %v1124 = vunpack.c.l.b16 %v1052
  %v1125 = vunpack.c.l.b16 %v1053
  %v1126 = vunpack.c.l.b16 %v1054
  %v1127 = vunpack.c.l.b16 %v1055
  %v1128 = vunpack.c.l.b16 %v1056
  %v1129 = vunpack.c.l.b16 %v1057
  %v1130 = vunpack.c.l.b16 %v1058
  %v1131 = vunpack.c.l.b16 %v1059
  %v1132 = vunpack.c.l.b16 %v1060
  %v1133 = vunpack.c.l.b16 %v1061
  %v1134 = vunpack.c.l.b16 %v1062
  %v1135 = vunpack.c.l.b16 %v1063
  %v1136 = vunpack.c.l.b16 %v1064
  %v1137 = vunpack.c.l.b16 %v1065
  %v1138 = vunpack.c.l.b16 %v1066
  %v1139 = vunpack.c.l.b16 %v1067
  %v1140 = vunpack.c.l.b16 %v1068
  %v1141 = vunpack.c.l.b16 %v1069
  %v1142 = vunpack.c.l.b16 %v1070
  %v1143 = vunpack.c.l.b16 %v1071
  %v1144 = vunpack.c.l.b16 %v1072
  %v1145 = vunpack.c.l.b16 %v1073
  %v1146 = vunpack.c.l.b16 %v1074
  %v1147 = vunpack.c.l.b16 %v1075
  %v1148 = vunpack.c.l.b16 %v1076
  %v1149 = vunpack.c.l.b16 %v1077
  %v1150 = vunpack.c.l.b16 %v1078
  %v1151 = vunpack.c.l.b16 %v1079
  %v1152 = vunpack.c.l.b16 %v1080
  %v1153 = vpack.c.b16 %v1118, %v1117
  %v1154 = vpack.c.b16 %v1120, %v1119
  %v1155 = vpack.c.b16 %v1122, %v1121
  %v1156 = vpack.c.b16 %v1124, %v1123
  %v1157 = vpack.c.b16 %v1126, %v1125
  %v1158 = vpack.c.b16 %v1128, %v1127
  %v1159 = vpack.c.b16 %v1130, %v1129
  %v1160 = vpack.c.b16 %v1132, %v1131
  %v1161 = vpack.c.b16 %v1134, %v1133
  %v1162 = vpack.c.b16 %v1136, %v1135
  %v1163 = vpack.c.b16 %v1138, %v1137
  %v1164 = vpack.c.b16 %v1140, %v1139
  %v1165 = vpack.c.b16 %v1142, %v1141
  %v1166 = vpack.c.b16 %v1144, %v1143
  %v1167 = vpack.c.b16 %v1146, %v1145
  %v1168 = vpack.c.b16 %v1148, %v1147
  %v1169 = vpack.c.b16 %v1150, %v1149
  %v1170 = vpack.c.b16 %v1152, %v1151
  %1189 = vmatprep.subr.bf16.mxu0 0
  %1190 = vmatpush1.bf16.msra.mxu0 %v207
  %1191 = vmatprep.subr.bf16.mxu0 0
  %1192 = vmatpush1.bf16.msra.mxu0 %v208
  %1193 = vmatprep.subr.bf16.mxu0 0
  %1194 = vmatpush1.bf16.msra.mxu0 %v209
  %1195 = vmatprep.subr.bf16.mxu0 0
  %1196 = vmatpush1.bf16.msra.mxu0 %v210
  %1197 = vmatprep.subr.bf16.mxu0 0
  %1198 = vmatpush1.bf16.msra.mxu0 %v211
  %1199 = vmatprep.subr.bf16.mxu0 0
  %1200 = vmatpush1.bf16.msra.mxu0 %v212
  %1201 = vmatprep.subr.bf16.mxu0 0
  %1202 = vmatpush1.bf16.msra.mxu0 %v213
  %1203 = vmatprep.subr.bf16.mxu0 0
  %1204 = vmatpush1.bf16.msra.mxu0 %v214
  %1205 = vmatprep.subr.bf16.mxu0 0
  %1206 = vmatpush1.bf16.msra.mxu0 0
  %1207 = vmatprep.subr.bf16.mxu0 0
  %1208 = vmatpush1.bf16.msra.mxu0 0
  %1209 = vmatprep.subr.bf16.mxu0 0
  %1210 = vmatpush1.bf16.msra.mxu0 0
  %1211 = vmatprep.subr.bf16.mxu0 0
  %1212 = vmatpush1.bf16.msra.mxu0 0
  %1213 = vmatprep.subr.bf16.mxu0 0
  %1214 = vmatpush1.bf16.msra.mxu0 0
  %1215 = vmatprep.subr.bf16.mxu0 0
  %1216 = vmatpush1.bf16.msra.mxu0 0
  %1217 = vmatprep.subr.bf16.mxu0 0
  %1218 = vmatpush1.bf16.msra.mxu0 0
  %1219 = vmatprep.subr.bf16.mxu0 0
  %1220 = vmatpush1.bf16.msra.mxu0 0
  %1221 = vmatprep.mubr.bf16.mxu0 0
  %1222 = vmatmul.mubr.bf16.gmra.mrb[0].mxu0 %v1153
  %v1223 = vpop.f32.mrb[0].mxu0
  %v1224 = vadd.f32 0.0, %v1223
  %v1225 = vpop.f32.mrb[0].mxu0
  %v1226 = vpop.f32.mrb[0].mxu0
  %v1227 = vadd.f32 0.0, %v1226
  %v1228 = vpop.f32.mrb[0].mxu0
  %1229 = vmatprep.mubr.bf16.mxu0 0
  %1230 = vmatmul.mubr.bf16.gmra.mrb[0].mxu0 %v1154
  %v1231 = vpop.f32.mrb[0].mxu0
  %v1232 = vadd.f32 0.0, %v1231
  %v1233 = vpop.f32.mrb[0].mxu0
  %v1234 = vpop.f32.mrb[0].mxu0
  %v1235 = vadd.f32 0.0, %v1234
  %v1236 = vpop.f32.mrb[0].mxu0
  %1237 = vmatprep.mubr.bf16.mxu0 0
  %1238 = vmatmul.mubr.bf16.gmra.mrb[0].mxu0 %v1155
  %v1239 = vpop.f32.mrb[0].mxu0
  %v1240 = vadd.f32 0.0, %v1239
  %v1241 = vpop.f32.mrb[0].mxu0
  %v1242 = vpop.f32.mrb[0].mxu0
  %v1243 = vadd.f32 0.0, %v1242
  %v1244 = vpop.f32.mrb[0].mxu0
  %1245 = vmatprep.mubr.bf16.mxu0 0
  %1246 = vmatmul.mubr.bf16.gmra.mrb[0].mxu0 %v1156
  %v1247 = vpop.f32.mrb[0].mxu0
  %v1248 = vadd.f32 0.0, %v1247
  %v1249 = vpop.f32.mrb[0].mxu0
  %v1250 = vpop.f32.mrb[0].mxu0
  %v1251 = vadd.f32 0.0, %v1250
  %v1252 = vpop.f32.mrb[0].mxu0
  %1253 = vmatprep.mubr.bf16.mxu0 0
  %1254 = vmatmul.mubr.bf16.gmra.mrb[0].mxu0 %v1157
  %v1255 = vpop.f32.mrb[0].mxu0
  %v1256 = vadd.f32 0.0, %v1255
  %v1257 = vpop.f32.mrb[0].mxu0
  %v1258 = vpop.f32.mrb[0].mxu0
  %v1259 = vadd.f32 0.0, %v1258
  %v1260 = vpop.f32.mrb[0].mxu0
  %1261 = vmatprep.mubr.bf16.mxu0 0
  %1262 = vmatmul.mubr.bf16.gmra.mrb[0].mxu0 %v1158
  %v1263 = vpop.f32.mrb[0].mxu0
  %v1264 = vadd.f32 0.0, %v1263
  %v1265 = vpop.f32.mrb[0].mxu0
  %v1266 = vpop.f32.mrb[0].mxu0
  %v1267 = vadd.f32 0.0, %v1266
  %v1268 = vpop.f32.mrb[0].mxu0
  %1269 = vmatprep.mubr.bf16.mxu0 0
  %1270 = vmatmul.mubr.bf16.gmra.mrb[0].mxu0 %v1159
  %v1271 = vpop.f32.mrb[0].mxu0
  %v1272 = vadd.f32 0.0, %v1271
  %v1273 = vpop.f32.mrb[0].mxu0
  %v1274 = vpop.f32.mrb[0].mxu0
  %v1275 = vadd.f32 0.0, %v1274
  %v1276 = vpop.f32.mrb[0].mxu0
  %1277 = vmatprep.mubr.bf16.mxu0 0
  %1278 = vmatmul.mubr.bf16.gmra.mrb[0].mxu0 %v1160
  %v1279 = vpop.f32.mrb[0].mxu0
  %v1280 = vadd.f32 0.0, %v1279
  %v1281 = vpop.f32.mrb[0].mxu0
  %v1282 = vpop.f32.mrb[0].mxu0
  %v1283 = vadd.f32 0.0, %v1282
  %v1284 = vpop.f32.mrb[0].mxu0
  %1285 = vmatprep.mubr.bf16.mxu0 0
  %1286 = vmatmul.mubr.bf16.gmra.mrb[0].mxu0 %v1161
  %v1287 = vpop.f32.mrb[0].mxu0
  %v1288 = vadd.f32 0.0, %v1287
  %v1289 = vpop.f32.mrb[0].mxu0
  %v1290 = vpop.f32.mrb[0].mxu0
  %v1291 = vadd.f32 0.0, %v1290
  %v1292 = vpop.f32.mrb[0].mxu0
  %1293 = vmatprep.mubr.bf16.mxu0 0
  %1294 = vmatmul.mubr.bf16.gmra.mrb[0].mxu0 %v1162
  %v1295 = vpop.f32.mrb[0].mxu0
  %v1296 = vadd.f32 0.0, %v1295
  %v1297 = vpop.f32.mrb[0].mxu0
  %v1298 = vpop.f32.mrb[0].mxu0
  %v1299 = vadd.f32 0.0, %v1298
  %v1300 = vpop.f32.mrb[0].mxu0
  %1301 = vmatprep.mubr.bf16.mxu0 0
  %1302 = vmatmul.mubr.bf16.gmra.mrb[0].mxu0 %v1163
  %v1303 = vpop.f32.mrb[0].mxu0
  %v1304 = vadd.f32 0.0, %v1303
  %v1305 = vpop.f32.mrb[0].mxu0
  %v1306 = vpop.f32.mrb[0].mxu0
  %v1307 = vadd.f32 0.0, %v1306
  %v1308 = vpop.f32.mrb[0].mxu0
  %1309 = vmatprep.mubr.bf16.mxu0 0
  %1310 = vmatmul.mubr.bf16.gmra.mrb[0].mxu0 %v1164
  %v1311 = vpop.f32.mrb[0].mxu0
  %v1312 = vadd.f32 0.0, %v1311
  %v1313 = vpop.f32.mrb[0].mxu0
  %v1314 = vpop.f32.mrb[0].mxu0
  %v1315 = vadd.f32 0.0, %v1314
  %v1316 = vpop.f32.mrb[0].mxu0
  %1317 = vmatprep.mubr.bf16.mxu0 0
  %1318 = vmatmul.mubr.bf16.gmra.mrb[0].mxu0 %v1165
  %v1319 = vpop.f32.mrb[0].mxu0
  %v1320 = vadd.f32 0.0, %v1319
  %v1321 = vpop.f32.mrb[0].mxu0
  %v1322 = vpop.f32.mrb[0].mxu0
  %v1323 = vadd.f32 0.0, %v1322
  %v1324 = vpop.f32.mrb[0].mxu0
  %1325 = vmatprep.mubr.bf16.mxu0 0
  %1326 = vmatmul.mubr.bf16.gmra.mrb[0].mxu0 %v1166
  %v1327 = vpop.f32.mrb[0].mxu0
  %v1328 = vadd.f32 0.0, %v1327
  %v1329 = vpop.f32.mrb[0].mxu0
  %v1330 = vpop.f32.mrb[0].mxu0
  %v1331 = vadd.f32 0.0, %v1330
  %v1332 = vpop.f32.mrb[0].mxu0
  %1333 = vmatprep.mubr.bf16.mxu0 0
  %1334 = vmatmul.mubr.bf16.gmra.mrb[0].mxu0 %v1167
  %v1335 = vpop.f32.mrb[0].mxu0
  %v1336 = vadd.f32 0.0, %v1335
  %v1337 = vpop.f32.mrb[0].mxu0
  %v1338 = vpop.f32.mrb[0].mxu0
  %v1339 = vadd.f32 0.0, %v1338
  %v1340 = vpop.f32.mrb[0].mxu0
  %1341 = vmatprep.mubr.bf16.mxu0 0
  %1342 = vmatmul.mubr.bf16.gmra.mrb[0].mxu0 %v1168
  %v1343 = vpop.f32.mrb[0].mxu0
  %v1344 = vadd.f32 0.0, %v1343
  %v1345 = vpop.f32.mrb[0].mxu0
  %v1346 = vpop.f32.mrb[0].mxu0
  %v1347 = vadd.f32 0.0, %v1346
  %v1348 = vpop.f32.mrb[0].mxu0
  %1349 = vmatprep.mubr.bf16.mxu0 0
  %1350 = vmatmul.mubr.bf16.gmra.mrb[0].mxu0 %v1169
  %v1351 = vpop.f32.mrb[0].mxu0
  %v1352 = vadd.f32 0.0, %v1351
  %v1353 = vpop.f32.mrb[0].mxu0
  %v1354 = vpop.f32.mrb[0].mxu0
  %v1355 = vadd.f32 0.0, %v1354
  %v1356 = vpop.f32.mrb[0].mxu0
  %1357 = vmatprep.mubr.bf16.mxu0 0
  %1358 = vmatmul.mubr.bf16.gmra.mrb[0].mxu0 %v1170
  %v1359 = vpop.f32.mrb[0].mxu0
  %v1360 = vadd.f32 0.0, %v1359
  %v1361 = vpop.f32.mrb[0].mxu0
  %v1362 = vpop.f32.mrb[0].mxu0
  %v1363 = vadd.f32 0.0, %v1362
  %v1364 = vpop.f32.mrb[0].mxu0
  %1365 = vdwg.mxu0
  %v1366 = vmax.f32 %v258, %v580
  %v1367 = vmax.f32 %v261, %v583
  %v1368 = vmax.f32 %v266, %v588
  %v1369 = vmax.f32 %v269, %v591
  %v1370 = vmax.f32 %v274, %v596
  %v1371 = vmax.f32 %v277, %v599
  %v1372 = vmax.f32 %v282, %v604
  %v1373 = vmax.f32 %v285, %v607
  %v1374 = vmax.f32 %v290, %v612
  %v1375 = vmax.f32 %v293, %v615
  %v1376 = vmax.f32 %v298, %v620
  %v1377 = vmax.f32 %v301, %v623
  %v1378 = vmax.f32 %v306, %v628
  %v1379 = vmax.f32 %v309, %v631
  %v1380 = vmax.f32 %v314, %v636
  %v1381 = vmax.f32 %v317, %v639
  %v1382 = vmax.f32 %v322, %v644
  %v1383 = vmax.f32 %v325, %v647
  %v1384 = vmax.f32 %v330, %v652
  %v1385 = vmax.f32 %v333, %v655
  %v1386 = vmax.f32 %v338, %v660
  %v1387 = vmax.f32 %v341, %v663
  %v1388 = vmax.f32 %v346, %v668
  %v1389 = vmax.f32 %v349, %v671
  %v1390 = vmax.f32 %v354, %v676
  %v1391 = vmax.f32 %v357, %v679
  %v1392 = vmax.f32 %v362, %v684
  %v1393 = vmax.f32 %v365, %v687
  %v1394 = vmax.f32 %v370, %v692
  %v1395 = vmax.f32 %v373, %v695
  %v1396 = vmax.f32 %v378, %v700
  %v1397 = vmax.f32 %v381, %v703
  %v1398 = vmax.f32 %v386, %v708
  %v1399 = vmax.f32 %v389, %v711
  %v1400 = vmax.f32 %v394, %v716
  %v1401 = vmax.f32 %v397, %v719
  %v1402 = vmax.f32 %v902, %v1224
  %v1403 = vmax.f32 %v905, %v1227
  %v1404 = vmax.f32 %v910, %v1232
  %v1405 = vmax.f32 %v913, %v1235
  %v1406 = vmax.f32 %v918, %v1240
  %v1407 = vmax.f32 %v921, %v1243
  %v1408 = vmax.f32 %v926, %v1248
  %v1409 = vmax.f32 %v929, %v1251
  %v1410 = vmax.f32 %v934, %v1256
  %v1411 = vmax.f32 %v937, %v1259
  %v1412 = vmax.f32 %v942, %v1264
  %v1413 = vmax.f32 %v945, %v1267
  %v1414 = vmax.f32 %v950, %v1272
  %v1415 = vmax.f32 %v953, %v1275
  %v1416 = vmax.f32 %v958, %v1280
  %v1417 = vmax.f32 %v961, %v1283
  %v1418 = vmax.f32 %v966, %v1288
  %v1419 = vmax.f32 %v969, %v1291
  %v1420 = vmax.f32 %v974, %v1296
  %v1421 = vmax.f32 %v977, %v1299
  %v1422 = vmax.f32 %v982, %v1304
  %v1423 = vmax.f32 %v985, %v1307
  %v1424 = vmax.f32 %v990, %v1312
  %v1425 = vmax.f32 %v993, %v1315
  %v1426 = vmax.f32 %v998, %v1320
  %v1427 = vmax.f32 %v1001, %v1323
  %v1428 = vmax.f32 %v1006, %v1328
  %v1429 = vmax.f32 %v1009, %v1331
  %v1430 = vmax.f32 %v1014, %v1336
  %v1431 = vmax.f32 %v1017, %v1339
  %v1432 = vmax.f32 %v1022, %v1344
  %v1433 = vmax.f32 %v1025, %v1347
  %v1434 = vmax.f32 %v1030, %v1352
  %v1435 = vmax.f32 %v1033, %v1355
  %v1436 = vmax.f32 %v1038, %v1360
  %v1437 = vmax.f32 %v1041, %v1363
  %v1438 = vmax.f32 %v1366, %v1402
  %v1439 = vmax.f32 %v1367, %v1403
  %v1440 = vmax.f32 %v1368, %v1404
  %v1441 = vmax.f32 %v1369, %v1405
  %v1442 = vmax.f32 %v1370, %v1406
  %v1443 = vmax.f32 %v1371, %v1407
  %v1444 = vmax.f32 %v1372, %v1408
  %v1445 = vmax.f32 %v1373, %v1409
  %v1446 = vmax.f32 %v1374, %v1410
  %v1447 = vmax.f32 %v1375, %v1411
  %v1448 = vmax.f32 %v1376, %v1412
  %v1449 = vmax.f32 %v1377, %v1413
  %v1450 = vmax.f32 %v1378, %v1414
  %v1451 = vmax.f32 %v1379, %v1415
  %v1452 = vmax.f32 %v1380, %v1416
  %v1453 = vmax.f32 %v1381, %v1417
  %v1454 = vmax.f32 %v1382, %v1418
  %v1455 = vmax.f32 %v1383, %v1419
  %v1456 = vmax.f32 %v1384, %v1420
  %v1457 = vmax.f32 %v1385, %v1421
  %v1458 = vmax.f32 %v1386, %v1422
  %v1459 = vmax.f32 %v1387, %v1423
  %v1460 = vmax.f32 %v1388, %v1424
  %v1461 = vmax.f32 %v1389, %v1425
  %v1462 = vmax.f32 %v1390, %v1426
  %v1463 = vmax.f32 %v1391, %v1427
  %v1464 = vmax.f32 %v1392, %v1428
  %v1465 = vmax.f32 %v1393, %v1429
  %v1466 = vmax.f32 %v1394, %v1430
  %v1467 = vmax.f32 %v1395, %v1431
  %v1468 = vmax.f32 %v1396, %v1432
  %v1469 = vmax.f32 %v1397, %v1433
  %v1470 = vmax.f32 %v1398, %v1434
  %v1471 = vmax.f32 %v1399, %v1435
  %v1472 = vmax.f32 %v1400, %v1436
  %v1473 = vmax.f32 %v1401, %v1437
  %v1474 = vld [vmem:[%s2] sm:$0x1]
  %v1476 = vlaneseq
  %v1477 = vshrl.u32 %v1476, 7
  %v1478 = vsub.s32 0, %v1477
  %v1479 = vrot.slane %v1474, %v1478
  %v1481 = vadd.f32 %v1438, %v1479
  %v1482 = vadd.f32 %v1439, %v1479
  %v1483 = vadd.f32 %v1440, %v1479
  %v1484 = vadd.f32 %v1441, %v1479
  %v1485 = vadd.f32 %v1442, %v1479
  %v1486 = vadd.f32 %v1443, %v1479
  %v1487 = vadd.f32 %v1444, %v1479
  %v1488 = vadd.f32 %v1445, %v1479
  %v1489 = vadd.f32 %v1446, %v1479
  %v1490 = vadd.f32 %v1447, %v1479
  %v1491 = vadd.f32 %v1448, %v1479
  %v1492 = vadd.f32 %v1449, %v1479
  %v1493 = vadd.f32 %v1450, %v1479
  %v1494 = vadd.f32 %v1451, %v1479
  %v1495 = vadd.f32 %v1452, %v1479
  %v1496 = vadd.f32 %v1453, %v1479
  %v1497 = vadd.f32 %v1454, %v1479
  %v1498 = vadd.f32 %v1455, %v1479
  %v1499 = vadd.f32 %v1456, %v1479
  %v1500 = vadd.f32 %v1457, %v1479
  %v1501 = vadd.f32 %v1458, %v1479
  %v1502 = vadd.f32 %v1459, %v1479
  %v1503 = vadd.f32 %v1460, %v1479
  %v1504 = vadd.f32 %v1461, %v1479
  %v1505 = vadd.f32 %v1462, %v1479
  %v1506 = vadd.f32 %v1463, %v1479
  %v1507 = vadd.f32 %v1464, %v1479
  %v1508 = vadd.f32 %v1465, %v1479
  %v1509 = vadd.f32 %v1466, %v1479
  %v1510 = vadd.f32 %v1467, %v1479
  %v1511 = vadd.f32 %v1468, %v1479
  %v1512 = vadd.f32 %v1469, %v1479
  %v1513 = vadd.f32 %v1470, %v1479
  %v1514 = vadd.f32 %v1471, %v1479
  %v1515 = vadd.f32 %v1472, %v1479
  %v1516 = vadd.f32 %v1473, %v1479
  %v1517 = vmax.f32 %v1481, 0.0
  %v1518 = vmax.f32 %v1482, 0.0
  %v1519 = vmax.f32 %v1483, 0.0
  %v1520 = vmax.f32 %v1484, 0.0
  %v1521 = vmax.f32 %v1485, 0.0
  %v1522 = vmax.f32 %v1486, 0.0
  %v1523 = vmax.f32 %v1487, 0.0
  %v1524 = vmax.f32 %v1488, 0.0
  %v1525 = vmax.f32 %v1489, 0.0
  %v1526 = vmax.f32 %v1490, 0.0
  %v1527 = vmax.f32 %v1491, 0.0
  %v1528 = vmax.f32 %v1492, 0.0
  %v1529 = vmax.f32 %v1493, 0.0
  %v1530 = vmax.f32 %v1494, 0.0
  %v1531 = vmax.f32 %v1495, 0.0
  %v1532 = vmax.f32 %v1496, 0.0
  %v1533 = vmax.f32 %v1497, 0.0
  %v1534 = vmax.f32 %v1498, 0.0
  %v1535 = vmax.f32 %v1499, 0.0
  %v1536 = vmax.f32 %v1500, 0.0
  %v1537 = vmax.f32 %v1501, 0.0
  %v1538 = vmax.f32 %v1502, 0.0
  %v1539 = vmax.f32 %v1503, 0.0
  %v1540 = vmax.f32 %v1504, 0.0
  %v1541 = vmax.f32 %v1505, 0.0
  %v1542 = vmax.f32 %v1506, 0.0
  %v1543 = vmax.f32 %v1507, 0.0
  %v1544 = vmax.f32 %v1508, 0.0
  %v1545 = vmax.f32 %v1509, 0.0
  %v1546 = vmax.f32 %v1510, 0.0
  %v1547 = vmax.f32 %v1511, 0.0
  %v1548 = vmax.f32 %v1512, 0.0
  %v1549 = vmax.f32 %v1513, 0.0
  %v1550 = vmax.f32 %v1514, 0.0
  %v1551 = vmax.f32 %v1515, 0.0
  %v1552 = vmax.f32 %v1516, 0.0
  %1553 = vst [vmem:[%s3] sm:$0xff] %v1517
  %1554 = vst [vmem:[%s3 + $0x8] sm:$0xff] %v1518
  %1555 = vst [vmem:[%s3 + $0x10] sm:$0xff] %v1519
  %1556 = vst [vmem:[%s3 + $0x18] sm:$0xff] %v1520
  %1557 = vst [vmem:[%s3 + $0x20] sm:$0xff] %v1521
  %1558 = vst [vmem:[%s3 + $0x28] sm:$0xff] %v1522
  %1559 = vst [vmem:[%s3 + $0x30] sm:$0xff] %v1523
  %1560 = vst [vmem:[%s3 + $0x38] sm:$0xff] %v1524
  %1561 = vst [vmem:[%s3 + $0x40] sm:$0xff] %v1525
  %1562 = vst [vmem:[%s3 + $0x48] sm:$0xff] %v1526
  %1563 = vst [vmem:[%s3 + $0x50] sm:$0xff] %v1527
  %1564 = vst [vmem:[%s3 + $0x58] sm:$0xff] %v1528
  %1565 = vst [vmem:[%s3 + $0x60] sm:$0xff] %v1529
  %1566 = vst [vmem:[%s3 + $0x68] sm:$0xff] %v1530
  %1567 = vst [vmem:[%s3 + $0x70] sm:$0xff] %v1531
  %1568 = vst [vmem:[%s3 + $0x78] sm:$0xff] %v1532
  %1569 = vst [vmem:[%s3 + $0x80] sm:$0xff] %v1533
  %1570 = vst [vmem:[%s3 + $0x88] sm:$0xff] %v1534
  %1571 = vst [vmem:[%s3 + $0x90] sm:$0xff] %v1535
  %1572 = vst [vmem:[%s3 + $0x98] sm:$0xff] %v1536
  %1573 = vst [vmem:[%s3 + $0xa0] sm:$0xff] %v1537
  %1574 = vst [vmem:[%s3 + $0xa8] sm:$0xff] %v1538
  %1575 = vst [vmem:[%s3 + $0xb0] sm:$0xff] %v1539
  %1576 = vst [vmem:[%s3 + $0xb8] sm:$0xff] %v1540
  %1577 = vst [vmem:[%s3 + $0xc0] sm:$0xff] %v1541
  %1578 = vst [vmem:[%s3 + $0xc8] sm:$0xff] %v1542
  %1579 = vst [vmem:[%s3 + $0xd0] sm:$0xff] %v1543
  %1580 = vst [vmem:[%s3 + $0xd8] sm:$0xff] %v1544
  %1581 = vst [vmem:[%s3 + $0xe0] sm:$0xff] %v1545
  %1582 = vst [vmem:[%s3 + $0xe8] sm:$0xff] %v1546
  %1583 = vst [vmem:[%s3 + $0xf0] sm:$0xff] %v1547
  %1584 = vst [vmem:[%s3 + $0xf8] sm:$0xff] %v1548
  %1585 = vst [vmem:[%s3 + $0x100] sm:$0xff] %v1549
  %1586 = vst [vmem:[%s3 + $0x108] sm:$0xff] %v1550
  %1587 = vst [vmem:[%s3 + $0x110] sm:$0xff] %v1551
  %1588 = vst [vmem:[%s3 + $0x118] sm:$0xff] %v1552
  // Predicated region
  $region14: #{net_forward.3} parent=0 // pred_check
    _
  $region15: #{net_forward.3} parent=0 // pred_check_branch
    %1590 = sbr.rel (0) target = $region17
  $region16: #{net_forward.3} parent=0 // pred_region
    _
  $region17: #{net_forward.3} parent=0 // pred_fallthru
    _
  // Predicated region
  $region18: #{net_forward.3} parent=0 // pred_check
    _
  $region19: #{net_forward.3} parent=0 // pred_check_branch
    %1592 = sbr.rel (0) target = $region21
  $region20: #{net_forward.3} parent=0 // pred_region
    _
  $region21: #{net_forward.3} parent=0 // pred_fallthru
    _

// kernel: net_forward.4
$region0: #{net_forward.4}
  #allocation0 [shape = 'u32[]', space=smem, size = 0x4, offset = 0x4, fixed_abs, tag = 'smem constant byte address 0x4 - core index']
  #allocation1 [shape = 'u32[144,128]{1,0:T(1,128)}', space=vmem, size = 0x12000, scoped, tag = 'internal scratch']
  %s0 = inlined_call_operand.vmem [shape: bf16[4,32,256], index: 0, kind: input, shape index: {}]
  %s1 = inlined_call_operand.vmem [shape: bf16[256,128], index: 1, kind: input, shape index: {}]
  %s2 = inlined_call_operand.vmem [shape: f32[1,128], index: 2, kind: input, shape index: {}]
  %s3 = inlined_call_operand.vmem [shape: f32[32,128], index: 3, kind: output, shape index: {}]
  %s4 = sld [smem:[#allocation0]]
  $region22: #{net_forward.4} parent=0
    _
  %s6 = ssub.s32 1, %s4
  %s7 = scalar_select 0, %s6, %s4
  // Predicated region
  $region2: #{net_forward.4} parent=0 // pred_check
    _
  $region3: #{net_forward.4} parent=0 // pred_check_branch
    %9 = sbr.rel (0) target = $region5
  $region4: #{net_forward.4} parent=0 // pred_region
    _
  $region5: #{net_forward.4} parent=0 // pred_fallthru
    _
  // Predicated region
  $region6: #{net_forward.4} parent=0 // pred_check
    _
  $region7: #{net_forward.4} parent=0 // pred_check_branch
    %11 = sbr.rel (0) target = $region9
  $region8: #{net_forward.4} parent=0 // pred_region
    _
  $region9: #{net_forward.4} parent=0 // pred_fallthru
    _
  // Predicated region
  $region10: #{net_forward.4} parent=0 // pred_check
    _
  $region11: #{net_forward.4} parent=0 // pred_check_branch
    %13 = sbr.rel (0) target = $region13
  $region12: #{net_forward.4} parent=0 // pred_region
    _
  $region13: #{net_forward.4} parent=0 // pred_fallthru
    _
  %v15 = vld [vmem:[%s1] sm:$0xf]
  %v16 = vld [vmem:[%s1 + $0x4] sm:$0xf]
  %v17 = vld [vmem:[%s1 + $0x8] sm:$0xf]
  %v18 = vld [vmem:[%s1 + $0xc] sm:$0xf]
  %v19 = vld [vmem:[%s1 + $0x10] sm:$0xf]
  %v20 = vld [vmem:[%s1 + $0x14] sm:$0xf]
  %v21 = vld [vmem:[%s1 + $0x18] sm:$0xf]
  %v22 = vld [vmem:[%s1 + $0x1c] sm:$0xf]
  %v23 = vld [vmem:[%s1 + $0x20] sm:$0xf]
  %v24 = vld [vmem:[%s1 + $0x24] sm:$0xf]
  %v25 = vld [vmem:[%s1 + $0x28] sm:$0xf]
  %v26 = vld [vmem:[%s1 + $0x2c] sm:$0xf]
  %v27 = vld [vmem:[%s1 + $0x30] sm:$0xf]
  %v28 = vld [vmem:[%s1 + $0x34] sm:$0xf]
  %v29 = vld [vmem:[%s1 + $0x38] sm:$0xf]
  %v30 = vld [vmem:[%s1 + $0x3c] sm:$0xf]
  %v31 = vld [vmem:[%s1 + $0x40] sm:$0xf]
  %v32 = vld [vmem:[%s1 + $0x44] sm:$0xf]
  %v33 = vld [vmem:[%s1 + $0x48] sm:$0xf]
  %v34 = vld [vmem:[%s1 + $0x4c] sm:$0xf]
  %v35 = vld [vmem:[%s1 + $0x50] sm:$0xf]
  %v36 = vld [vmem:[%s1 + $0x54] sm:$0xf]
  %v37 = vld [vmem:[%s1 + $0x58] sm:$0xf]
  %v38 = vld [vmem:[%s1 + $0x5c] sm:$0xf]
  %v39 = vld [vmem:[%s1 + $0x60] sm:$0xf]
  %v40 = vld [vmem:[%s1 + $0x64] sm:$0xf]
  %v41 = vld [vmem:[%s1 + $0x68] sm:$0xf]
  %v42 = vld [vmem:[%s1 + $0x6c] sm:$0xf]
  %v43 = vld [vmem:[%s1 + $0x70] sm:$0xf]
  %v44 = vld [vmem:[%s1 + $0x74] sm:$0xf]
  %v45 = vld [vmem:[%s1 + $0x78] sm:$0xf]
  %v46 = vld [vmem:[%s1 + $0x7c] sm:$0xf]
  %v47 = vld [vmem:[%s0] sm:$0xff]
  %v48 = vld [vmem:[%s0 + $0x8] sm:$0xff]
  %v49 = vld [vmem:[%s0 + $0x10] sm:$0xff]
  %v50 = vld [vmem:[%s0 + $0x18] sm:$0xff]
  %v55 = vunpack.c.l.b16 %v47
  %v56 = vunpack.c.h.b16 %v47
  %v57 = vunpack.c.l.b16 %v48
  %v58 = vunpack.c.h.b16 %v48
  %v59 = vunpack.c.l.b16 %v49
  %v60 = vunpack.c.h.b16 %v49
  %v61 = vunpack.c.l.b16 %v50
  %v62 = vunpack.c.h.b16 %v50
  %v63 = vpack.c.b16 %v57, %v55
  %v64 = vpack.c.b16 %v58, %v56
  %v65 = vpack.c.b16 %v61, %v59
  %v66 = vpack.c.b16 %v62, %v60
  %v103 = vunpack.c.l.b16 %v15
  %v104 = vunpack.c.l.b16 %v16
  %v105 = vunpack.c.l.b16 %v17
  %v106 = vunpack.c.l.b16 %v18
  %v107 = vunpack.c.l.b16 %v19
  %v108 = vunpack.c.l.b16 %v20
  %v109 = vunpack.c.l.b16 %v21
  %v110 = vunpack.c.l.b16 %v22
  %v111 = vunpack.c.l.b16 %v23
  %v112 = vunpack.c.l.b16 %v24
  %v113 = vunpack.c.l.b16 %v25
  %v114 = vunpack.c.l.b16 %v26
  %v115 = vunpack.c.l.b16 %v27
  %v116 = vunpack.c.l.b16 %v28
  %v117 = vunpack.c.l.b16 %v29
  %v118 = vunpack.c.l.b16 %v30
  %v119 = vunpack.c.l.b16 %v31
  %v120 = vunpack.c.l.b16 %v32
  %v121 = vunpack.c.l.b16 %v33
  %v122 = vunpack.c.l.b16 %v34
  %v123 = vunpack.c.l.b16 %v35
  %v124 = vunpack.c.l.b16 %v36
  %v125 = vunpack.c.l.b16 %v37
  %v126 = vunpack.c.l.b16 %v38
  %v127 = vunpack.c.l.b16 %v39
  %v128 = vunpack.c.l.b16 %v40
  %v129 = vunpack.c.l.b16 %v41
  %v130 = vunpack.c.l.b16 %v42
  %v131 = vunpack.c.l.b16 %v43
  %v132 = vunpack.c.l.b16 %v44
  %v133 = vunpack.c.l.b16 %v45
  %v134 = vunpack.c.l.b16 %v46
  %v135 = vpack.c.b16 %v104, %v103
  %v136 = vpack.c.b16 %v106, %v105
  %v137 = vpack.c.b16 %v108, %v107
  %v138 = vpack.c.b16 %v110, %v109
  %v139 = vpack.c.b16 %v112, %v111
  %v140 = vpack.c.b16 %v114, %v113
  %v141 = vpack.c.b16 %v116, %v115
  %v142 = vpack.c.b16 %v118, %v117
  %v143 = vpack.c.b16 %v120, %v119
  %v144 = vpack.c.b16 %v122, %v121
  %v145 = vpack.c.b16 %v124, %v123
  %v146 = vpack.c.b16 %v126, %v125
  %v147 = vpack.c.b16 %v128, %v127
  %v148 = vpack.c.b16 %v130, %v129
  %v149 = vpack.c.b16 %v132, %v131
  %v150 = vpack.c.b16 %v134, %v133
  %167 = vmatprep.subr.bf16.mxu0 0
  %168 = vmatpush1.bf16.msra.mxu0 %v135
  %169 = vmatprep.subr.bf16.mxu0 0
  %170 = vmatpush1.bf16.msra.mxu0 %v136
  %171 = vmatprep.subr.bf16.mxu0 0
  %172 = vmatpush1.bf16.msra.mxu0 %v137
  %173 = vmatprep.subr.bf16.mxu0 0
  %174 = vmatpush1.bf16.msra.mxu0 %v138
  %175 = vmatprep.subr.bf16.mxu0 0
  %176 = vmatpush1.bf16.msra.mxu0 %v139
  %177 = vmatprep.subr.bf16.mxu0 0
  %178 = vmatpush1.bf16.msra.mxu0 %v140
  %179 = vmatprep.subr.bf16.mxu0 0
  %180 = vmatpush1.bf16.msra.mxu0 %v141
  %181 = vmatprep.subr.bf16.mxu0 0
  %182 = vmatpush1.bf16.msra.mxu0 %v142
  %183 = vmatprep.subr.bf16.mxu0 0
  %184 = vmatpush1.bf16.msra.mxu0 %v143
  %185 = vmatprep.subr.bf16.mxu0 0
  %186 = vmatpush1.bf16.msra.mxu0 %v144
  %187 = vmatprep.subr.bf16.mxu0 0
  %188 = vmatpush1.bf16.msra.mxu0 %v145
  %189 = vmatprep.subr.bf16.mxu0 0
  %190 = vmatpush1.bf16.msra.mxu0 %v146
  %191 = vmatprep.subr.bf16.mxu0 0
  %192 = vmatpush1.bf16.msra.mxu0 %v147
  %193 = vmatprep.subr.bf16.mxu0 0
  %194 = vmatpush1.bf16.msra.mxu0 %v148
  %195 = vmatprep.subr.bf16.mxu0 0
  %196 = vmatpush1.bf16.msra.mxu0 %v149
  %197 = vmatprep.subr.bf16.mxu0 0
  %198 = vmatpush1.bf16.msra.mxu0 %v150
  %199 = vmatprep.mubr.bf16.mxu0 %v64
  %200 = vmatmul.mubr.bf16.gmra.mrb[0].mxu0 %v63
  %v201 = vpop.f32.mrb[0].mxu0
  %v202 = vadd.f32 0.0, %v201
  %v203 = vpop.f32.mrb[0].mxu0
  %v204 = vpop.f32.mrb[0].mxu0
  %v205 = vadd.f32 0.0, %v204
  %v206 = vpop.f32.mrb[0].mxu0
  %207 = vmatprep.mubr.bf16.mxu0 %v66
  %208 = vmatmul.mubr.bf16.gmra.mrb[0].mxu0 %v65
  %v209 = vpop.f32.mrb[0].mxu0
  %v210 = vadd.f32 0.0, %v209
  %v211 = vpop.f32.mrb[0].mxu0
  %v212 = vpop.f32.mrb[0].mxu0
  %v213 = vadd.f32 0.0, %v212
  %v214 = vpop.f32.mrb[0].mxu0
  %215 = vdwg.mxu0
  %s216 = scalar_lea.vmem %s0, 32
  %v217 = vld [vmem:[%s216] sm:$0xff]
  %v218 = vld [vmem:[%s216 + $0x8] sm:$0xff]
  %v219 = vld [vmem:[%s216 + $0x10] sm:$0xff]
  %v220 = vld [vmem:[%s216 + $0x18] sm:$0xff]
  %v225 = vunpack.c.l.b16 %v217
  %v226 = vunpack.c.h.b16 %v217
  %v227 = vunpack.c.l.b16 %v218
  %v228 = vunpack.c.h.b16 %v218
  %v229 = vunpack.c.l.b16 %v219
  %v230 = vunpack.c.h.b16 %v219
  %v231 = vunpack.c.l.b16 %v220
  %v232 = vunpack.c.h.b16 %v220
  %v233 = vpack.c.b16 %v227, %v225
  %v234 = vpack.c.b16 %v228, %v226
  %v235 = vpack.c.b16 %v231, %v229
  %v236 = vpack.c.b16 %v232, %v230
  %241 = vmatprep.subr.bf16.mxu0 0
  %242 = vmatpush1.bf16.msra.mxu0 %v135
  %243 = vmatprep.subr.bf16.mxu0 0
  %244 = vmatpush1.bf16.msra.mxu0 %v136
  %245 = vmatprep.subr.bf16.mxu0 0
  %246 = vmatpush1.bf16.msra.mxu0 %v137
  %247 = vmatprep.subr.bf16.mxu0 0
  %248 = vmatpush1.bf16.msra.mxu0 %v138
  %249 = vmatprep.subr.bf16.mxu0 0
  %250 = vmatpush1.bf16.msra.mxu0 %v139
  %251 = vmatprep.subr.bf16.mxu0 0
  %252 = vmatpush1.bf16.msra.mxu0 %v140
  %253 = vmatprep.subr.bf16.mxu0 0
  %254 = vmatpush1.bf16.msra.mxu0 %v141
  %255 = vmatprep.subr.bf16.mxu0 0
  %256 = vmatpush1.bf16.msra.mxu0 %v142
  %257 = vmatprep.subr.bf16.mxu0 0
  %258 = vmatpush1.bf16.msra.mxu0 %v143
  %259 = vmatprep.subr.bf16.mxu0 0
  %260 = vmatpush1.bf16.msra.mxu0 %v144
  %261 = vmatprep.subr.bf16.mxu0 0
  %262 = vmatpush1.bf16.msra.mxu0 %v145
  %263 = vmatprep.subr.bf16.mxu0 0
  %264 = vmatpush1.bf16.msra.mxu0 %v146
  %265 = vmatprep.subr.bf16.mxu0 0
  %266 = vmatpush1.bf16.msra.mxu0 %v147
  %267 = vmatprep.subr.bf16.mxu0 0
  %268 = vmatpush1.bf16.msra.mxu0 %v148
  %269 = vmatprep.subr.bf16.mxu0 0
  %270 = vmatpush1.bf16.msra.mxu0 %v149
  %271 = vmatprep.subr.bf16.mxu0 0
  %272 = vmatpush1.bf16.msra.mxu0 %v150
  %273 = vmatprep.mubr.bf16.mxu0 %v234
  %274 = vmatmul.mubr.bf16.gmra.mrb[0].mxu0 %v233
  %v275 = vpop.f32.mrb[0].mxu0
  %v276 = vadd.f32 0.0, %v275
  %v277 = vpop.f32.mrb[0].mxu0
  %v278 = vpop.f32.mrb[0].mxu0
  %v279 = vadd.f32 0.0, %v278
  %v280 = vpop.f32.mrb[0].mxu0
  %281 = vmatprep.mubr.bf16.mxu0 %v236
  %282 = vmatmul.mubr.bf16.gmra.mrb[0].mxu0 %v235
  %v283 = vpop.f32.mrb[0].mxu0
  %v284 = vadd.f32 0.0, %v283
  %v285 = vpop.f32.mrb[0].mxu0
  %v286 = vpop.f32.mrb[0].mxu0
  %v287 = vadd.f32 0.0, %v286
  %v288 = vpop.f32.mrb[0].mxu0
  %289 = vdwg.mxu0
  %s290 = scalar_lea.vmem %s0, 64
  %v291 = vld [vmem:[%s290] sm:$0xff]
  %v292 = vld [vmem:[%s290 + $0x8] sm:$0xff]
  %v293 = vld [vmem:[%s290 + $0x10] sm:$0xff]
  %v294 = vld [vmem:[%s290 + $0x18] sm:$0xff]
  %v299 = vunpack.c.l.b16 %v291
  %v300 = vunpack.c.h.b16 %v291
  %v301 = vunpack.c.l.b16 %v292
  %v302 = vunpack.c.h.b16 %v292
  %v303 = vunpack.c.l.b16 %v293
  %v304 = vunpack.c.h.b16 %v293
  %v305 = vunpack.c.l.b16 %v294
  %v306 = vunpack.c.h.b16 %v294
  %v307 = vpack.c.b16 %v301, %v299
  %v308 = vpack.c.b16 %v302, %v300
  %v309 = vpack.c.b16 %v305, %v303
  %v310 = vpack.c.b16 %v306, %v304
  %315 = vmatprep.subr.bf16.mxu0 0
  %316 = vmatpush1.bf16.msra.mxu0 %v135
  %317 = vmatprep.subr.bf16.mxu0 0
  %318 = vmatpush1.bf16.msra.mxu0 %v136
  %319 = vmatprep.subr.bf16.mxu0 0
  %320 = vmatpush1.bf16.msra.mxu0 %v137
  %321 = vmatprep.subr.bf16.mxu0 0
  %322 = vmatpush1.bf16.msra.mxu0 %v138
  %323 = vmatprep.subr.bf16.mxu0 0
  %324 = vmatpush1.bf16.msra.mxu0 %v139
  %325 = vmatprep.subr.bf16.mxu0 0
  %326 = vmatpush1.bf16.msra.mxu0 %v140
  %327 = vmatprep.subr.bf16.mxu0 0
  %328 = vmatpush1.bf16.msra.mxu0 %v141
  %329 = vmatprep.subr.bf16.mxu0 0
  %330 = vmatpush1.bf16.msra.mxu0 %v142
  %331 = vmatprep.subr.bf16.mxu0 0
  %332 = vmatpush1.bf16.msra.mxu0 %v143
  %333 = vmatprep.subr.bf16.mxu0 0
  %334 = vmatpush1.bf16.msra.mxu0 %v144
  %335 = vmatprep.subr.bf16.mxu0 0
  %336 = vmatpush1.bf16.msra.mxu0 %v145
  %337 = vmatprep.subr.bf16.mxu0 0
  %338 = vmatpush1.bf16.msra.mxu0 %v146
  %339 = vmatprep.subr.bf16.mxu0 0
  %340 = vmatpush1.bf16.msra.mxu0 %v147
  %341 = vmatprep.subr.bf16.mxu0 0
  %342 = vmatpush1.bf16.msra.mxu0 %v148
  %343 = vmatprep.subr.bf16.mxu0 0
  %344 = vmatpush1.bf16.msra.mxu0 %v149
  %345 = vmatprep.subr.bf16.mxu0 0
  %346 = vmatpush1.bf16.msra.mxu0 %v150
  %347 = vmatprep.mubr.bf16.mxu0 %v308
  %348 = vmatmul.mubr.bf16.gmra.mrb[0].mxu0 %v307
  %v349 = vpop.f32.mrb[0].mxu0
  %v350 = vadd.f32 0.0, %v349
  %v351 = vpop.f32.mrb[0].mxu0
  %v352 = vpop.f32.mrb[0].mxu0
  %v353 = vadd.f32 0.0, %v352
  %v354 = vpop.f32.mrb[0].mxu0
  %355 = vmatprep.mubr.bf16.mxu0 %v310
  %356 = vmatmul.mubr.bf16.gmra.mrb[0].mxu0 %v309
  %v357 = vpop.f32.mrb[0].mxu0
  %v358 = vadd.f32 0.0, %v357
  %v359 = vpop.f32.mrb[0].mxu0
  %v360 = vpop.f32.mrb[0].mxu0
  %v361 = vadd.f32 0.0, %v360
  %v362 = vpop.f32.mrb[0].mxu0
  %363 = vdwg.mxu0
  %s364 = scalar_lea.vmem %s0, 96
  %v365 = vld [vmem:[%s364] sm:$0xff]
  %v366 = vld [vmem:[%s364 + $0x8] sm:$0xff]
  %v367 = vld [vmem:[%s364 + $0x10] sm:$0xff]
  %v368 = vld [vmem:[%s364 + $0x18] sm:$0xff]
  %v373 = vunpack.c.l.b16 %v365
  %v374 = vunpack.c.h.b16 %v365
  %v375 = vunpack.c.l.b16 %v366
  %v376 = vunpack.c.h.b16 %v366
  %v377 = vunpack.c.l.b16 %v367
  %v378 = vunpack.c.h.b16 %v367
  %v379 = vunpack.c.l.b16 %v368
  %v380 = vunpack.c.h.b16 %v368
  %v381 = vpack.c.b16 %v375, %v373
  %v382 = vpack.c.b16 %v376, %v374
  %v383 = vpack.c.b16 %v379, %v377
  %v384 = vpack.c.b16 %v380, %v378
  %389 = vmatprep.subr.bf16.mxu0 0
  %390 = vmatpush1.bf16.msra.mxu0 %v135
  %391 = vmatprep.subr.bf16.mxu0 0
  %392 = vmatpush1.bf16.msra.mxu0 %v136
  %393 = vmatprep.subr.bf16.mxu0 0
  %394 = vmatpush1.bf16.msra.mxu0 %v137
  %395 = vmatprep.subr.bf16.mxu0 0
  %396 = vmatpush1.bf16.msra.mxu0 %v138
  %397 = vmatprep.subr.bf16.mxu0 0
  %398 = vmatpush1.bf16.msra.mxu0 %v139
  %399 = vmatprep.subr.bf16.mxu0 0
  %400 = vmatpush1.bf16.msra.mxu0 %v140
  %401 = vmatprep.subr.bf16.mxu0 0
  %402 = vmatpush1.bf16.msra.mxu0 %v141
  %403 = vmatprep.subr.bf16.mxu0 0
  %404 = vmatpush1.bf16.msra.mxu0 %v142
  %405 = vmatprep.subr.bf16.mxu0 0
  %406 = vmatpush1.bf16.msra.mxu0 %v143
  %407 = vmatprep.subr.bf16.mxu0 0
  %408 = vmatpush1.bf16.msra.mxu0 %v144
  %409 = vmatprep.subr.bf16.mxu0 0
  %410 = vmatpush1.bf16.msra.mxu0 %v145
  %411 = vmatprep.subr.bf16.mxu0 0
  %412 = vmatpush1.bf16.msra.mxu0 %v146
  %413 = vmatprep.subr.bf16.mxu0 0
  %414 = vmatpush1.bf16.msra.mxu0 %v147
  %415 = vmatprep.subr.bf16.mxu0 0
  %416 = vmatpush1.bf16.msra.mxu0 %v148
  %417 = vmatprep.subr.bf16.mxu0 0
  %418 = vmatpush1.bf16.msra.mxu0 %v149
  %419 = vmatprep.subr.bf16.mxu0 0
  %420 = vmatpush1.bf16.msra.mxu0 %v150
  %421 = vmatprep.mubr.bf16.mxu0 %v382
  %422 = vmatmul.mubr.bf16.gmra.mrb[0].mxu0 %v381
  %v423 = vpop.f32.mrb[0].mxu0
  %v424 = vadd.f32 0.0, %v423
  %v425 = vpop.f32.mrb[0].mxu0
  %v426 = vpop.f32.mrb[0].mxu0
  %v427 = vadd.f32 0.0, %v426
  %v428 = vpop.f32.mrb[0].mxu0
  %429 = vmatprep.mubr.bf16.mxu0 %v384
  %430 = vmatmul.mubr.bf16.gmra.mrb[0].mxu0 %v383
  %v431 = vpop.f32.mrb[0].mxu0
  %v432 = vadd.f32 0.0, %v431
  %v433 = vpop.f32.mrb[0].mxu0
  %v434 = vpop.f32.mrb[0].mxu0
  %v435 = vadd.f32 0.0, %v434
  %v436 = vpop.f32.mrb[0].mxu0
  %437 = vdwg.mxu0
  %v438 = vmax.f32 %v202, %v276
  %v439 = vmax.f32 %v205, %v279
  %v440 = vmax.f32 %v210, %v284
  %v441 = vmax.f32 %v213, %v287
  %v442 = vmax.f32 %v350, %v424
  %v443 = vmax.f32 %v353, %v427
  %v444 = vmax.f32 %v358, %v432
  %v445 = vmax.f32 %v361, %v435
  %v446 = vmax.f32 %v438, %v442
  %v447 = vmax.f32 %v439, %v443
  %v448 = vmax.f32 %v440, %v444
  %v449 = vmax.f32 %v441, %v445
  %v450 = vld [vmem:[%s2] sm:$0x1]
  %v452 = vlaneseq
  %v453 = vshrl.u32 %v452, 7
  %v454 = vsub.s32 0, %v453
  %v455 = vrot.slane %v450, %v454
  %v457 = vadd.f32 %v446, %v455
  %v458 = vadd.f32 %v447, %v455
  %v459 = vadd.f32 %v448, %v455
  %v460 = vadd.f32 %v449, %v455
  %v461 = vmax.f32 %v457, 0.0
  %v462 = vmax.f32 %v458, 0.0
  %v463 = vmax.f32 %v459, 0.0
  %v464 = vmax.f32 %v460, 0.0
  %465 = vst [vmem:[%s3] sm:$0xff] %v461
  %466 = vst [vmem:[%s3 + $0x8] sm:$0xff] %v462
  %467 = vst [vmem:[%s3 + $0x10] sm:$0xff] %v463
  %468 = vst [vmem:[%s3 + $0x18] sm:$0xff] %v464
  // Predicated region
  $region14: #{net_forward.4} parent=0 // pred_check
    _
  $region15: #{net_forward.4} parent=0 // pred_check_branch
    %470 = sbr.rel (0) target = $region17
  $region16: #{net_forward.4} parent=0 // pred_region
    _
  $region17: #{net_forward.4} parent=0 // pred_fallthru
    _
  // Predicated region
  $region18: #{net_forward.4} parent=0 // pred_check
    _
  $region19: #{net_forward.4} parent=0 // pred_check_branch
    %472 = sbr.rel (0) target = $region21
  $region20: #{net_forward.4} parent=0 // pred_region
    _
  $region21: #{net_forward.4} parent=0 // pred_fallthru
    _

// kernel: net_forward.5
$region0: #{net_forward.5}
  #allocation0 [shape = 'u32[]', space=smem, size = 0x4, offset = 0x4, fixed_abs, tag = 'smem constant byte address 0x4 - core index']
  #allocation1 [shape = 'u32[144,128]{1,0:T(1,128)}', space=vmem, size = 0x12000, scoped, tag = 'internal scratch']
  %s0 = inlined_call_operand.vmem [shape: bf16[8,2048], index: 0, kind: input, shape index: {}]
  %s1 = inlined_call_operand.vmem [shape: bf16[2048,128], index: 1, kind: input, shape index: {}]
  %s2 = inlined_call_operand.vmem [shape: f32[1,128], index: 2, kind: input, shape index: {}]
  %s3 = inlined_call_operand.vmem [shape: f32[8,128], index: 3, kind: output, shape index: {}]
  %s4 = sld [smem:[#allocation0]]
  $region22: #{net_forward.5} parent=0
    _
  %s6 = ssub.s32 1, %s4
  %s7 = scalar_select 0, %s6, %s4
  // Predicated region
  $region2: #{net_forward.5} parent=0 // pred_check
    _
  $region3: #{net_forward.5} parent=0 // pred_check_branch
    %9 = sbr.rel (0) target = $region5
  $region4: #{net_forward.5} parent=0 // pred_region
    _
  $region5: #{net_forward.5} parent=0 // pred_fallthru
    _
  // Predicated region
  $region6: #{net_forward.5} parent=0 // pred_check
    _
  $region7: #{net_forward.5} parent=0 // pred_check_branch
    %11 = sbr.rel (0) target = $region9
  $region8: #{net_forward.5} parent=0 // pred_region
    _
  $region9: #{net_forward.5} parent=0 // pred_fallthru
    _
  // Predicated region
  $region10: #{net_forward.5} parent=0 // pred_check
    _
  $region11: #{net_forward.5} parent=0 // pred_check_branch
    %13 = sbr.rel (0) target = $region13
  $region12: #{net_forward.5} parent=0 // pred_region
    _
  $region13: #{net_forward.5} parent=0 // pred_fallthru
    _
  %v15 = vld [vmem:[%s0] sm:$0xff]
  %v16 = vld [vmem:[%s0 + $0x8] sm:$0xff]
  %v17 = vld [vmem:[%s0 + $0x10] sm:$0xff]
  %v18 = vld [vmem:[%s0 + $0x18] sm:$0xff]
  %v19 = vld [vmem:[%s0 + $0x20] sm:$0xff]
  %v20 = vld [vmem:[%s0 + $0x28] sm:$0xff]
  %v21 = vld [vmem:[%s0 + $0x30] sm:$0xff]
  %v22 = vld [vmem:[%s0 + $0x38] sm:$0xff]
  %v23 = vld [vmem:[%s1] sm:$0xf]
  %v24 = vld [vmem:[%s1 + $0x4] sm:$0xf]
  %v25 = vld [vmem:[%s1 + $0x8] sm:$0xf]
  %v26 = vld [vmem:[%s1 + $0xc] sm:$0xf]
  %v27 = vld [vmem:[%s1 + $0x10] sm:$0xf]
  %v28 = vld [vmem:[%s1 + $0x14] sm:$0xf]
  %v29 = vld [vmem:[%s1 + $0x18] sm:$0xf]
  %v30 = vld [vmem:[%s1 + $0x1c] sm:$0xf]
  %v31 = vld [vmem:[%s1 + $0x20] sm:$0xf]
  %v32 = vld [vmem:[%s1 + $0x24] sm:$0xf]
  %v33 = vld [vmem:[%s1 + $0x28] sm:$0xf]
  %v34 = vld [vmem:[%s1 + $0x2c] sm:$0xf]
  %v35 = vld [vmem:[%s1 + $0x30] sm:$0xf]
  %v36 = vld [vmem:[%s1 + $0x34] sm:$0xf]
  %v37 = vld [vmem:[%s1 + $0x38] sm:$0xf]
  %v38 = vld [vmem:[%s1 + $0x3c] sm:$0xf]
  %v39 = vld [vmem:[%s1 + $0x40] sm:$0xf]
  %v40 = vld [vmem:[%s1 + $0x44] sm:$0xf]
  %v41 = vld [vmem:[%s1 + $0x48] sm:$0xf]
  %v42 = vld [vmem:[%s1 + $0x4c] sm:$0xf]
  %v43 = vld [vmem:[%s1 + $0x50] sm:$0xf]
  %v44 = vld [vmem:[%s1 + $0x54] sm:$0xf]
  %v45 = vld [vmem:[%s1 + $0x58] sm:$0xf]
  %v46 = vld [vmem:[%s1 + $0x5c] sm:$0xf]
  %v47 = vld [vmem:[%s1 + $0x60] sm:$0xf]
  %v48 = vld [vmem:[%s1 + $0x64] sm:$0xf]
  %v49 = vld [vmem:[%s1 + $0x68] sm:$0xf]
  %v50 = vld [vmem:[%s1 + $0x6c] sm:$0xf]
  %v51 = vld [vmem:[%s1 + $0x70] sm:$0xf]
  %v52 = vld [vmem:[%s1 + $0x74] sm:$0xf]
  %v53 = vld [vmem:[%s1 + $0x78] sm:$0xf]
  %v54 = vld [vmem:[%s1 + $0x7c] sm:$0xf]
  %v55 = vld [vmem:[%s1 + $0x80] sm:$0xf]
  %v56 = vld [vmem:[%s1 + $0x84] sm:$0xf]
  %v57 = vld [vmem:[%s1 + $0x88] sm:$0xf]
  %v58 = vld [vmem:[%s1 + $0x8c] sm:$0xf]
  %v59 = vld [vmem:[%s1 + $0x90] sm:$0xf]
  %v60 = vld [vmem:[%s1 + $0x94] sm:$0xf]
  %v61 = vld [vmem:[%s1 + $0x98] sm:$0xf]
  %v62 = vld [vmem:[%s1 + $0x9c] sm:$0xf]
  %v63 = vld [vmem:[%s1 + $0xa0] sm:$0xf]
  %v64 = vld [vmem:[%s1 + $0xa4] sm:$0xf]
  %v65 = vld [vmem:[%s1 + $0xa8] sm:$0xf]
  %v66 = vld [vmem:[%s1 + $0xac] sm:$0xf]
  %v67 = vld [vmem:[%s1 + $0xb0] sm:$0xf]
  %v68 = vld [vmem:[%s1 + $0xb4] sm:$0xf]
  %v69 = vld [vmem:[%s1 + $0xb8] sm:$0xf]
  %v70 = vld [vmem:[%s1 + $0xbc] sm:$0xf]
  %v71 = vld [vmem:[%s1 + $0xc0] sm:$0xf]
  %v72 = vld [vmem:[%s1 + $0xc4] sm:$0xf]
  %v73 = vld [vmem:[%s1 + $0xc8] sm:$0xf]
  %v74 = vld [vmem:[%s1 + $0xcc] sm:$0xf]
  %v75 = vld [vmem:[%s1 + $0xd0] sm:$0xf]
  %v76 = vld [vmem:[%s1 + $0xd4] sm:$0xf]
  %v77 = vld [vmem:[%s1 + $0xd8] sm:$0xf]
  %v78 = vld [vmem:[%s1 + $0xdc] sm:$0xf]
  %v79 = vld [vmem:[%s1 + $0xe0] sm:$0xf]
  %v80 = vld [vmem:[%s1 + $0xe4] sm:$0xf]
  %v81 = vld [vmem:[%s1 + $0xe8] sm:$0xf]
  %v82 = vld [vmem:[%s1 + $0xec] sm:$0xf]
  %v83 = vld [vmem:[%s1 + $0xf0] sm:$0xf]
  %v84 = vld [vmem:[%s1 + $0xf4] sm:$0xf]
  %v85 = vld [vmem:[%s1 + $0xf8] sm:$0xf]
  %v86 = vld [vmem:[%s1 + $0xfc] sm:$0xf]
  %v87 = vld [vmem:[%s1 + $0x100] sm:$0xf]
  %v88 = vld [vmem:[%s1 + $0x104] sm:$0xf]
  %v89 = vld [vmem:[%s1 + $0x108] sm:$0xf]
  %v90 = vld [vmem:[%s1 + $0x10c] sm:$0xf]
  %v91 = vld [vmem:[%s1 + $0x110] sm:$0xf]
  %v92 = vld [vmem:[%s1 + $0x114] sm:$0xf]
  %v93 = vld [vmem:[%s1 + $0x118] sm:$0xf]
  %v94 = vld [vmem:[%s1 + $0x11c] sm:$0xf]
  %v95 = vld [vmem:[%s1 + $0x120] sm:$0xf]
  %v96 = vld [vmem:[%s1 + $0x124] sm:$0xf]
  %v97 = vld [vmem:[%s1 + $0x128] sm:$0xf]
  %v98 = vld [vmem:[%s1 + $0x12c] sm:$0xf]
  %v99 = vld [vmem:[%s1 + $0x130] sm:$0xf]
  %v100 = vld [vmem:[%s1 + $0x134] sm:$0xf]
  %v101 = vld [vmem:[%s1 + $0x138] sm:$0xf]
  %v102 = vld [vmem:[%s1 + $0x13c] sm:$0xf]
  %v103 = vld [vmem:[%s1 + $0x140] sm:$0xf]
  %v104 = vld [vmem:[%s1 + $0x144] sm:$0xf]
  %v105 = vld [vmem:[%s1 + $0x148] sm:$0xf]
  %v106 = vld [vmem:[%s1 + $0x14c] sm:$0xf]
  %v107 = vld [vmem:[%s1 + $0x150] sm:$0xf]
  %v108 = vld [vmem:[%s1 + $0x154] sm:$0xf]
  %v109 = vld [vmem:[%s1 + $0x158] sm:$0xf]
  %v110 = vld [vmem:[%s1 + $0x15c] sm:$0xf]
  %v111 = vld [vmem:[%s1 + $0x160] sm:$0xf]
  %v112 = vld [vmem:[%s1 + $0x164] sm:$0xf]
  %v113 = vld [vmem:[%s1 + $0x168] sm:$0xf]
  %v114 = vld [vmem:[%s1 + $0x16c] sm:$0xf]
  %v115 = vld [vmem:[%s1 + $0x170] sm:$0xf]
  %v116 = vld [vmem:[%s1 + $0x174] sm:$0xf]
  %v117 = vld [vmem:[%s1 + $0x178] sm:$0xf]
  %v118 = vld [vmem:[%s1 + $0x17c] sm:$0xf]
  %v119 = vld [vmem:[%s1 + $0x180] sm:$0xf]
  %v120 = vld [vmem:[%s1 + $0x184] sm:$0xf]
  %v121 = vld [vmem:[%s1 + $0x188] sm:$0xf]
  %v122 = vld [vmem:[%s1 + $0x18c] sm:$0xf]
  %v123 = vld [vmem:[%s1 + $0x190] sm:$0xf]
  %v124 = vld [vmem:[%s1 + $0x194] sm:$0xf]
  %v125 = vld [vmem:[%s1 + $0x198] sm:$0xf]
  %v126 = vld [vmem:[%s1 + $0x19c] sm:$0xf]
  %v127 = vld [vmem:[%s1 + $0x1a0] sm:$0xf]
  %v128 = vld [vmem:[%s1 + $0x1a4] sm:$0xf]
  %v129 = vld [vmem:[%s1 + $0x1a8] sm:$0xf]
  %v130 = vld [vmem:[%s1 + $0x1ac] sm:$0xf]
  %v131 = vld [vmem:[%s1 + $0x1b0] sm:$0xf]
  %v132 = vld [vmem:[%s1 + $0x1b4] sm:$0xf]
  %v133 = vld [vmem:[%s1 + $0x1b8] sm:$0xf]
  %v134 = vld [vmem:[%s1 + $0x1bc] sm:$0xf]
  %v135 = vld [vmem:[%s1 + $0x1c0] sm:$0xf]
  %v136 = vld [vmem:[%s1 + $0x1c4] sm:$0xf]
  %v137 = vld [vmem:[%s1 + $0x1c8] sm:$0xf]
  %v138 = vld [vmem:[%s1 + $0x1cc] sm:$0xf]
  %v139 = vld [vmem:[%s1 + $0x1d0] sm:$0xf]
  %v140 = vld [vmem:[%s1 + $0x1d4] sm:$0xf]
  %v141 = vld [vmem:[%s1 + $0x1d8] sm:$0xf]
  %v142 = vld [vmem:[%s1 + $0x1dc] sm:$0xf]
  %v143 = vld [vmem:[%s1 + $0x1e0] sm:$0xf]
  %v144 = vld [vmem:[%s1 + $0x1e4] sm:$0xf]
  %v145 = vld [vmem:[%s1 + $0x1e8] sm:$0xf]
  %v146 = vld [vmem:[%s1 + $0x1ec] sm:$0xf]
  %v147 = vld [vmem:[%s1 + $0x1f0] sm:$0xf]
  %v148 = vld [vmem:[%s1 + $0x1f4] sm:$0xf]
  %v149 = vld [vmem:[%s1 + $0x1f8] sm:$0xf]
  %v150 = vld [vmem:[%s1 + $0x1fc] sm:$0xf]
  %v151 = vld [vmem:[%s1 + $0x200] sm:$0xf]
  %v152 = vld [vmem:[%s1 + $0x204] sm:$0xf]
  %v153 = vld [vmem:[%s1 + $0x208] sm:$0xf]
  %v154 = vld [vmem:[%s1 + $0x20c] sm:$0xf]
  %v155 = vld [vmem:[%s1 + $0x210] sm:$0xf]
  %v156 = vld [vmem:[%s1 + $0x214] sm:$0xf]
  %v157 = vld [vmem:[%s1 + $0x218] sm:$0xf]
  %v158 = vld [vmem:[%s1 + $0x21c] sm:$0xf]
  %v159 = vld [vmem:[%s1 + $0x220] sm:$0xf]
  %v160 = vld [vmem:[%s1 + $0x224] sm:$0xf]
  %v161 = vld [vmem:[%s1 + $0x228] sm:$0xf]
  %v162 = vld [vmem:[%s1 + $0x22c] sm:$0xf]
  %v163 = vld [vmem:[%s1 + $0x230] sm:$0xf]
  %v164 = vld [vmem:[%s1 + $0x234] sm:$0xf]
  %v165 = vld [vmem:[%s1 + $0x238] sm:$0xf]
  %v166 = vld [vmem:[%s1 + $0x23c] sm:$0xf]
  %v167 = vld [vmem:[%s1 + $0x240] sm:$0xf]
  %v168 = vld [vmem:[%s1 + $0x244] sm:$0xf]
  %v169 = vld [vmem:[%s1 + $0x248] sm:$0xf]
  %v170 = vld [vmem:[%s1 + $0x24c] sm:$0xf]
  %v171 = vld [vmem:[%s1 + $0x250] sm:$0xf]
  %v172 = vld [vmem:[%s1 + $0x254] sm:$0xf]
  %v173 = vld [vmem:[%s1 + $0x258] sm:$0xf]
  %v174 = vld [vmem:[%s1 + $0x25c] sm:$0xf]
  %v175 = vld [vmem:[%s1 + $0x260] sm:$0xf]
  %v176 = vld [vmem:[%s1 + $0x264] sm:$0xf]
  %v177 = vld [vmem:[%s1 + $0x268] sm:$0xf]
  %v178 = vld [vmem:[%s1 + $0x26c] sm:$0xf]
  %v179 = vld [vmem:[%s1 + $0x270] sm:$0xf]
  %v180 = vld [vmem:[%s1 + $0x274] sm:$0xf]
  %v181 = vld [vmem:[%s1 + $0x278] sm:$0xf]
  %v182 = vld [vmem:[%s1 + $0x27c] sm:$0xf]
  %v183 = vld [vmem:[%s1 + $0x280] sm:$0xf]
  %v184 = vld [vmem:[%s1 + $0x284] sm:$0xf]
  %v185 = vld [vmem:[%s1 + $0x288] sm:$0xf]
  %v186 = vld [vmem:[%s1 + $0x28c] sm:$0xf]
  %v187 = vld [vmem:[%s1 + $0x290] sm:$0xf]
  %v188 = vld [vmem:[%s1 + $0x294] sm:$0xf]
  %v189 = vld [vmem:[%s1 + $0x298] sm:$0xf]
  %v190 = vld [vmem:[%s1 + $0x29c] sm:$0xf]
  %v191 = vld [vmem:[%s1 + $0x2a0] sm:$0xf]
  %v192 = vld [vmem:[%s1 + $0x2a4] sm:$0xf]
  %v193 = vld [vmem:[%s1 + $0x2a8] sm:$0xf]
  %v194 = vld [vmem:[%s1 + $0x2ac] sm:$0xf]
  %v195 = vld [vmem:[%s1 + $0x2b0] sm:$0xf]
  %v196 = vld [vmem:[%s1 + $0x2b4] sm:$0xf]
  %v197 = vld [vmem:[%s1 + $0x2b8] sm:$0xf]
  %v198 = vld [vmem:[%s1 + $0x2bc] sm:$0xf]
  %v199 = vld [vmem:[%s1 + $0x2c0] sm:$0xf]
  %v200 = vld [vmem:[%s1 + $0x2c4] sm:$0xf]
  %v201 = vld [vmem:[%s1 + $0x2c8] sm:$0xf]
  %v202 = vld [vmem:[%s1 + $0x2cc] sm:$0xf]
  %v203 = vld [vmem:[%s1 + $0x2d0] sm:$0xf]
  %v204 = vld [vmem:[%s1 + $0x2d4] sm:$0xf]
  %v205 = vld [vmem:[%s1 + $0x2d8] sm:$0xf]
  %v206 = vld [vmem:[%s1 + $0x2dc] sm:$0xf]
  %v207 = vld [vmem:[%s1 + $0x2e0] sm:$0xf]
  %v208 = vld [vmem:[%s1 + $0x2e4] sm:$0xf]
  %v209 = vld [vmem:[%s1 + $0x2e8] sm:$0xf]
  %v210 = vld [vmem:[%s1 + $0x2ec] sm:$0xf]
  %v211 = vld [vmem:[%s1 + $0x2f0] sm:$0xf]
  %v212 = vld [vmem:[%s1 + $0x2f4] sm:$0xf]
  %v213 = vld [vmem:[%s1 + $0x2f8] sm:$0xf]
  %v214 = vld [vmem:[%s1 + $0x2fc] sm:$0xf]
  %v215 = vld [vmem:[%s1 + $0x300] sm:$0xf]
  %v216 = vld [vmem:[%s1 + $0x304] sm:$0xf]
  %v217 = vld [vmem:[%s1 + $0x308] sm:$0xf]
  %v218 = vld [vmem:[%s1 + $0x30c] sm:$0xf]
  %v219 = vld [vmem:[%s1 + $0x310] sm:$0xf]
  %v220 = vld [vmem:[%s1 + $0x314] sm:$0xf]
  %v221 = vld [vmem:[%s1 + $0x318] sm:$0xf]
  %v222 = vld [vmem:[%s1 + $0x31c] sm:$0xf]
  %v223 = vld [vmem:[%s1 + $0x320] sm:$0xf]
  %v224 = vld [vmem:[%s1 + $0x324] sm:$0xf]
  %v225 = vld [vmem:[%s1 + $0x328] sm:$0xf]
  %v226 = vld [vmem:[%s1 + $0x32c] sm:$0xf]
  %v227 = vld [vmem:[%s1 + $0x330] sm:$0xf]
  %v228 = vld [vmem:[%s1 + $0x334] sm:$0xf]
  %v229 = vld [vmem:[%s1 + $0x338] sm:$0xf]
  %v230 = vld [vmem:[%s1 + $0x33c] sm:$0xf]
  %v231 = vld [vmem:[%s1 + $0x340] sm:$0xf]
  %v232 = vld [vmem:[%s1 + $0x344] sm:$0xf]
  %v233 = vld [vmem:[%s1 + $0x348] sm:$0xf]
  %v234 = vld [vmem:[%s1 + $0x34c] sm:$0xf]
  %v235 = vld [vmem:[%s1 + $0x350] sm:$0xf]
  %v236 = vld [vmem:[%s1 + $0x354] sm:$0xf]
  %v237 = vld [vmem:[%s1 + $0x358] sm:$0xf]
  %v238 = vld [vmem:[%s1 + $0x35c] sm:$0xf]
  %v239 = vld [vmem:[%s1 + $0x360] sm:$0xf]
  %v240 = vld [vmem:[%s1 + $0x364] sm:$0xf]
  %v241 = vld [vmem:[%s1 + $0x368] sm:$0xf]
  %v242 = vld [vmem:[%s1 + $0x36c] sm:$0xf]
  %v243 = vld [vmem:[%s1 + $0x370] sm:$0xf]
  %v244 = vld [vmem:[%s1 + $0x374] sm:$0xf]
  %v245 = vld [vmem:[%s1 + $0x378] sm:$0xf]
  %v246 = vld [vmem:[%s1 + $0x37c] sm:$0xf]
  %v247 = vld [vmem:[%s1 + $0x380] sm:$0xf]
  %v248 = vld [vmem:[%s1 + $0x384] sm:$0xf]
  %v249 = vld [vmem:[%s1 + $0x388] sm:$0xf]
  %v250 = vld [vmem:[%s1 + $0x38c] sm:$0xf]
  %v251 = vld [vmem:[%s1 + $0x390] sm:$0xf]
  %v252 = vld [vmem:[%s1 + $0x394] sm:$0xf]
  %v253 = vld [vmem:[%s1 + $0x398] sm:$0xf]
  %v254 = vld [vmem:[%s1 + $0x39c] sm:$0xf]
  %v255 = vld [vmem:[%s1 + $0x3a0] sm:$0xf]
  %v256 = vld [vmem:[%s1 + $0x3a4] sm:$0xf]
  %v257 = vld [vmem:[%s1 + $0x3a8] sm:$0xf]
  %v258 = vld [vmem:[%s1 + $0x3ac] sm:$0xf]
  %v259 = vld [vmem:[%s1 + $0x3b0] sm:$0xf]
  %v260 = vld [vmem:[%s1 + $0x3b4] sm:$0xf]
  %v261 = vld [vmem:[%s1 + $0x3b8] sm:$0xf]
  %v262 = vld [vmem:[%s1 + $0x3bc] sm:$0xf]
  %v263 = vld [vmem:[%s1 + $0x3c0] sm:$0xf]
  %v264 = vld [vmem:[%s1 + $0x3c4] sm:$0xf]
  %v265 = vld [vmem:[%s1 + $0x3c8] sm:$0xf]
  %v266 = vld [vmem:[%s1 + $0x3cc] sm:$0xf]
  %v267 = vld [vmem:[%s1 + $0x3d0] sm:$0xf]
  %v268 = vld [vmem:[%s1 + $0x3d4] sm:$0xf]
  %v269 = vld [vmem:[%s1 + $0x3d8] sm:$0xf]
  %v270 = vld [vmem:[%s1 + $0x3dc] sm:$0xf]
  %v271 = vld [vmem:[%s1 + $0x3e0] sm:$0xf]
  %v272 = vld [vmem:[%s1 + $0x3e4] sm:$0xf]
  %v273 = vld [vmem:[%s1 + $0x3e8] sm:$0xf]
  %v274 = vld [vmem:[%s1 + $0x3ec] sm:$0xf]
  %v275 = vld [vmem:[%s1 + $0x3f0] sm:$0xf]
  %v276 = vld [vmem:[%s1 + $0x3f4] sm:$0xf]
  %v277 = vld [vmem:[%s1 + $0x3f8] sm:$0xf]
  %v278 = vld [vmem:[%s1 + $0x3fc] sm:$0xf]
  %v279 = vld [vmem:[%s2] sm:$0x1]
  %v281 = vlaneseq
  %v282 = vshrl.u32 %v281, 7
  %v283 = vsub.s32 0, %v282
  %v284 = vrot.slane %v279, %v283
  %v294 = vunpack.c.l.b16 %v15
  %v295 = vunpack.c.h.b16 %v15
  %v296 = vunpack.c.l.b16 %v16
  %v297 = vunpack.c.h.b16 %v16
  %v298 = vunpack.c.l.b16 %v17
  %v299 = vunpack.c.h.b16 %v17
  %v300 = vunpack.c.l.b16 %v18
  %v301 = vunpack.c.h.b16 %v18
  %v302 = vunpack.c.l.b16 %v19
  %v303 = vunpack.c.h.b16 %v19
  %v304 = vunpack.c.l.b16 %v20
  %v305 = vunpack.c.h.b16 %v20
  %v306 = vunpack.c.l.b16 %v21
  %v307 = vunpack.c.h.b16 %v21
  %v308 = vunpack.c.l.b16 %v22
  %v309 = vunpack.c.h.b16 %v22
  %v310 = vpack.c.b16 %v294, %v294
  %v311 = vpack.c.b16 %v295, %v295
  %v312 = vpack.c.b16 %v296, %v296
  %v313 = vpack.c.b16 %v297, %v297
  %v314 = vpack.c.b16 %v298, %v298
  %v315 = vpack.c.b16 %v299, %v299
  %v316 = vpack.c.b16 %v300, %v300
  %v317 = vpack.c.b16 %v301, %v301
  %v318 = vpack.c.b16 %v302, %v302
  %v319 = vpack.c.b16 %v303, %v303
  %v320 = vpack.c.b16 %v304, %v304
  %v321 = vpack.c.b16 %v305, %v305
  %v322 = vpack.c.b16 %v306, %v306
  %v323 = vpack.c.b16 %v307, %v307
  %v324 = vpack.c.b16 %v308, %v308
  %v325 = vpack.c.b16 %v309, %v309
  %v598 = vunpack.c.l.b16 %v23
  %v599 = vunpack.c.l.b16 %v24
  %v600 = vunpack.c.l.b16 %v25
  %v601 = vunpack.c.l.b16 %v26
  %v602 = vunpack.c.l.b16 %v27
  %v603 = vunpack.c.l.b16 %v28
  %v604 = vunpack.c.l.b16 %v29
  %v605 = vunpack.c.l.b16 %v30
  %v606 = vunpack.c.l.b16 %v31
  %v607 = vunpack.c.l.b16 %v32
  %v608 = vunpack.c.l.b16 %v33
  %v609 = vunpack.c.l.b16 %v34
  %v610 = vunpack.c.l.b16 %v35
  %v611 = vunpack.c.l.b16 %v36
  %v612 = vunpack.c.l.b16 %v37
  %v613 = vunpack.c.l.b16 %v38
  %v614 = vunpack.c.l.b16 %v39
  %v615 = vunpack.c.l.b16 %v40
  %v616 = vunpack.c.l.b16 %v41
  %v617 = vunpack.c.l.b16 %v42
  %v618 = vunpack.c.l.b16 %v43
  %v619 = vunpack.c.l.b16 %v44
  %v620 = vunpack.c.l.b16 %v45
  %v621 = vunpack.c.l.b16 %v46
  %v622 = vunpack.c.l.b16 %v47
  %v623 = vunpack.c.l.b16 %v48
  %v624 = vunpack.c.l.b16 %v49
  %v625 = vunpack.c.l.b16 %v50
  %v626 = vunpack.c.l.b16 %v51
  %v627 = vunpack.c.l.b16 %v52
  %v628 = vunpack.c.l.b16 %v53
  %v629 = vunpack.c.l.b16 %v54
  %v630 = vunpack.c.l.b16 %v55
  %v631 = vunpack.c.l.b16 %v56
  %v632 = vunpack.c.l.b16 %v57
  %v633 = vunpack.c.l.b16 %v58
  %v634 = vunpack.c.l.b16 %v59
  %v635 = vunpack.c.l.b16 %v60
  %v636 = vunpack.c.l.b16 %v61
  %v637 = vunpack.c.l.b16 %v62
  %v638 = vunpack.c.l.b16 %v63
  %v639 = vunpack.c.l.b16 %v64
  %v640 = vunpack.c.l.b16 %v65
  %v641 = vunpack.c.l.b16 %v66
  %v642 = vunpack.c.l.b16 %v67
  %v643 = vunpack.c.l.b16 %v68
  %v644 = vunpack.c.l.b16 %v69
  %v645 = vunpack.c.l.b16 %v70
  %v646 = vunpack.c.l.b16 %v71
  %v647 = vunpack.c.l.b16 %v72
  %v648 = vunpack.c.l.b16 %v73
  %v649 = vunpack.c.l.b16 %v74
  %v650 = vunpack.c.l.b16 %v75
  %v651 = vunpack.c.l.b16 %v76
  %v652 = vunpack.c.l.b16 %v77
  %v653 = vunpack.c.l.b16 %v78
  %v654 = vunpack.c.l.b16 %v79
  %v655 = vunpack.c.l.b16 %v80
  %v656 = vunpack.c.l.b16 %v81
  %v657 = vunpack.c.l.b16 %v82
  %v658 = vunpack.c.l.b16 %v83
  %v659 = vunpack.c.l.b16 %v84
  %v660 = vunpack.c.l.b16 %v85
  %v661 = vunpack.c.l.b16 %v86
  %v662 = vunpack.c.l.b16 %v87
  %v663 = vunpack.c.l.b16 %v88
  %v664 = vunpack.c.l.b16 %v89
  %v665 = vunpack.c.l.b16 %v90
  %v666 = vunpack.c.l.b16 %v91
  %v667 = vunpack.c.l.b16 %v92
  %v668 = vunpack.c.l.b16 %v93
  %v669 = vunpack.c.l.b16 %v94
  %v670 = vunpack.c.l.b16 %v95
  %v671 = vunpack.c.l.b16 %v96
  %v672 = vunpack.c.l.b16 %v97
  %v673 = vunpack.c.l.b16 %v98
  %v674 = vunpack.c.l.b16 %v99
  %v675 = vunpack.c.l.b16 %v100
  %v676 = vunpack.c.l.b16 %v101
  %v677 = vunpack.c.l.b16 %v102
  %v678 = vunpack.c.l.b16 %v103
  %v679 = vunpack.c.l.b16 %v104
  %v680 = vunpack.c.l.b16 %v105
  %v681 = vunpack.c.l.b16 %v106
  %v682 = vunpack.c.l.b16 %v107
  %v683 = vunpack.c.l.b16 %v108
  %v684 = vunpack.c.l.b16 %v109
  %v685 = vunpack.c.l.b16 %v110
  %v686 = vunpack.c.l.b16 %v111
  %v687 = vunpack.c.l.b16 %v112
  %v688 = vunpack.c.l.b16 %v113
  %v689 = vunpack.c.l.b16 %v114
  %v690 = vunpack.c.l.b16 %v115
  %v691 = vunpack.c.l.b16 %v116
  %v692 = vunpack.c.l.b16 %v117
  %v693 = vunpack.c.l.b16 %v118
  %v694 = vunpack.c.l.b16 %v119
  %v695 = vunpack.c.l.b16 %v120
  %v696 = vunpack.c.l.b16 %v121
  %v697 = vunpack.c.l.b16 %v122
  %v698 = vunpack.c.l.b16 %v123
  %v699 = vunpack.c.l.b16 %v124
  %v700 = vunpack.c.l.b16 %v125
  %v701 = vunpack.c.l.b16 %v126
  %v702 = vunpack.c.l.b16 %v127
  %v703 = vunpack.c.l.b16 %v128
  %v704 = vunpack.c.l.b16 %v129
  %v705 = vunpack.c.l.b16 %v130
  %v706 = vunpack.c.l.b16 %v131
  %v707 = vunpack.c.l.b16 %v132
  %v708 = vunpack.c.l.b16 %v133
  %v709 = vunpack.c.l.b16 %v134
  %v710 = vunpack.c.l.b16 %v135
  %v711 = vunpack.c.l.b16 %v136
  %v712 = vunpack.c.l.b16 %v137
  %v713 = vunpack.c.l.b16 %v138
  %v714 = vunpack.c.l.b16 %v139
  %v715 = vunpack.c.l.b16 %v140
  %v716 = vunpack.c.l.b16 %v141
  %v717 = vunpack.c.l.b16 %v142
  %v718 = vunpack.c.l.b16 %v143
  %v719 = vunpack.c.l.b16 %v144
  %v720 = vunpack.c.l.b16 %v145
  %v721 = vunpack.c.l.b16 %v146
  %v722 = vunpack.c.l.b16 %v147
  %v723 = vunpack.c.l.b16 %v148
  %v724 = vunpack.c.l.b16 %v149
  %v725 = vunpack.c.l.b16 %v150
  %v726 = vunpack.c.l.b16 %v151
  %v727 = vunpack.c.l.b16 %v152
  %v728 = vunpack.c.l.b16 %v153
  %v729 = vunpack.c.l.b16 %v154
  %v730 = vunpack.c.l.b16 %v155
  %v731 = vunpack.c.l.b16 %v156
  %v732 = vunpack.c.l.b16 %v157
  %v733 = vunpack.c.l.b16 %v158
  %v734 = vunpack.c.l.b16 %v159
  %v735 = vunpack.c.l.b16 %v160
  %v736 = vunpack.c.l.b16 %v161
  %v737 = vunpack.c.l.b16 %v162
  %v738 = vunpack.c.l.b16 %v163
  %v739 = vunpack.c.l.b16 %v164
  %v740 = vunpack.c.l.b16 %v165
  %v741 = vunpack.c.l.b16 %v166
  %v742 = vunpack.c.l.b16 %v167
  %v743 = vunpack.c.l.b16 %v168
  %v744 = vunpack.c.l.b16 %v169
  %v745 = vunpack.c.l.b16 %v170
  %v746 = vunpack.c.l.b16 %v171
  %v747 = vunpack.c.l.b16 %v172
  %v748 = vunpack.c.l.b16 %v173
  %v749 = vunpack.c.l.b16 %v174
  %v750 = vunpack.c.l.b16 %v175
  %v751 = vunpack.c.l.b16 %v176
  %v752 = vunpack.c.l.b16 %v177
  %v753 = vunpack.c.l.b16 %v178
  %v754 = vunpack.c.l.b16 %v179
  %v755 = vunpack.c.l.b16 %v180
  %v756 = vunpack.c.l.b16 %v181
  %v757 = vunpack.c.l.b16 %v182
  %v758 = vunpack.c.l.b16 %v183
  %v759 = vunpack.c.l.b16 %v184
  %v760 = vunpack.c.l.b16 %v185
  %v761 = vunpack.c.l.b16 %v186
  %v762 = vunpack.c.l.b16 %v187
  %v763 = vunpack.c.l.b16 %v188
  %v764 = vunpack.c.l.b16 %v189
  %v765 = vunpack.c.l.b16 %v190
  %v766 = vunpack.c.l.b16 %v191
  %v767 = vunpack.c.l.b16 %v192
  %v768 = vunpack.c.l.b16 %v193
  %v769 = vunpack.c.l.b16 %v194
  %v770 = vunpack.c.l.b16 %v195
  %v771 = vunpack.c.l.b16 %v196
  %v772 = vunpack.c.l.b16 %v197
  %v773 = vunpack.c.l.b16 %v198
  %v774 = vunpack.c.l.b16 %v199
  %v775 = vunpack.c.l.b16 %v200
  %v776 = vunpack.c.l.b16 %v201
  %v777 = vunpack.c.l.b16 %v202
  %v778 = vunpack.c.l.b16 %v203
  %v779 = vunpack.c.l.b16 %v204
  %v780 = vunpack.c.l.b16 %v205
  %v781 = vunpack.c.l.b16 %v206
  %v782 = vunpack.c.l.b16 %v207
  %v783 = vunpack.c.l.b16 %v208
  %v784 = vunpack.c.l.b16 %v209
  %v785 = vunpack.c.l.b16 %v210
  %v786 = vunpack.c.l.b16 %v211
  %v787 = vunpack.c.l.b16 %v212
  %v788 = vunpack.c.l.b16 %v213
  %v789 = vunpack.c.l.b16 %v214
  %v790 = vunpack.c.l.b16 %v215
  %v791 = vunpack.c.l.b16 %v216
  %v792 = vunpack.c.l.b16 %v217
  %v793 = vunpack.c.l.b16 %v218
  %v794 = vunpack.c.l.b16 %v219
  %v795 = vunpack.c.l.b16 %v220
  %v796 = vunpack.c.l.b16 %v221
  %v797 = vunpack.c.l.b16 %v222
  %v798 = vunpack.c.l.b16 %v223
  %v799 = vunpack.c.l.b16 %v224
  %v800 = vunpack.c.l.b16 %v225
  %v801 = vunpack.c.l.b16 %v226
  %v802 = vunpack.c.l.b16 %v227
  %v803 = vunpack.c.l.b16 %v228
  %v804 = vunpack.c.l.b16 %v229
  %v805 = vunpack.c.l.b16 %v230
  %v806 = vunpack.c.l.b16 %v231
  %v807 = vunpack.c.l.b16 %v232
  %v808 = vunpack.c.l.b16 %v233
  %v809 = vunpack.c.l.b16 %v234
  %v810 = vunpack.c.l.b16 %v235
  %v811 = vunpack.c.l.b16 %v236
  %v812 = vunpack.c.l.b16 %v237
  %v813 = vunpack.c.l.b16 %v238
  %v814 = vunpack.c.l.b16 %v239
  %v815 = vunpack.c.l.b16 %v240
  %v816 = vunpack.c.l.b16 %v241
  %v817 = vunpack.c.l.b16 %v242
  %v818 = vunpack.c.l.b16 %v243
  %v819 = vunpack.c.l.b16 %v244
  %v820 = vunpack.c.l.b16 %v245
  %v821 = vunpack.c.l.b16 %v246
  %v822 = vunpack.c.l.b16 %v247
  %v823 = vunpack.c.l.b16 %v248
  %v824 = vunpack.c.l.b16 %v249
  %v825 = vunpack.c.l.b16 %v250
  %v826 = vunpack.c.l.b16 %v251
  %v827 = vunpack.c.l.b16 %v252
  %v828 = vunpack.c.l.b16 %v253
  %v829 = vunpack.c.l.b16 %v254
  %v830 = vunpack.c.l.b16 %v255
  %v831 = vunpack.c.l.b16 %v256
  %v832 = vunpack.c.l.b16 %v257
  %v833 = vunpack.c.l.b16 %v258
  %v834 = vunpack.c.l.b16 %v259
  %v835 = vunpack.c.l.b16 %v260
  %v836 = vunpack.c.l.b16 %v261
  %v837 = vunpack.c.l.b16 %v262
  %v838 = vunpack.c.l.b16 %v263
  %v839 = vunpack.c.l.b16 %v264
  %v840 = vunpack.c.l.b16 %v265
  %v841 = vunpack.c.l.b16 %v266
  %v842 = vunpack.c.l.b16 %v267
  %v843 = vunpack.c.l.b16 %v268
  %v844 = vunpack.c.l.b16 %v269
  %v845 = vunpack.c.l.b16 %v270
  %v846 = vunpack.c.l.b16 %v271
  %v847 = vunpack.c.l.b16 %v272
  %v848 = vunpack.c.l.b16 %v273
  %v849 = vunpack.c.l.b16 %v274
  %v850 = vunpack.c.l.b16 %v275
  %v851 = vunpack.c.l.b16 %v276
  %v852 = vunpack.c.l.b16 %v277
  %v853 = vunpack.c.l.b16 %v278
  %v854 = vpack.c.b16 %v599, %v598
  %v855 = vpack.c.b16 %v601, %v600
  %v856 = vpack.c.b16 %v603, %v602
  %v857 = vpack.c.b16 %v605, %v604
  %v858 = vpack.c.b16 %v607, %v606
  %v859 = vpack.c.b16 %v609, %v608
  %v860 = vpack.c.b16 %v611, %v610
  %v861 = vpack.c.b16 %v613, %v612
  %v862 = vpack.c.b16 %v615, %v614
  %v863 = vpack.c.b16 %v617, %v616
  %v864 = vpack.c.b16 %v619, %v618
  %v865 = vpack.c.b16 %v621, %v620
  %v866 = vpack.c.b16 %v623, %v622
  %v867 = vpack.c.b16 %v625, %v624
  %v868 = vpack.c.b16 %v627, %v626
  %v869 = vpack.c.b16 %v629, %v628
  %v870 = vpack.c.b16 %v631, %v630
  %v871 = vpack.c.b16 %v633, %v632
  %v872 = vpack.c.b16 %v635, %v634
  %v873 = vpack.c.b16 %v637, %v636
  %v874 = vpack.c.b16 %v639, %v638
  %v875 = vpack.c.b16 %v641, %v640
  %v876 = vpack.c.b16 %v643, %v642
  %v877 = vpack.c.b16 %v645, %v644
  %v878 = vpack.c.b16 %v647, %v646
  %v879 = vpack.c.b16 %v649, %v648
  %v880 = vpack.c.b16 %v651, %v650
  %v881 = vpack.c.b16 %v653, %v652
  %v882 = vpack.c.b16 %v655, %v654
  %v883 = vpack.c.b16 %v657, %v656
  %v884 = vpack.c.b16 %v659, %v658
  %v885 = vpack.c.b16 %v661, %v660
  %v886 = vpack.c.b16 %v663, %v662
  %v887 = vpack.c.b16 %v665, %v664
  %v888 = vpack.c.b16 %v667, %v666
  %v889 = vpack.c.b16 %v669, %v668
  %v890 = vpack.c.b16 %v671, %v670
  %v891 = vpack.c.b16 %v673, %v672
  %v892 = vpack.c.b16 %v675, %v674
  %v893 = vpack.c.b16 %v677, %v676
  %v894 = vpack.c.b16 %v679, %v678
  %v895 = vpack.c.b16 %v681, %v680
  %v896 = vpack.c.b16 %v683, %v682
  %v897 = vpack.c.b16 %v685, %v684
  %v898 = vpack.c.b16 %v687, %v686
  %v899 = vpack.c.b16 %v689, %v688
  %v900 = vpack.c.b16 %v691, %v690
  %v901 = vpack.c.b16 %v693, %v692
  %v902 = vpack.c.b16 %v695, %v694
  %v903 = vpack.c.b16 %v697, %v696
  %v904 = vpack.c.b16 %v699, %v698
  %v905 = vpack.c.b16 %v701, %v700
  %v906 = vpack.c.b16 %v703, %v702
  %v907 = vpack.c.b16 %v705, %v704
  %v908 = vpack.c.b16 %v707, %v706
  %v909 = vpack.c.b16 %v709, %v708
  %v910 = vpack.c.b16 %v711, %v710
  %v911 = vpack.c.b16 %v713, %v712
  %v912 = vpack.c.b16 %v715, %v714
  %v913 = vpack.c.b16 %v717, %v716
  %v914 = vpack.c.b16 %v719, %v718
  %v915 = vpack.c.b16 %v721, %v720
  %v916 = vpack.c.b16 %v723, %v722
  %v917 = vpack.c.b16 %v725, %v724
  %v918 = vpack.c.b16 %v727, %v726
  %v919 = vpack.c.b16 %v729, %v728
  %v920 = vpack.c.b16 %v731, %v730
  %v921 = vpack.c.b16 %v733, %v732
  %v922 = vpack.c.b16 %v735, %v734
  %v923 = vpack.c.b16 %v737, %v736
  %v924 = vpack.c.b16 %v739, %v738
  %v925 = vpack.c.b16 %v741, %v740
  %v926 = vpack.c.b16 %v743, %v742
  %v927 = vpack.c.b16 %v745, %v744
  %v928 = vpack.c.b16 %v747, %v746
  %v929 = vpack.c.b16 %v749, %v748
  %v930 = vpack.c.b16 %v751, %v750
  %v931 = vpack.c.b16 %v753, %v752
  %v932 = vpack.c.b16 %v755, %v754
  %v933 = vpack.c.b16 %v757, %v756
  %v934 = vpack.c.b16 %v759, %v758
  %v935 = vpack.c.b16 %v761, %v760
  %v936 = vpack.c.b16 %v763, %v762
  %v937 = vpack.c.b16 %v765, %v764
  %v938 = vpack.c.b16 %v767, %v766
  %v939 = vpack.c.b16 %v769, %v768
  %v940 = vpack.c.b16 %v771, %v770
  %v941 = vpack.c.b16 %v773, %v772
  %v942 = vpack.c.b16 %v775, %v774
  %v943 = vpack.c.b16 %v777, %v776
  %v944 = vpack.c.b16 %v779, %v778
  %v945 = vpack.c.b16 %v781, %v780
  %v946 = vpack.c.b16 %v783, %v782
  %v947 = vpack.c.b16 %v785, %v784
  %v948 = vpack.c.b16 %v787, %v786
  %v949 = vpack.c.b16 %v789, %v788
  %v950 = vpack.c.b16 %v791, %v790
  %v951 = vpack.c.b16 %v793, %v792
  %v952 = vpack.c.b16 %v795, %v794
  %v953 = vpack.c.b16 %v797, %v796
  %v954 = vpack.c.b16 %v799, %v798
  %v955 = vpack.c.b16 %v801, %v800
  %v956 = vpack.c.b16 %v803, %v802
  %v957 = vpack.c.b16 %v805, %v804
  %v958 = vpack.c.b16 %v807, %v806
  %v959 = vpack.c.b16 %v809, %v808
  %v960 = vpack.c.b16 %v811, %v810
  %v961 = vpack.c.b16 %v813, %v812
  %v962 = vpack.c.b16 %v815, %v814
  %v963 = vpack.c.b16 %v817, %v816
  %v964 = vpack.c.b16 %v819, %v818
  %v965 = vpack.c.b16 %v821, %v820
  %v966 = vpack.c.b16 %v823, %v822
  %v967 = vpack.c.b16 %v825, %v824
  %v968 = vpack.c.b16 %v827, %v826
  %v969 = vpack.c.b16 %v829, %v828
  %v970 = vpack.c.b16 %v831, %v830
  %v971 = vpack.c.b16 %v833, %v832
  %v972 = vpack.c.b16 %v835, %v834
  %v973 = vpack.c.b16 %v837, %v836
  %v974 = vpack.c.b16 %v839, %v838
  %v975 = vpack.c.b16 %v841, %v840
  %v976 = vpack.c.b16 %v843, %v842
  %v977 = vpack.c.b16 %v845, %v844
  %v978 = vpack.c.b16 %v847, %v846
  %v979 = vpack.c.b16 %v849, %v848
  %v980 = vpack.c.b16 %v851, %v850
  %v981 = vpack.c.b16 %v853, %v852
  %1110 = vmatprep.subr.bf16.mxu0 0
  %1111 = vmatpush1.bf16.msra.mxu0 %v854
  %1112 = vmatprep.subr.bf16.mxu0 0
  %1113 = vmatpush1.bf16.msra.mxu0 %v855
  %1114 = vmatprep.subr.bf16.mxu0 0
  %1115 = vmatpush1.bf16.msra.mxu0 %v856
  %1116 = vmatprep.subr.bf16.mxu0 0
  %1117 = vmatpush1.bf16.msra.mxu0 %v857
  %1118 = vmatprep.subr.bf16.mxu0 0
  %1119 = vmatpush1.bf16.msra.mxu0 %v858
  %1120 = vmatprep.subr.bf16.mxu0 0
  %1121 = vmatpush1.bf16.msra.mxu0 %v859
  %1122 = vmatprep.subr.bf16.mxu0 0
  %1123 = vmatpush1.bf16.msra.mxu0 %v860
  %1124 = vmatprep.subr.bf16.mxu0 0
  %1125 = vmatpush1.bf16.msra.mxu0 %v861
  %1126 = vmatprep.subr.bf16.mxu0 0
  %1127 = vmatpush1.bf16.msra.mxu0 %v862
  %1128 = vmatprep.subr.bf16.mxu0 0
  %1129 = vmatpush1.bf16.msra.mxu0 %v863
  %1130 = vmatprep.subr.bf16.mxu0 0
  %1131 = vmatpush1.bf16.msra.mxu0 %v864
  %1132 = vmatprep.subr.bf16.mxu0 0
  %1133 = vmatpush1.bf16.msra.mxu0 %v865
  %1134 = vmatprep.subr.bf16.mxu0 0
  %1135 = vmatpush1.bf16.msra.mxu0 %v866
  %1136 = vmatprep.subr.bf16.mxu0 0
  %1137 = vmatpush1.bf16.msra.mxu0 %v867
  %1138 = vmatprep.subr.bf16.mxu0 0
  %1139 = vmatpush1.bf16.msra.mxu0 %v868
  %1140 = vmatprep.subr.bf16.mxu0 0
  %1141 = vmatpush1.bf16.msra.mxu0 %v869
  %1142 = vmatprep.mubr.bf16.mxu0 %v311
  %1143 = vmatmul.mubr.bf16.gmra.mrb[0].mxu0 %v310
  %v1144 = vpop.f32.mrb[0].mxu0
  %v1145 = vadd.f32 %v284, %v1144
  %v1146 = vpop.f32.mrb[0].mxu0
  %v1147 = vpop.f32.mrb[0].mxu0
  %v1148 = vpop.f32.mrb[0].mxu0
  %1149 = vdwg.mxu0
  %1150 = vmatprep.subr.bf16.mxu0 0
  %1151 = vmatpush1.bf16.msra.mxu0 %v870
  %1152 = vmatprep.subr.bf16.mxu0 0
  %1153 = vmatpush1.bf16.msra.mxu0 %v871
  %1154 = vmatprep.subr.bf16.mxu0 0
  %1155 = vmatpush1.bf16.msra.mxu0 %v872
  %1156 = vmatprep.subr.bf16.mxu0 0
  %1157 = vmatpush1.bf16.msra.mxu0 %v873
  %1158 = vmatprep.subr.bf16.mxu0 0
  %1159 = vmatpush1.bf16.msra.mxu0 %v874
  %1160 = vmatprep.subr.bf16.mxu0 0
  %1161 = vmatpush1.bf16.msra.mxu0 %v875
  %1162 = vmatprep.subr.bf16.mxu0 0
  %1163 = vmatpush1.bf16.msra.mxu0 %v876
  %1164 = vmatprep.subr.bf16.mxu0 0
  %1165 = vmatpush1.bf16.msra.mxu0 %v877
  %1166 = vmatprep.subr.bf16.mxu0 0
  %1167 = vmatpush1.bf16.msra.mxu0 %v878
  %1168 = vmatprep.subr.bf16.mxu0 0
  %1169 = vmatpush1.bf16.msra.mxu0 %v879
  %1170 = vmatprep.subr.bf16.mxu0 0
  %1171 = vmatpush1.bf16.msra.mxu0 %v880
  %1172 = vmatprep.subr.bf16.mxu0 0
  %1173 = vmatpush1.bf16.msra.mxu0 %v881
  %1174 = vmatprep.subr.bf16.mxu0 0
  %1175 = vmatpush1.bf16.msra.mxu0 %v882
  %1176 = vmatprep.subr.bf16.mxu0 0
  %1177 = vmatpush1.bf16.msra.mxu0 %v883
  %1178 = vmatprep.subr.bf16.mxu0 0
  %1179 = vmatpush1.bf16.msra.mxu0 %v884
  %1180 = vmatprep.subr.bf16.mxu0 0
  %1181 = vmatpush1.bf16.msra.mxu0 %v885
  %1182 = vmatprep.mubr.bf16.mxu0 %v313
  %1183 = vmatmul.mubr.bf16.gmra.mrb[0].mxu0 %v312
  %v1184 = vpop.f32.mrb[0].mxu0
  %v1185 = vadd.f32 %v1145, %v1184
  %v1186 = vpop.f32.mrb[0].mxu0
  %v1187 = vpop.f32.mrb[0].mxu0
  %v1188 = vpop.f32.mrb[0].mxu0
  %1189 = vdwg.mxu0
  %1190 = vmatprep.subr.bf16.mxu0 0
  %1191 = vmatpush1.bf16.msra.mxu0 %v886
  %1192 = vmatprep.subr.bf16.mxu0 0
  %1193 = vmatpush1.bf16.msra.mxu0 %v887
  %1194 = vmatprep.subr.bf16.mxu0 0
  %1195 = vmatpush1.bf16.msra.mxu0 %v888
  %1196 = vmatprep.subr.bf16.mxu0 0
  %1197 = vmatpush1.bf16.msra.mxu0 %v889
  %1198 = vmatprep.subr.bf16.mxu0 0
  %1199 = vmatpush1.bf16.msra.mxu0 %v890
  %1200 = vmatprep.subr.bf16.mxu0 0
  %1201 = vmatpush1.bf16.msra.mxu0 %v891
  %1202 = vmatprep.subr.bf16.mxu0 0
  %1203 = vmatpush1.bf16.msra.mxu0 %v892
  %1204 = vmatprep.subr.bf16.mxu0 0
  %1205 = vmatpush1.bf16.msra.mxu0 %v893
  %1206 = vmatprep.subr.bf16.mxu0 0
  %1207 = vmatpush1.bf16.msra.mxu0 %v894
  %1208 = vmatprep.subr.bf16.mxu0 0
  %1209 = vmatpush1.bf16.msra.mxu0 %v895
  %1210 = vmatprep.subr.bf16.mxu0 0
  %1211 = vmatpush1.bf16.msra.mxu0 %v896
  %1212 = vmatprep.subr.bf16.mxu0 0
  %1213 = vmatpush1.bf16.msra.mxu0 %v897
  %1214 = vmatprep.subr.bf16.mxu0 0
  %1215 = vmatpush1.bf16.msra.mxu0 %v898
  %1216 = vmatprep.subr.bf16.mxu0 0
  %1217 = vmatpush1.bf16.msra.mxu0 %v899
  %1218 = vmatprep.subr.bf16.mxu0 0
  %1219 = vmatpush1.bf16.msra.mxu0 %v900
  %1220 = vmatprep.subr.bf16.mxu0 0
  %1221 = vmatpush1.bf16.msra.mxu0 %v901
  %1222 = vmatprep.mubr.bf16.mxu0 %v315
  %1223 = vmatmul.mubr.bf16.gmra.mrb[0].mxu0 %v314
  %v1224 = vpop.f32.mrb[0].mxu0
  %v1225 = vadd.f32 %v1185, %v1224
  %v1226 = vpop.f32.mrb[0].mxu0
  %v1227 = vpop.f32.mrb[0].mxu0
  %v1228 = vpop.f32.mrb[0].mxu0
  %1229 = vdwg.mxu0
  %1230 = vmatprep.subr.bf16.mxu0 0
  %1231 = vmatpush1.bf16.msra.mxu0 %v902
  %1232 = vmatprep.subr.bf16.mxu0 0
  %1233 = vmatpush1.bf16.msra.mxu0 %v903
  %1234 = vmatprep.subr.bf16.mxu0 0
  %1235 = vmatpush1.bf16.msra.mxu0 %v904
  %1236 = vmatprep.subr.bf16.mxu0 0
  %1237 = vmatpush1.bf16.msra.mxu0 %v905
  %1238 = vmatprep.subr.bf16.mxu0 0
  %1239 = vmatpush1.bf16.msra.mxu0 %v906
  %1240 = vmatprep.subr.bf16.mxu0 0
  %1241 = vmatpush1.bf16.msra.mxu0 %v907
  %1242 = vmatprep.subr.bf16.mxu0 0
  %1243 = vmatpush1.bf16.msra.mxu0 %v908
  %1244 = vmatprep.subr.bf16.mxu0 0
  %1245 = vmatpush1.bf16.msra.mxu0 %v909
  %1246 = vmatprep.subr.bf16.mxu0 0
  %1247 = vmatpush1.bf16.msra.mxu0 %v910
  %1248 = vmatprep.subr.bf16.mxu0 0
  %1249 = vmatpush1.bf16.msra.mxu0 %v911
  %1250 = vmatprep.subr.bf16.mxu0 0
  %1251 = vmatpush1.bf16.msra.mxu0 %v912
  %1252 = vmatprep.subr.bf16.mxu0 0
  %1253 = vmatpush1.bf16.msra.mxu0 %v913
  %1254 = vmatprep.subr.bf16.mxu0 0
  %1255 = vmatpush1.bf16.msra.mxu0 %v914
  %1256 = vmatprep.subr.bf16.mxu0 0
  %1257 = vmatpush1.bf16.msra.mxu0 %v915
  %1258 = vmatprep.subr.bf16.mxu0 0
  %1259 = vmatpush1.bf16.msra.mxu0 %v916
  %1260 = vmatprep.subr.bf16.mxu0 0
  %1261 = vmatpush1.bf16.msra.mxu0 %v917
  %1262 = vmatprep.mubr.bf16.mxu0 %v317
  %1263 = vmatmul.mubr.bf16.gmra.mrb[0].mxu0 %v316
  %v1264 = vpop.f32.mrb[0].mxu0
  %v1265 = vadd.f32 %v1225, %v1264
  %v1266 = vpop.f32.mrb[0].mxu0
  %v1267 = vpop.f32.mrb[0].mxu0
  %v1268 = vpop.f32.mrb[0].mxu0
  %1269 = vdwg.mxu0
  %1270 = vmatprep.subr.bf16.mxu0 0
  %1271 = vmatpush1.bf16.msra.mxu0 %v918
  %1272 = vmatprep.subr.bf16.mxu0 0
  %1273 = vmatpush1.bf16.msra.mxu0 %v919
  %1274 = vmatprep.subr.bf16.mxu0 0
  %1275 = vmatpush1.bf16.msra.mxu0 %v920
  %1276 = vmatprep.subr.bf16.mxu0 0
  %1277 = vmatpush1.bf16.msra.mxu0 %v921
  %1278 = vmatprep.subr.bf16.mxu0 0
  %1279 = vmatpush1.bf16.msra.mxu0 %v922
  %1280 = vmatprep.subr.bf16.mxu0 0
  %1281 = vmatpush1.bf16.msra.mxu0 %v923
  %1282 = vmatprep.subr.bf16.mxu0 0
  %1283 = vmatpush1.bf16.msra.mxu0 %v924
  %1284 = vmatprep.subr.bf16.mxu0 0
  %1285 = vmatpush1.bf16.msra.mxu0 %v925
  %1286 = vmatprep.subr.bf16.mxu0 0
  %1287 = vmatpush1.bf16.msra.mxu0 %v926
  %1288 = vmatprep.subr.bf16.mxu0 0
  %1289 = vmatpush1.bf16.msra.mxu0 %v927
  %1290 = vmatprep.subr.bf16.mxu0 0
  %1291 = vmatpush1.bf16.msra.mxu0 %v928
  %1292 = vmatprep.subr.bf16.mxu0 0
  %1293 = vmatpush1.bf16.msra.mxu0 %v929
  %1294 = vmatprep.subr.bf16.mxu0 0
  %1295 = vmatpush1.bf16.msra.mxu0 %v930
  %1296 = vmatprep.subr.bf16.mxu0 0
  %1297 = vmatpush1.bf16.msra.mxu0 %v931
  %1298 = vmatprep.subr.bf16.mxu0 0
  %1299 = vmatpush1.bf16.msra.mxu0 %v932
  %1300 = vmatprep.subr.bf16.mxu0 0
  %1301 = vmatpush1.bf16.msra.mxu0 %v933
  %1302 = vmatprep.mubr.bf16.mxu0 %v319
  %1303 = vmatmul.mubr.bf16.gmra.mrb[0].mxu0 %v318
  %v1304 = vpop.f32.mrb[0].mxu0
  %v1305 = vadd.f32 %v1265, %v1304
  %v1306 = vpop.f32.mrb[0].mxu0
  %v1307 = vpop.f32.mrb[0].mxu0
  %v1308 = vpop.f32.mrb[0].mxu0
  %1309 = vdwg.mxu0
  %1310 = vmatprep.subr.bf16.mxu0 0
  %1311 = vmatpush1.bf16.msra.mxu0 %v934
  %1312 = vmatprep.subr.bf16.mxu0 0
  %1313 = vmatpush1.bf16.msra.mxu0 %v935
  %1314 = vmatprep.subr.bf16.mxu0 0
  %1315 = vmatpush1.bf16.msra.mxu0 %v936
  %1316 = vmatprep.subr.bf16.mxu0 0
  %1317 = vmatpush1.bf16.msra.mxu0 %v937
  %1318 = vmatprep.subr.bf16.mxu0 0
  %1319 = vmatpush1.bf16.msra.mxu0 %v938
  %1320 = vmatprep.subr.bf16.mxu0 0
  %1321 = vmatpush1.bf16.msra.mxu0 %v939
  %1322 = vmatprep.subr.bf16.mxu0 0
  %1323 = vmatpush1.bf16.msra.mxu0 %v940
  %1324 = vmatprep.subr.bf16.mxu0 0
  %1325 = vmatpush1.bf16.msra.mxu0 %v941
  %1326 = vmatprep.subr.bf16.mxu0 0
  %1327 = vmatpush1.bf16.msra.mxu0 %v942
  %1328 = vmatprep.subr.bf16.mxu0 0
  %1329 = vmatpush1.bf16.msra.mxu0 %v943
  %1330 = vmatprep.subr.bf16.mxu0 0
  %1331 = vmatpush1.bf16.msra.mxu0 %v944
  %1332 = vmatprep.subr.bf16.mxu0 0
  %1333 = vmatpush1.bf16.msra.mxu0 %v945
  %1334 = vmatprep.subr.bf16.mxu0 0
  %1335 = vmatpush1.bf16.msra.mxu0 %v946
  %1336 = vmatprep.subr.bf16.mxu0 0
  %1337 = vmatpush1.bf16.msra.mxu0 %v947
  %1338 = vmatprep.subr.bf16.mxu0 0
  %1339 = vmatpush1.bf16.msra.mxu0 %v948
  %1340 = vmatprep.subr.bf16.mxu0 0
  %1341 = vmatpush1.bf16.msra.mxu0 %v949
  %1342 = vmatprep.mubr.bf16.mxu0 %v321
  %1343 = vmatmul.mubr.bf16.gmra.mrb[0].mxu0 %v320
  %v1344 = vpop.f32.mrb[0].mxu0
  %v1345 = vadd.f32 %v1305, %v1344
  %v1346 = vpop.f32.mrb[0].mxu0
  %v1347 = vpop.f32.mrb[0].mxu0
  %v1348 = vpop.f32.mrb[0].mxu0
  %1349 = vdwg.mxu0
  %1350 = vmatprep.subr.bf16.mxu0 0
  %1351 = vmatpush1.bf16.msra.mxu0 %v950
  %1352 = vmatprep.subr.bf16.mxu0 0
  %1353 = vmatpush1.bf16.msra.mxu0 %v951
  %1354 = vmatprep.subr.bf16.mxu0 0
  %1355 = vmatpush1.bf16.msra.mxu0 %v952
  %1356 = vmatprep.subr.bf16.mxu0 0
  %1357 = vmatpush1.bf16.msra.mxu0 %v953
  %1358 = vmatprep.subr.bf16.mxu0 0
  %1359 = vmatpush1.bf16.msra.mxu0 %v954
  %1360 = vmatprep.subr.bf16.mxu0 0
  %1361 = vmatpush1.bf16.msra.mxu0 %v955
  %1362 = vmatprep.subr.bf16.mxu0 0
  %1363 = vmatpush1.bf16.msra.mxu0 %v956
  %1364 = vmatprep.subr.bf16.mxu0 0
  %1365 = vmatpush1.bf16.msra.mxu0 %v957
  %1366 = vmatprep.subr.bf16.mxu0 0
  %1367 = vmatpush1.bf16.msra.mxu0 %v958
  %1368 = vmatprep.subr.bf16.mxu0 0
  %1369 = vmatpush1.bf16.msra.mxu0 %v959
  %1370 = vmatprep.subr.bf16.mxu0 0
  %1371 = vmatpush1.bf16.msra.mxu0 %v960
  %1372 = vmatprep.subr.bf16.mxu0 0
  %1373 = vmatpush1.bf16.msra.mxu0 %v961
  %1374 = vmatprep.subr.bf16.mxu0 0
  %1375 = vmatpush1.bf16.msra.mxu0 %v962
  %1376 = vmatprep.subr.bf16.mxu0 0
  %1377 = vmatpush1.bf16.msra.mxu0 %v963
  %1378 = vmatprep.subr.bf16.mxu0 0
  %1379 = vmatpush1.bf16.msra.mxu0 %v964
  %1380 = vmatprep.subr.bf16.mxu0 0
  %1381 = vmatpush1.bf16.msra.mxu0 %v965
  %1382 = vmatprep.mubr.bf16.mxu0 %v323
  %1383 = vmatmul.mubr.bf16.gmra.mrb[0].mxu0 %v322
  %v1384 = vpop.f32.mrb[0].mxu0
  %v1385 = vadd.f32 %v1345, %v1384
  %v1386 = vpop.f32.mrb[0].mxu0
  %v1387 = vpop.f32.mrb[0].mxu0
  %v1388 = vpop.f32.mrb[0].mxu0
  %1389 = vdwg.mxu0
  %1390 = vmatprep.subr.bf16.mxu0 0
  %1391 = vmatpush1.bf16.msra.mxu0 %v966
  %1392 = vmatprep.subr.bf16.mxu0 0
  %1393 = vmatpush1.bf16.msra.mxu0 %v967
  %1394 = vmatprep.subr.bf16.mxu0 0
  %1395 = vmatpush1.bf16.msra.mxu0 %v968
  %1396 = vmatprep.subr.bf16.mxu0 0
  %1397 = vmatpush1.bf16.msra.mxu0 %v969
  %1398 = vmatprep.subr.bf16.mxu0 0
  %1399 = vmatpush1.bf16.msra.mxu0 %v970
  %1400 = vmatprep.subr.bf16.mxu0 0
  %1401 = vmatpush1.bf16.msra.mxu0 %v971
  %1402 = vmatprep.subr.bf16.mxu0 0
  %1403 = vmatpush1.bf16.msra.mxu0 %v972
  %1404 = vmatprep.subr.bf16.mxu0 0
  %1405 = vmatpush1.bf16.msra.mxu0 %v973
  %1406 = vmatprep.subr.bf16.mxu0 0
  %1407 = vmatpush1.bf16.msra.mxu0 %v974
  %1408 = vmatprep.subr.bf16.mxu0 0
  %1409 = vmatpush1.bf16.msra.mxu0 %v975
  %1410 = vmatprep.subr.bf16.mxu0 0
  %1411 = vmatpush1.bf16.msra.mxu0 %v976
  %1412 = vmatprep.subr.bf16.mxu0 0
  %1413 = vmatpush1.bf16.msra.mxu0 %v977
  %1414 = vmatprep.subr.bf16.mxu0 0
  %1415 = vmatpush1.bf16.msra.mxu0 %v978
  %1416 = vmatprep.subr.bf16.mxu0 0
  %1417 = vmatpush1.bf16.msra.mxu0 %v979
  %1418 = vmatprep.subr.bf16.mxu0 0
  %1419 = vmatpush1.bf16.msra.mxu0 %v980
  %1420 = vmatprep.subr.bf16.mxu0 0
  %1421 = vmatpush1.bf16.msra.mxu0 %v981
  %1422 = vmatprep.mubr.bf16.mxu0 %v325
  %1423 = vmatmul.mubr.bf16.gmra.mrb[0].mxu0 %v324
  %v1424 = vpop.f32.mrb[0].mxu0
  %v1425 = vadd.f32 %v1385, %v1424
  %v1426 = vpop.f32.mrb[0].mxu0
  %v1427 = vpop.f32.mrb[0].mxu0
  %v1428 = vpop.f32.mrb[0].mxu0
  %1429 = vdwg.mxu0
  %1430 = vst [vmem:[%s3] sm:$0xff] %v1425
  // Predicated region
  $region14: #{net_forward.5} parent=0 // pred_check
    _
  $region15: #{net_forward.5} parent=0 // pred_check_branch
    %1432 = sbr.rel (0) target = $region17
  $region16: #{net_forward.5} parent=0 // pred_region
    _
  $region17: #{net_forward.5} parent=0 // pred_fallthru
    _
  // Predicated region
  $region18: #{net_forward.5} parent=0 // pred_check
    _
  $region19: #{net_forward.5} parent=0 // pred_check_branch
    %1434 = sbr.rel (0) target = $region21
  $region20: #{net_forward.5} parent=0 // pred_region
    _
  $region21: #{net_forward.5} parent=0 // pred_fallthru
    _

</llo_original>
